<compile_context>
chip_gen: v7x
topology: tpu7x:2x2x1
jax: 0.10.0
libtpu: 0.0.40
codegen_flags: <defaults>
</compile_context>

<pallas_src>
import math

import jax
import jax.numpy as jnp
from jax.experimental import pallas as pl
from jax.experimental.pallas import tpu as pltpu

# ---------------- config (small synthetic BERT) ----------------
B = 2            # batch
S = 8            # sequence length
H = 32           # hidden size
NH = 4           # attention heads
DH = H // NH     # head dim
I = 128          # FFN intermediate size (4*H)
L = 2            # n_bertlayers (small stand-in for 12)
VOCAB = 64
MAX_POS = 16
TYPE_VOCAB = 2
NUM_LABELS = 3
LN_EPS = 1e-12


# ---------------- fused Pallas kernel (one grid step == one batch) ----------------
def _bert_cl_kernel(ids_ref, seg_ref,                      # scalar prefetch (SMEM)
                    mask_ref, word_ref, pos_ref, type_ref, eg_ref, eb_ref,
                    wqkv_ref, bqkv_ref, wo_ref, bo_ref, g1_ref, b1_ref,
                    wi_ref, bi_ref, wp_ref, bp_ref, g2_ref, b2_ref,
                    cw_ref, cb_ref, o_ref):
    b = pl.program_id(0)
    f32 = jnp.float32
    bf16 = jnp.bfloat16

    def layernorm(h, g, bias):
        mu = jnp.mean(h, axis=-1, keepdims=True)
        var = jnp.mean((h - mu) ** 2, axis=-1, keepdims=True)
        return (h - mu) * jax.lax.rsqrt(var + LN_EPS) * g + bias

    # ---- in-kernel embedding gather (no dynamic addressing) ----
    # token / segment ids for this batch live in SMEM; build (S, 1) id columns.
    wid_col = jnp.concatenate(
        [jnp.full((1, 1), ids_ref[b, s], jnp.int32) for s in range(S)], axis=0)
    tid_col = jnp.concatenate(
        [jnp.full((1, 1), seg_ref[b, s], jnp.int32) for s in range(S)], axis=0)
    # word embedding: one-hot (S, VOCAB) @ table (VOCAB, H) on the MXU.
    w_onehot = (wid_col == jax.lax.broadcasted_iota(jnp.int32, (S, VOCAB), 1)
                ).astype(f32)
    word_rows = jnp.dot(w_onehot, word_ref[...], preferred_element_type=f32)   # (S, H)
    # token-type embedding (2 entries): pure VPU select, no matmul needed.
    type_rows = jnp.zeros((S, H), f32)
    for t in range(TYPE_VOCAB):
        type_rows = type_rows + (tid_col == t).astype(f32) * type_ref[t:t + 1, :]
    emb = word_rows + type_rows + pos_ref[0:S, :]
    x = layernorm(emb, eg_ref[...], eb_ref[...])                               # (S, H) f32

    # additive attention mask, broadcast ONCE (hoisted out of the layer loop).
    add_mask = (1.0 - mask_ref[...].astype(f32)) * (-10000.0)                  # (1, 1, S)
    mask_b = jnp.broadcast_to(add_mask, (NH, S, S))

    # Statically unrolled layer loop; all weights + activations stay VMEM/vreg-resident.
    for l in range(L):
        # Fused QKV projection: one MXU push (bf16 in, f32 accumulate).
        qkv = jnp.dot(x.astype(bf16), wqkv_ref[l],
                      preferred_element_type=f32) + bqkv_ref[l]                # (S, 3H)
        qkv_b = qkv.astype(bf16)
        # Head-major views (NH, S, DH); heads then processed in ONE batched contraction.
        q3 = jnp.stack([qkv_b[:, h * DH:(h + 1) * DH] for h in range(NH)], axis=0)
        k3 = jnp.stack([qkv_b[:, H + h * DH:H + (h + 1) * DH] for h in range(NH)], axis=0)
        v3 = jnp.stack([qkv_b[:, 2 * H + h * DH:2 * H + (h + 1) * DH] for h in range(NH)],
                       axis=0)

        # scores: 1/sqrt(DH) already folded into the Q projection weights.
        s = jnp.einsum('hqd,hkd->hqk', q3, k3,
                       preferred_element_type=f32) + mask_b                    # (NH, S, S)
        mx = jnp.max(s, axis=-1, keepdims=True)
        e = jnp.exp(s - mx)                                                    # f32 softmax
        p = e * pl.reciprocal(jnp.sum(e, axis=-1, keepdims=True), approx=True)
        ctx = jnp.einsum('hqk,hkd->hqd', p.astype(bf16), v3,
                         preferred_element_type=f32)                           # (NH, S, DH)

        # Output projection batched over heads, summed -> context never touches
        # VMEM scratch and heads are never re-interleaved (wo is stored (NH, DH, H)).
        attn_h = jnp.einsum('hqd,hdo->hqo', ctx.astype(bf16), wo_ref[l],
                            preferred_element_type=f32)                        # (NH, S, H)
        attn = jnp.sum(attn_h, axis=0) + bo_ref[l]                             # (S, H)
        x = layernorm(attn + x, g1_ref[l], b1_ref[l])

        # Feed-forward with GELU (f32 elementwise, bf16 at the MXU).
        hf = jnp.dot(x.astype(bf16), wi_ref[l],
                     preferred_element_type=f32) + bi_ref[l]                   # (S, I)
        # TODO(synk): reference pytorch_pretrained_bert uses exact erf GELU; the tanh
        # approximation is used here (erf lowering in Mosaic is not guaranteed).
        hf = 0.5 * hf * (1.0 + jnp.tanh(0.7978845608028654 *
                                        (hf + 0.044715 * hf * hf * hf)))
        ff = jnp.dot(hf.astype(bf16), wp_ref[l],
                     preferred_element_type=f32) + bp_ref[l]
        x = layernorm(ff + x, g2_ref[l], b2_ref[l])

    # Classifier only on the CLS row of this batch (dropout p=0.1 is identity at inference).
    logits = jnp.dot(x[0:1, :].astype(bf16), cw_ref[...],
                     preferred_element_type=f32) + cb_ref[...]                 # (1, NUM_LABELS)
    o_ref[...] = logits.reshape(1, 1, NUM_LABELS)


def _rep_spec(shape):
    """Full-array block, same block for every grid step (weights / tables)."""
    n = len(shape)
    return pl.BlockSpec(shape, lambda *_: (0,) * n)


# ---------------- forward (no_pooler=True path) ----------------
def bert_cl_forward(params, input_ids, segment_ids, input_mask):
    mask3 = input_mask.astype(jnp.int32).reshape(B, 1, S)

    operands = (
        params["word_emb"], params["pos_emb"], params["type_emb"],
        params["emb_ln_g"], params["emb_ln_b"],
        params["wqkv"], params["bqkv"],
        params["wo"], params["bo"],
        params["ln1_g"], params["ln1_b"],
        params["wi"], params["bi"],
        params["wp"], params["bp"],
        params["ln2_g"], params["ln2_b"],
        params["cls_w"], params["cls_b"],
    )

    grid_spec = pltpu.PrefetchScalarGridSpec(
        num_scalar_prefetch=2,                 # input_ids, segment_ids -> SMEM
        grid=(B,),                             # one grid step per batch element
        in_specs=[pl.BlockSpec((1, 1, S), lambda b, ids, seg: (b, 0, 0))]      # mask
        + [_rep_spec(op.shape) for op in operands],
        out_specs=pl.BlockSpec((1, 1, NUM_LABELS), lambda b, ids, seg: (b, 0, 0)),
    )

    logits = pl.pallas_call(
        _bert_cl_kernel,
        out_shape=jax.ShapeDtypeStruct((B, 1, NUM_LABELS), jnp.float32),
        grid_spec=grid_spec,
        compiler_params=pltpu.CompilerParams(
            dimension_semantics=("parallel",)),   # batches independent -> 2 TCs on v7x
    )(input_ids.astype(jnp.int32), segment_ids.astype(jnp.int32), mask3, *operands)

    return logits.reshape(B, NUM_LABELS)


# ---------------- parameter init (synthetic, deterministic) ----------------
def init_params(key):
    keys = jax.random.split(key, 4 + L)

    def normal(k, shape):
        return 0.02 * jax.random.normal(k, shape, jnp.float32)

    scale = 1.0 / math.sqrt(DH)
    wqkv, wo, wi, wp = [], [], [], []
    for l in range(L):
        lk = jax.random.split(keys[4 + l], 6)
        # 1/sqrt(DH) attention scale folded into the Q projection (math-equivalent;
        # the Q bias, here zero, would carry the same factor).
        wq = normal(lk[0], (H, H)) * scale
        wk = normal(lk[1], (H, H))
        wv = normal(lk[2], (H, H))
        wqkv.append(jnp.concatenate([wq, wk, wv], axis=1))          # (H, 3H)
        # output projection stored head-major (NH, DH, H) -> no in-kernel re-interleave.
        wo.append(normal(lk[3], (H, H)).reshape(NH, DH, H))
        wi.append(normal(lk[4], (H, I)))
        wp.append(normal(lk[5], (I, H)))

    bf16 = jnp.bfloat16
    params = {
        "word_emb": normal(keys[0], (VOCAB, H)),
        "pos_emb": normal(keys[1], (MAX_POS, H)),
        "type_emb": normal(keys[2], (TYPE_VOCAB, H)),
        "emb_ln_g": jnp.ones((1, H), jnp.float32),
        "emb_ln_b": jnp.zeros((1, H), jnp.float32),
        # MXU-side weights in bf16; biases / LayerNorm params stay f32.
        "wqkv": jnp.stack(wqkv).astype(bf16),
        "bqkv": jnp.zeros((L, 1, 3 * H), jnp.float32),
        "wo": jnp.stack(wo).astype(bf16),
        "bo": jnp.zeros((L, 1, H), jnp.float32),
        "ln1_g": jnp.ones((L, 1, H), jnp.float32),
        "ln1_b": jnp.zeros((L, 1, H), jnp.float32),
        "wi": jnp.stack(wi).astype(bf16),
        "bi": jnp.zeros((L, 1, I), jnp.float32),
        "wp": jnp.stack(wp).astype(bf16),
        "bp": jnp.zeros((L, 1, H), jnp.float32),
        "ln2_g": jnp.ones((L, 1, H), jnp.float32),
        "ln2_b": jnp.zeros((L, 1, H), jnp.float32),
        "cls_w": normal(keys[3], (H, NUM_LABELS)).astype(bf16),
        "cls_b": jnp.zeros((1, NUM_LABELS), jnp.float32),
    }
    return params


if __name__ == "__main__":
    key = jax.random.PRNGKey(0)
    k_param, k_ids, k_seg = jax.random.split(key, 3)

    params = init_params(k_param)

    input_ids = jax.random.randint(k_ids, (B, S), 0, VOCAB, dtype=jnp.int32)
    segment_ids = jax.random.randint(k_seg, (B, S), 0, TYPE_VOCAB, dtype=jnp.int32)
    # mask: first row fully valid, second row has 2 padding positions.
    input_mask = jnp.array(
        [[1, 1, 1, 1, 1, 1, 1, 1],
         [1, 1, 1, 1, 1, 1, 0, 0]], dtype=jnp.int32)

    logits = jax.jit(bert_cl_forward)(params, input_ids, segment_ids, input_mask)
    jax.block_until_ready(logits)
    assert logits.shape == (B, NUM_LABELS)
    print("KERNEL_OK")
</pallas_src>

<mosaic_0001>
module attributes {stable_mosaic.version = 11 : i64} {
  func.func @_bert_cl_kernel(%arg0: i32, %arg1: memref<2x8xi32, #tpu.memory_space<smem>>, %arg2: memref<2x8xi32, #tpu.memory_space<smem>>, %arg3: memref<1x1x8xi32, #tpu.memory_space<vmem>>, %arg4: memref<64x32xf32, #tpu.memory_space<vmem>>, %arg5: memref<16x32xf32, #tpu.memory_space<vmem>>, %arg6: memref<2x32xf32, #tpu.memory_space<vmem>>, %arg7: memref<1x32xf32, #tpu.memory_space<vmem>>, %arg8: memref<1x32xf32, #tpu.memory_space<vmem>>, %arg9: memref<2x32x96xbf16, #tpu.memory_space<vmem>>, %arg10: memref<2x1x96xf32, #tpu.memory_space<vmem>>, %arg11: memref<2x4x8x32xbf16, #tpu.memory_space<vmem>>, %arg12: memref<2x1x32xf32, #tpu.memory_space<vmem>>, %arg13: memref<2x1x32xf32, #tpu.memory_space<vmem>>, %arg14: memref<2x1x32xf32, #tpu.memory_space<vmem>>, %arg15: memref<2x32x128xbf16, #tpu.memory_space<vmem>>, %arg16: memref<2x1x128xf32, #tpu.memory_space<vmem>>, %arg17: memref<2x128x32xbf16, #tpu.memory_space<vmem>>, %arg18: memref<2x1x32xf32, #tpu.memory_space<vmem>>, %arg19: memref<2x1x32xf32, #tpu.memory_space<vmem>>, %arg20: memref<2x1x32xf32, #tpu.memory_space<vmem>>, %arg21: memref<32x3xbf16, #tpu.memory_space<vmem>>, %arg22: memref<1x3xf32, #tpu.memory_space<vmem>>, %arg23: memref<1x1x3xf32, #tpu.memory_space<vmem>>) attributes {dimension_semantics = [#tpu.dimension_semantics<parallel>], iteration_bounds = array<i64: 2>, scalar_prefetch = 2 : i64, scratch_operands = 0 : i64, tpu.core_type = #tpu.core_type<tc>, window_params = [{transform_indices = @transform_0, window_bounds = array<i64: 1, 1, 8>}, {pipeline_mode = #tpu.pipeline_mode<synchronous>, transform_indices = @transform_1, window_bounds = array<i64: 64, 32>}, {pipeline_mode = #tpu.pipeline_mode<synchronous>, transform_indices = @transform_2, window_bounds = array<i64: 16, 32>}, {pipeline_mode = #tpu.pipeline_mode<synchronous>, transform_indices = @transform_3, window_bounds = array<i64: 2, 32>}, {pipeline_mode = #tpu.pipeline_mode<synchronous>, transform_indices = @transform_4, window_bounds = array<i64: 1, 32>}, {pipeline_mode = #tpu.pipeline_mode<synchronous>, transform_indices = @transform_5, window_bounds = array<i64: 1, 32>}, {pipeline_mode = #tpu.pipeline_mode<synchronous>, transform_indices = @transform_6, window_bounds = array<i64: 2, 32, 96>}, {pipeline_mode = #tpu.pipeline_mode<synchronous>, transform_indices = @transform_7, window_bounds = array<i64: 2, 1, 96>}, {pipeline_mode = #tpu.pipeline_mode<synchronous>, transform_indices = @transform_8, window_bounds = array<i64: 2, 4, 8, 32>}, {pipeline_mode = #tpu.pipeline_mode<synchronous>, transform_indices = @transform_9, window_bounds = array<i64: 2, 1, 32>}, {pipeline_mode = #tpu.pipeline_mode<synchronous>, transform_indices = @transform_10, window_bounds = array<i64: 2, 1, 32>}, {pipeline_mode = #tpu.pipeline_mode<synchronous>, transform_indices = @transform_11, window_bounds = array<i64: 2, 1, 32>}, {pipeline_mode = #tpu.pipeline_mode<synchronous>, transform_indices = @transform_12, window_bounds = array<i64: 2, 32, 128>}, {pipeline_mode = #tpu.pipeline_mode<synchronous>, transform_indices = @transform_13, window_bounds = array<i64: 2, 1, 128>}, {pipeline_mode = #tpu.pipeline_mode<synchronous>, transform_indices = @transform_14, window_bounds = array<i64: 2, 128, 32>}, {pipeline_mode = #tpu.pipeline_mode<synchronous>, transform_indices = @transform_15, window_bounds = array<i64: 2, 1, 32>}, {pipeline_mode = #tpu.pipeline_mode<synchronous>, transform_indices = @transform_16, window_bounds = array<i64: 2, 1, 32>}, {pipeline_mode = #tpu.pipeline_mode<synchronous>, transform_indices = @transform_17, window_bounds = array<i64: 2, 1, 32>}, {pipeline_mode = #tpu.pipeline_mode<synchronous>, transform_indices = @transform_18, window_bounds = array<i64: 32, 3>}, {pipeline_mode = #tpu.pipeline_mode<synchronous>, transform_indices = @transform_19, window_bounds = array<i64: 1, 3>}, {transform_indices = @transform_20, window_bounds = array<i64: 1, 1, 3>}]} {
    %0 = arith.index_cast %arg0 : i32 to index
    %c0 = arith.constant 0 : index
    %1 = memref.load %arg1[%0, %c0] : memref<2x8xi32, #tpu.memory_space<smem>>
    %2 = vector.broadcast %1 : i32 to vector<1x1xi32>
    %3 = arith.index_cast %arg0 : i32 to index
    %c1 = arith.constant 1 : index
    %4 = memref.load %arg1[%3, %c1] : memref<2x8xi32, #tpu.memory_space<smem>>
    %5 = vector.broadcast %4 : i32 to vector<1x1xi32>
    %6 = arith.index_cast %arg0 : i32 to index
    %c2 = arith.constant 2 : index
    %7 = memref.load %arg1[%6, %c2] : memref<2x8xi32, #tpu.memory_space<smem>>
    %8 = vector.broadcast %7 : i32 to vector<1x1xi32>
    %9 = arith.index_cast %arg0 : i32 to index
    %c3 = arith.constant 3 : index
    %10 = memref.load %arg1[%9, %c3] : memref<2x8xi32, #tpu.memory_space<smem>>
    %11 = vector.broadcast %10 : i32 to vector<1x1xi32>
    %12 = arith.index_cast %arg0 : i32 to index
    %c4 = arith.constant 4 : index
    %13 = memref.load %arg1[%12, %c4] : memref<2x8xi32, #tpu.memory_space<smem>>
    %14 = vector.broadcast %13 : i32 to vector<1x1xi32>
    %15 = arith.index_cast %arg0 : i32 to index
    %c5 = arith.constant 5 : index
    %16 = memref.load %arg1[%15, %c5] : memref<2x8xi32, #tpu.memory_space<smem>>
    %17 = vector.broadcast %16 : i32 to vector<1x1xi32>
    %18 = arith.index_cast %arg0 : i32 to index
    %c6 = arith.constant 6 : index
    %19 = memref.load %arg1[%18, %c6] : memref<2x8xi32, #tpu.memory_space<smem>>
    %20 = vector.broadcast %19 : i32 to vector<1x1xi32>
    %21 = arith.index_cast %arg0 : i32 to index
    %c7 = arith.constant 7 : index
    %22 = memref.load %arg1[%21, %c7] : memref<2x8xi32, #tpu.memory_space<smem>>
    %23 = vector.broadcast %22 : i32 to vector<1x1xi32>
    %24 = tpu.concatenate %2, %5, %8, %11, %14, %17, %20, %23 in 0 : vector<1x1xi32>, vector<1x1xi32>, vector<1x1xi32>, vector<1x1xi32>, vector<1x1xi32>, vector<1x1xi32>, vector<1x1xi32>, vector<1x1xi32> -> vector<8x1xi32>
    %25 = arith.index_cast %arg0 : i32 to index
    %c0_0 = arith.constant 0 : index
    %26 = memref.load %arg2[%25, %c0_0] : memref<2x8xi32, #tpu.memory_space<smem>>
    %27 = vector.broadcast %26 : i32 to vector<1x1xi32>
    %28 = arith.index_cast %arg0 : i32 to index
    %c1_1 = arith.constant 1 : index
    %29 = memref.load %arg2[%28, %c1_1] : memref<2x8xi32, #tpu.memory_space<smem>>
    %30 = vector.broadcast %29 : i32 to vector<1x1xi32>
    %31 = arith.index_cast %arg0 : i32 to index
    %c2_2 = arith.constant 2 : index
    %32 = memref.load %arg2[%31, %c2_2] : memref<2x8xi32, #tpu.memory_space<smem>>
    %33 = vector.broadcast %32 : i32 to vector<1x1xi32>
    %34 = arith.index_cast %arg0 : i32 to index
    %c3_3 = arith.constant 3 : index
    %35 = memref.load %arg2[%34, %c3_3] : memref<2x8xi32, #tpu.memory_space<smem>>
    %36 = vector.broadcast %35 : i32 to vector<1x1xi32>
    %37 = arith.index_cast %arg0 : i32 to index
    %c4_4 = arith.constant 4 : index
    %38 = memref.load %arg2[%37, %c4_4] : memref<2x8xi32, #tpu.memory_space<smem>>
    %39 = vector.broadcast %38 : i32 to vector<1x1xi32>
    %40 = arith.index_cast %arg0 : i32 to index
    %c5_5 = arith.constant 5 : index
    %41 = memref.load %arg2[%40, %c5_5] : memref<2x8xi32, #tpu.memory_space<smem>>
    %42 = vector.broadcast %41 : i32 to vector<1x1xi32>
    %43 = arith.index_cast %arg0 : i32 to index
    %c6_6 = arith.constant 6 : index
    %44 = memref.load %arg2[%43, %c6_6] : memref<2x8xi32, #tpu.memory_space<smem>>
    %45 = vector.broadcast %44 : i32 to vector<1x1xi32>
    %46 = arith.index_cast %arg0 : i32 to index
    %c7_7 = arith.constant 7 : index
    %47 = memref.load %arg2[%46, %c7_7] : memref<2x8xi32, #tpu.memory_space<smem>>
    %48 = vector.broadcast %47 : i32 to vector<1x1xi32>
    %49 = tpu.concatenate %27, %30, %33, %36, %39, %42, %45, %48 in 0 : vector<1x1xi32>, vector<1x1xi32>, vector<1x1xi32>, vector<1x1xi32>, vector<1x1xi32>, vector<1x1xi32>, vector<1x1xi32>, vector<1x1xi32> -> vector<8x1xi32>
    %50 = tpu.iota {dimensions = array<i32: 1>} : vector<8x64xi32>
    %51 = vector.broadcast %24 : vector<8x1xi32> to vector<8x64xi32>
    %52 = arith.cmpi eq, %51, %50 : vector<8x64xi32>
    %53 = arith.extui %52 : vector<8x64xi1> to vector<8x64xi32>
    %54 = arith.sitofp %53 : vector<8x64xi32> to vector<8x64xf32>
    %c0_8 = arith.constant 0 : index
    %c0_9 = arith.constant 0 : index
    %55 = vector.load %arg4[%c0_8, %c0_9] : memref<64x32xf32, #tpu.memory_space<vmem>>, vector<64x32xf32>
    %cst = arith.constant dense<0.000000e+00> : vector<8x32xf32>
    %56 = tpu.matmul %54, %55, %cst {dimension_numbers = #tpu.dot_dimension_numbers<[1], [0], [0], [1], [0, 0, 1, 1], [], []>} : vector<8x64xf32>, vector<64x32xf32>, vector<8x32xf32> -> vector<8x32xf32>
    %cst_10 = arith.constant 0.000000e+00 : f32
    %57 = vector.broadcast %cst_10 : f32 to vector<8x32xf32>
    %c0_i32 = arith.constant 0 : i32
    %58 = vector.broadcast %c0_i32 : i32 to vector<8x1xi32>
    %59 = arith.cmpi eq, %49, %58 : vector<8x1xi32>
    %60 = arith.extui %59 : vector<8x1xi1> to vector<8x1xi32>
    %61 = arith.sitofp %60 : vector<8x1xi32> to vector<8x1xf32>
    %c0_11 = arith.constant 0 : index
    %c0_12 = arith.constant 0 : index
    %62 = vector.load %arg6[%c0_11, %c0_12] : memref<2x32xf32, #tpu.memory_space<vmem>>, vector<1x32xf32>
    %63 = vector.broadcast %61 : vector<8x1xf32> to vector<8x32xf32>
    %64 = vector.broadcast %62 : vector<1x32xf32> to vector<8x32xf32>
    %65 = arith.mulf %63, %64 : vector<8x32xf32>
    %66 = arith.addf %57, %65 : vector<8x32xf32>
    %c1_i32 = arith.constant 1 : i32
    %67 = vector.broadcast %c1_i32 : i32 to vector<8x1xi32>
    %68 = arith.cmpi eq, %49, %67 : vector<8x1xi32>
    %69 = arith.extui %68 : vector<8x1xi1> to vector<8x1xi32>
    %70 = arith.sitofp %69 : vector<8x1xi32> to vector<8x1xf32>
    %c1_13 = arith.constant 1 : index
    %c0_14 = arith.constant 0 : index
    %71 = vector.load %arg6[%c1_13, %c0_14] : memref<2x32xf32, #tpu.memory_space<vmem>>, vector<1x32xf32>
    %72 = vector.broadcast %70 : vector<8x1xf32> to vector<8x32xf32>
    %73 = vector.broadcast %71 : vector<1x32xf32> to vector<8x32xf32>
    %74 = arith.mulf %72, %73 : vector<8x32xf32>
    %75 = arith.addf %66, %74 : vector<8x32xf32>
    %76 = arith.addf %56, %75 : vector<8x32xf32>
    %c0_15 = arith.constant 0 : index
    %c0_16 = arith.constant 0 : index
    %77 = vector.load %arg5[%c0_15, %c0_16] : memref<16x32xf32, #tpu.memory_space<vmem>>, vector<8x32xf32>
    %78 = arith.addf %76, %77 : vector<8x32xf32>
    %c0_17 = arith.constant 0 : index
    %c0_18 = arith.constant 0 : index
    %79 = vector.load %arg7[%c0_17, %c0_18] : memref<1x32xf32, #tpu.memory_space<vmem>>, vector<1x32xf32>
    %c0_19 = arith.constant 0 : index
    %c0_20 = arith.constant 0 : index
    %80 = vector.load %arg8[%c0_19, %c0_20] : memref<1x32xf32, #tpu.memory_space<vmem>>, vector<1x32xf32>
    %cst_21 = arith.constant dense<0.000000e+00> : vector<8xf32>
    %81 = vector.multi_reduction <add>, %78, %cst_21 [1] : vector<8x32xf32> to vector<8xf32>
    %82 = vector.shape_cast %81 : vector<8xf32> to vector<8x1xf32>
    %cst_22 = arith.constant 3.200000e+01 : f32
    %83 = vector.broadcast %cst_22 : f32 to vector<8x1xf32>
    %84 = arith.divf %82, %83 : vector<8x1xf32>
    %85 = vector.broadcast %84 : vector<8x1xf32> to vector<8x32xf32>
    %86 = arith.subf %78, %85 : vector<8x32xf32>
    %87 = arith.mulf %86, %86 : vector<8x32xf32>
    %cst_23 = arith.constant dense<0.000000e+00> : vector<8xf32>
    %88 = vector.multi_reduction <add>, %87, %cst_23 [1] : vector<8x32xf32> to vector<8xf32>
    %89 = vector.shape_cast %88 : vector<8xf32> to vector<8x1xf32>
    %cst_24 = arith.constant 3.200000e+01 : f32
    %90 = vector.broadcast %cst_24 : f32 to vector<8x1xf32>
    %91 = arith.divf %89, %90 : vector<8x1xf32>
    %92 = vector.broadcast %84 : vector<8x1xf32> to vector<8x32xf32>
    %93 = arith.subf %78, %92 : vector<8x32xf32>
    %cst_25 = arith.constant 9.99999996E-13 : f32
    %94 = vector.broadcast %cst_25 : f32 to vector<8x1xf32>
    %95 = arith.addf %91, %94 : vector<8x1xf32>
    %96 = math.rsqrt %95 : vector<8x1xf32>
    %97 = vector.broadcast %96 : vector<8x1xf32> to vector<8x32xf32>
    %98 = arith.mulf %93, %97 : vector<8x32xf32>
    %99 = vector.broadcast %79 : vector<1x32xf32> to vector<8x32xf32>
    %100 = arith.mulf %98, %99 : vector<8x32xf32>
    %101 = vector.broadcast %80 : vector<1x32xf32> to vector<8x32xf32>
    %102 = arith.addf %100, %101 : vector<8x32xf32>
    %c0_26 = arith.constant 0 : index
    %c0_27 = arith.constant 0 : index
    %c0_28 = arith.constant 0 : index
    %103 = vector.load %arg3[%c0_26, %c0_27, %c0_28] : memref<1x1x8xi32, #tpu.memory_space<vmem>>, vector<1x1x8xi32>
    %104 = arith.sitofp %103 : vector<1x1x8xi32> to vector<1x1x8xf32>
    %cst_29 = arith.constant 1.000000e+00 : f32
    %105 = vector.broadcast %cst_29 : f32 to vector<1x1x8xf32>
    %106 = arith.subf %105, %104 : vector<1x1x8xf32>
    %cst_30 = arith.constant -1.000000e+04 : f32
    %107 = vector.broadcast %cst_30 : f32 to vector<1x1x8xf32>
    %108 = arith.mulf %106, %107 : vector<1x1x8xf32>
    %109 = vector.shape_cast %108 : vector<1x1x8xf32> to vector<1x1x8xf32>
    %110 = vector.broadcast %109 : vector<1x1x8xf32> to vector<4x8x8xf32>
    %111 = arith.truncf %102 : vector<8x32xf32> to vector<8x32xbf16>
    %c0_31 = arith.constant 0 : index
    %c0_32 = arith.constant 0 : index
    %c0_33 = arith.constant 0 : index
    %112 = vector.load %arg9[%c0_31, %c0_32, %c0_33] : memref<2x32x96xbf16, #tpu.memory_space<vmem>>, vector<1x32x96xbf16>
    %113 = vector.shape_cast %112 : vector<1x32x96xbf16> to vector<32x96xbf16>
    %cst_34 = arith.constant dense<0.000000e+00> : vector<8x96xf32>
    %114 = tpu.matmul %111, %113, %cst_34 {dimension_numbers = #tpu.dot_dimension_numbers<[1], [0], [0], [1], [0, 0, 1, 1], [], []>} : vector<8x32xbf16>, vector<32x96xbf16>, vector<8x96xf32> -> vector<8x96xf32>
    %c0_35 = arith.constant 0 : index
    %c0_36 = arith.constant 0 : index
    %c0_37 = arith.constant 0 : index
    %115 = vector.load %arg10[%c0_35, %c0_36, %c0_37] : memref<2x1x96xf32, #tpu.memory_space<vmem>>, vector<1x1x96xf32>
    %116 = vector.shape_cast %115 : vector<1x1x96xf32> to vector<1x96xf32>
    %117 = vector.broadcast %116 : vector<1x96xf32> to vector<8x96xf32>
    %118 = arith.addf %114, %117 : vector<8x96xf32>
    %119 = arith.truncf %118 : vector<8x96xf32> to vector<8x96xbf16>
    %120 = vector.extract_strided_slice %119 {offsets = [0, 0], sizes = [8, 8], strides = [1, 1]} : vector<8x96xbf16> to vector<8x8xbf16>
    %121 = vector.extract_strided_slice %119 {offsets = [0, 8], sizes = [8, 8], strides = [1, 1]} : vector<8x96xbf16> to vector<8x8xbf16>
    %122 = vector.extract_strided_slice %119 {offsets = [0, 16], sizes = [8, 8], strides = [1, 1]} : vector<8x96xbf16> to vector<8x8xbf16>
    %123 = vector.extract_strided_slice %119 {offsets = [0, 24], sizes = [8, 8], strides = [1, 1]} : vector<8x96xbf16> to vector<8x8xbf16>
    %124 = vector.shape_cast %120 : vector<8x8xbf16> to vector<1x8x8xbf16>
    %125 = vector.shape_cast %121 : vector<8x8xbf16> to vector<1x8x8xbf16>
    %126 = vector.shape_cast %122 : vector<8x8xbf16> to vector<1x8x8xbf16>
    %127 = vector.shape_cast %123 : vector<8x8xbf16> to vector<1x8x8xbf16>
    %128 = tpu.concatenate %124, %125, %126, %127 in 0 : vector<1x8x8xbf16>, vector<1x8x8xbf16>, vector<1x8x8xbf16>, vector<1x8x8xbf16> -> vector<4x8x8xbf16>
    %129 = vector.extract_strided_slice %119 {offsets = [0, 32], sizes = [8, 8], strides = [1, 1]} : vector<8x96xbf16> to vector<8x8xbf16>
    %130 = vector.extract_strided_slice %119 {offsets = [0, 40], sizes = [8, 8], strides = [1, 1]} : vector<8x96xbf16> to vector<8x8xbf16>
    %131 = vector.extract_strided_slice %119 {offsets = [0, 48], sizes = [8, 8], strides = [1, 1]} : vector<8x96xbf16> to vector<8x8xbf16>
    %132 = vector.extract_strided_slice %119 {offsets = [0, 56], sizes = [8, 8], strides = [1, 1]} : vector<8x96xbf16> to vector<8x8xbf16>
    %133 = vector.shape_cast %129 : vector<8x8xbf16> to vector<1x8x8xbf16>
    %134 = vector.shape_cast %130 : vector<8x8xbf16> to vector<1x8x8xbf16>
    %135 = vector.shape_cast %131 : vector<8x8xbf16> to vector<1x8x8xbf16>
    %136 = vector.shape_cast %132 : vector<8x8xbf16> to vector<1x8x8xbf16>
    %137 = tpu.concatenate %133, %134, %135, %136 in 0 : vector<1x8x8xbf16>, vector<1x8x8xbf16>, vector<1x8x8xbf16>, vector<1x8x8xbf16> -> vector<4x8x8xbf16>
    %138 = vector.extract_strided_slice %119 {offsets = [0, 64], sizes = [8, 8], strides = [1, 1]} : vector<8x96xbf16> to vector<8x8xbf16>
    %139 = vector.extract_strided_slice %119 {offsets = [0, 72], sizes = [8, 8], strides = [1, 1]} : vector<8x96xbf16> to vector<8x8xbf16>
    %140 = vector.extract_strided_slice %119 {offsets = [0, 80], sizes = [8, 8], strides = [1, 1]} : vector<8x96xbf16> to vector<8x8xbf16>
    %141 = vector.extract_strided_slice %119 {offsets = [0, 88], sizes = [8, 8], strides = [1, 1]} : vector<8x96xbf16> to vector<8x8xbf16>
    %142 = vector.shape_cast %138 : vector<8x8xbf16> to vector<1x8x8xbf16>
    %143 = vector.shape_cast %139 : vector<8x8xbf16> to vector<1x8x8xbf16>
    %144 = vector.shape_cast %140 : vector<8x8xbf16> to vector<1x8x8xbf16>
    %145 = vector.shape_cast %141 : vector<8x8xbf16> to vector<1x8x8xbf16>
    %146 = tpu.concatenate %142, %143, %144, %145 in 0 : vector<1x8x8xbf16>, vector<1x8x8xbf16>, vector<1x8x8xbf16>, vector<1x8x8xbf16> -> vector<4x8x8xbf16>
    "tpu.trace_start"() <{level = 10 : i32, message = "hqd,hkd->hqk"}> : () -> ()
    %cst_38 = arith.constant dense<0.000000e+00> : vector<4x8x8xf32>
    %147 = tpu.matmul %128, %137, %cst_38 {dimension_numbers = #tpu.dot_dimension_numbers<[2], [2], [1], [1], [0, 0, 0, 1, 1, 1], [0], [0]>} : vector<4x8x8xbf16>, vector<4x8x8xbf16>, vector<4x8x8xf32> -> vector<4x8x8xf32>
    "tpu.trace_stop"() : () -> ()
    %148 = arith.addf %147, %110 : vector<4x8x8xf32>
    %cst_39 = arith.constant dense<0xFF800000> : vector<4x8xf32>
    %149 = vector.multi_reduction <maximumf>, %148, %cst_39 [2] : vector<4x8x8xf32> to vector<4x8xf32>
    %150 = vector.shape_cast %149 : vector<4x8xf32> to vector<4x8x1xf32>
    %151 = vector.broadcast %150 : vector<4x8x1xf32> to vector<4x8x8xf32>
    %152 = arith.subf %148, %151 : vector<4x8x8xf32>
    %153 = math.exp %152 : vector<4x8x8xf32>
    %cst_40 = arith.constant dense<0.000000e+00> : vector<4x8xf32>
    %154 = vector.multi_reduction <add>, %153, %cst_40 [2] : vector<4x8x8xf32> to vector<4x8xf32>
    %155 = vector.shape_cast %154 : vector<4x8xf32> to vector<4x8x1xf32>
    %156 = tpu.reciprocal %155 {approx = true} : vector<4x8x1xf32> -> vector<4x8x1xf32>
    %157 = vector.broadcast %156 : vector<4x8x1xf32> to vector<4x8x8xf32>
    %158 = arith.mulf %153, %157 : vector<4x8x8xf32>
    %159 = arith.truncf %158 : vector<4x8x8xf32> to vector<4x8x8xbf16>
    "tpu.trace_start"() <{level = 10 : i32, message = "hqk,hkd->hqd"}> : () -> ()
    %cst_41 = arith.constant dense<0.000000e+00> : vector<4x8x8xf32>
    %160 = tpu.matmul %159, %146, %cst_41 {dimension_numbers = #tpu.dot_dimension_numbers<[2], [1], [1], [2], [0, 0, 0, 1, 1, 2], [0], [0]>} : vector<4x8x8xbf16>, vector<4x8x8xbf16>, vector<4x8x8xf32> -> vector<4x8x8xf32>
    "tpu.trace_stop"() : () -> ()
    %161 = arith.truncf %160 : vector<4x8x8xf32> to vector<4x8x8xbf16>
    %c0_42 = arith.constant 0 : index
    %c0_43 = arith.constant 0 : index
    %c0_44 = arith.constant 0 : index
    %c0_45 = arith.constant 0 : index
    %162 = vector.load %arg11[%c0_42, %c0_43, %c0_44, %c0_45] : memref<2x4x8x32xbf16, #tpu.memory_space<vmem>>, vector<1x4x8x32xbf16>
    %163 = vector.shape_cast %162 : vector<1x4x8x32xbf16> to vector<4x8x32xbf16>
    "tpu.trace_start"() <{level = 10 : i32, message = "hqd,hdo->hqo"}> : () -> ()
    %cst_46 = arith.constant dense<0.000000e+00> : vector<4x8x32xf32>
    %164 = tpu.matmul %161, %163, %cst_46 {dimension_numbers = #tpu.dot_dimension_numbers<[2], [1], [1], [2], [0, 0, 0, 1, 1, 2], [0], [0]>} : vector<4x8x8xbf16>, vector<4x8x32xbf16>, vector<4x8x32xf32> -> vector<4x8x32xf32>
    "tpu.trace_stop"() : () -> ()
    %cst_47 = arith.constant dense<0.000000e+00> : vector<8x32xf32>
    %165 = vector.multi_reduction <add>, %164, %cst_47 [0] : vector<4x8x32xf32> to vector<8x32xf32>
    %c0_48 = arith.constant 0 : index
    %c0_49 = arith.constant 0 : index
    %c0_50 = arith.constant 0 : index
    %166 = vector.load %arg12[%c0_48, %c0_49, %c0_50] : memref<2x1x32xf32, #tpu.memory_space<vmem>>, vector<1x1x32xf32>
    %167 = vector.shape_cast %166 : vector<1x1x32xf32> to vector<1x32xf32>
    %168 = vector.broadcast %167 : vector<1x32xf32> to vector<8x32xf32>
    %169 = arith.addf %165, %168 : vector<8x32xf32>
    %170 = arith.addf %169, %102 : vector<8x32xf32>
    %c0_51 = arith.constant 0 : index
    %c0_52 = arith.constant 0 : index
    %c0_53 = arith.constant 0 : index
    %171 = vector.load %arg13[%c0_51, %c0_52, %c0_53] : memref<2x1x32xf32, #tpu.memory_space<vmem>>, vector<1x1x32xf32>
    %172 = vector.shape_cast %171 : vector<1x1x32xf32> to vector<1x32xf32>
    %c0_54 = arith.constant 0 : index
    %c0_55 = arith.constant 0 : index
    %c0_56 = arith.constant 0 : index
    %173 = vector.load %arg14[%c0_54, %c0_55, %c0_56] : memref<2x1x32xf32, #tpu.memory_space<vmem>>, vector<1x1x32xf32>
    %174 = vector.shape_cast %173 : vector<1x1x32xf32> to vector<1x32xf32>
    %cst_57 = arith.constant dense<0.000000e+00> : vector<8xf32>
    %175 = vector.multi_reduction <add>, %170, %cst_57 [1] : vector<8x32xf32> to vector<8xf32>
    %176 = vector.shape_cast %175 : vector<8xf32> to vector<8x1xf32>
    %cst_58 = arith.constant 3.200000e+01 : f32
    %177 = vector.broadcast %cst_58 : f32 to vector<8x1xf32>
    %178 = arith.divf %176, %177 : vector<8x1xf32>
    %179 = vector.broadcast %178 : vector<8x1xf32> to vector<8x32xf32>
    %180 = arith.subf %170, %179 : vector<8x32xf32>
    %181 = arith.mulf %180, %180 : vector<8x32xf32>
    %cst_59 = arith.constant dense<0.000000e+00> : vector<8xf32>
    %182 = vector.multi_reduction <add>, %181, %cst_59 [1] : vector<8x32xf32> to vector<8xf32>
    %183 = vector.shape_cast %182 : vector<8xf32> to vector<8x1xf32>
    %cst_60 = arith.constant 3.200000e+01 : f32
    %184 = vector.broadcast %cst_60 : f32 to vector<8x1xf32>
    %185 = arith.divf %183, %184 : vector<8x1xf32>
    %186 = vector.broadcast %178 : vector<8x1xf32> to vector<8x32xf32>
    %187 = arith.subf %170, %186 : vector<8x32xf32>
    %cst_61 = arith.constant 9.99999996E-13 : f32
    %188 = vector.broadcast %cst_61 : f32 to vector<8x1xf32>
    %189 = arith.addf %185, %188 : vector<8x1xf32>
    %190 = math.rsqrt %189 : vector<8x1xf32>
    %191 = vector.broadcast %190 : vector<8x1xf32> to vector<8x32xf32>
    %192 = arith.mulf %187, %191 : vector<8x32xf32>
    %193 = vector.broadcast %172 : vector<1x32xf32> to vector<8x32xf32>
    %194 = arith.mulf %192, %193 : vector<8x32xf32>
    %195 = vector.broadcast %174 : vector<1x32xf32> to vector<8x32xf32>
    %196 = arith.addf %194, %195 : vector<8x32xf32>
    %197 = arith.truncf %196 : vector<8x32xf32> to vector<8x32xbf16>
    %c0_62 = arith.constant 0 : index
    %c0_63 = arith.constant 0 : index
    %c0_64 = arith.constant 0 : index
    %198 = vector.load %arg15[%c0_62, %c0_63, %c0_64] : memref<2x32x128xbf16, #tpu.memory_space<vmem>>, vector<1x32x128xbf16>
    %199 = vector.shape_cast %198 : vector<1x32x128xbf16> to vector<32x128xbf16>
    %cst_65 = arith.constant dense<0.000000e+00> : vector<8x128xf32>
    %200 = tpu.matmul %197, %199, %cst_65 {dimension_numbers = #tpu.dot_dimension_numbers<[1], [0], [0], [1], [0, 0, 1, 1], [], []>} : vector<8x32xbf16>, vector<32x128xbf16>, vector<8x128xf32> -> vector<8x128xf32>
    %c0_66 = arith.constant 0 : index
    %c0_67 = arith.constant 0 : index
    %c0_68 = arith.constant 0 : index
    %201 = vector.load %arg16[%c0_66, %c0_67, %c0_68] : memref<2x1x128xf32, #tpu.memory_space<vmem>>, vector<1x1x128xf32>
    %202 = vector.shape_cast %201 : vector<1x1x128xf32> to vector<1x128xf32>
    %203 = vector.broadcast %202 : vector<1x128xf32> to vector<8x128xf32>
    %204 = arith.addf %200, %203 : vector<8x128xf32>
    %cst_69 = arith.constant 5.000000e-01 : f32
    %205 = vector.broadcast %cst_69 : f32 to vector<8x128xf32>
    %206 = arith.mulf %205, %204 : vector<8x128xf32>
    %cst_70 = arith.constant 4.471500e-02 : f32
    %207 = vector.broadcast %cst_70 : f32 to vector<8x128xf32>
    %208 = arith.mulf %207, %204 : vector<8x128xf32>
    %209 = arith.mulf %208, %204 : vector<8x128xf32>
    %210 = arith.mulf %209, %204 : vector<8x128xf32>
    %211 = arith.addf %204, %210 : vector<8x128xf32>
    %cst_71 = arith.constant 0.797884583 : f32
    %212 = vector.broadcast %cst_71 : f32 to vector<8x128xf32>
    %213 = arith.mulf %212, %211 : vector<8x128xf32>
    %214 = math.tanh %213 : vector<8x128xf32>
    %cst_72 = arith.constant 1.000000e+00 : f32
    %215 = vector.broadcast %cst_72 : f32 to vector<8x128xf32>
    %216 = arith.addf %215, %214 : vector<8x128xf32>
    %217 = arith.mulf %206, %216 : vector<8x128xf32>
    %218 = arith.truncf %217 : vector<8x128xf32> to vector<8x128xbf16>
    %c0_73 = arith.constant 0 : index
    %c0_74 = arith.constant 0 : index
    %c0_75 = arith.constant 0 : index
    %219 = vector.load %arg17[%c0_73, %c0_74, %c0_75] : memref<2x128x32xbf16, #tpu.memory_space<vmem>>, vector<1x128x32xbf16>
    %220 = vector.shape_cast %219 : vector<1x128x32xbf16> to vector<128x32xbf16>
    %cst_76 = arith.constant dense<0.000000e+00> : vector<8x32xf32>
    %221 = tpu.matmul %218, %220, %cst_76 {dimension_numbers = #tpu.dot_dimension_numbers<[1], [0], [0], [1], [0, 0, 1, 1], [], []>} : vector<8x128xbf16>, vector<128x32xbf16>, vector<8x32xf32> -> vector<8x32xf32>
    %c0_77 = arith.constant 0 : index
    %c0_78 = arith.constant 0 : index
    %c0_79 = arith.constant 0 : index
    %222 = vector.load %arg18[%c0_77, %c0_78, %c0_79] : memref<2x1x32xf32, #tpu.memory_space<vmem>>, vector<1x1x32xf32>
    %223 = vector.shape_cast %222 : vector<1x1x32xf32> to vector<1x32xf32>
    %224 = vector.broadcast %223 : vector<1x32xf32> to vector<8x32xf32>
    %225 = arith.addf %221, %224 : vector<8x32xf32>
    %226 = arith.addf %225, %196 : vector<8x32xf32>
    %c0_80 = arith.constant 0 : index
    %c0_81 = arith.constant 0 : index
    %c0_82 = arith.constant 0 : index
    %227 = vector.load %arg19[%c0_80, %c0_81, %c0_82] : memref<2x1x32xf32, #tpu.memory_space<vmem>>, vector<1x1x32xf32>
    %228 = vector.shape_cast %227 : vector<1x1x32xf32> to vector<1x32xf32>
    %c0_83 = arith.constant 0 : index
    %c0_84 = arith.constant 0 : index
    %c0_85 = arith.constant 0 : index
    %229 = vector.load %arg20[%c0_83, %c0_84, %c0_85] : memref<2x1x32xf32, #tpu.memory_space<vmem>>, vector<1x1x32xf32>
    %230 = vector.shape_cast %229 : vector<1x1x32xf32> to vector<1x32xf32>
    %cst_86 = arith.constant dense<0.000000e+00> : vector<8xf32>
    %231 = vector.multi_reduction <add>, %226, %cst_86 [1] : vector<8x32xf32> to vector<8xf32>
    %232 = vector.shape_cast %231 : vector<8xf32> to vector<8x1xf32>
    %cst_87 = arith.constant 3.200000e+01 : f32
    %233 = vector.broadcast %cst_87 : f32 to vector<8x1xf32>
    %234 = arith.divf %232, %233 : vector<8x1xf32>
    %235 = vector.broadcast %234 : vector<8x1xf32> to vector<8x32xf32>
    %236 = arith.subf %226, %235 : vector<8x32xf32>
    %237 = arith.mulf %236, %236 : vector<8x32xf32>
    %cst_88 = arith.constant dense<0.000000e+00> : vector<8xf32>
    %238 = vector.multi_reduction <add>, %237, %cst_88 [1] : vector<8x32xf32> to vector<8xf32>
    %239 = vector.shape_cast %238 : vector<8xf32> to vector<8x1xf32>
    %cst_89 = arith.constant 3.200000e+01 : f32
    %240 = vector.broadcast %cst_89 : f32 to vector<8x1xf32>
    %241 = arith.divf %239, %240 : vector<8x1xf32>
    %242 = vector.broadcast %234 : vector<8x1xf32> to vector<8x32xf32>
    %243 = arith.subf %226, %242 : vector<8x32xf32>
    %cst_90 = arith.constant 9.99999996E-13 : f32
    %244 = vector.broadcast %cst_90 : f32 to vector<8x1xf32>
    %245 = arith.addf %241, %244 : vector<8x1xf32>
    %246 = math.rsqrt %245 : vector<8x1xf32>
    %247 = vector.broadcast %246 : vector<8x1xf32> to vector<8x32xf32>
    %248 = arith.mulf %243, %247 : vector<8x32xf32>
    %249 = vector.broadcast %228 : vector<1x32xf32> to vector<8x32xf32>
    %250 = arith.mulf %248, %249 : vector<8x32xf32>
    %251 = vector.broadcast %230 : vector<1x32xf32> to vector<8x32xf32>
    %252 = arith.addf %250, %251 : vector<8x32xf32>
    %253 = arith.truncf %252 : vector<8x32xf32> to vector<8x32xbf16>
    %c1_91 = arith.constant 1 : index
    %c0_92 = arith.constant 0 : index
    %c0_93 = arith.constant 0 : index
    %254 = vector.load %arg9[%c1_91, %c0_92, %c0_93] : memref<2x32x96xbf16, #tpu.memory_space<vmem>>, vector<1x32x96xbf16>
    %255 = vector.shape_cast %254 : vector<1x32x96xbf16> to vector<32x96xbf16>
    %cst_94 = arith.constant dense<0.000000e+00> : vector<8x96xf32>
    %256 = tpu.matmul %253, %255, %cst_94 {dimension_numbers = #tpu.dot_dimension_numbers<[1], [0], [0], [1], [0, 0, 1, 1], [], []>} : vector<8x32xbf16>, vector<32x96xbf16>, vector<8x96xf32> -> vector<8x96xf32>
    %c1_95 = arith.constant 1 : index
    %c0_96 = arith.constant 0 : index
    %c0_97 = arith.constant 0 : index
    %257 = vector.load %arg10[%c1_95, %c0_96, %c0_97] : memref<2x1x96xf32, #tpu.memory_space<vmem>>, vector<1x1x96xf32>
    %258 = vector.shape_cast %257 : vector<1x1x96xf32> to vector<1x96xf32>
    %259 = vector.broadcast %258 : vector<1x96xf32> to vector<8x96xf32>
    %260 = arith.addf %256, %259 : vector<8x96xf32>
    %261 = arith.truncf %260 : vector<8x96xf32> to vector<8x96xbf16>
    %262 = vector.extract_strided_slice %261 {offsets = [0, 0], sizes = [8, 8], strides = [1, 1]} : vector<8x96xbf16> to vector<8x8xbf16>
    %263 = vector.extract_strided_slice %261 {offsets = [0, 8], sizes = [8, 8], strides = [1, 1]} : vector<8x96xbf16> to vector<8x8xbf16>
    %264 = vector.extract_strided_slice %261 {offsets = [0, 16], sizes = [8, 8], strides = [1, 1]} : vector<8x96xbf16> to vector<8x8xbf16>
    %265 = vector.extract_strided_slice %261 {offsets = [0, 24], sizes = [8, 8], strides = [1, 1]} : vector<8x96xbf16> to vector<8x8xbf16>
    %266 = vector.shape_cast %262 : vector<8x8xbf16> to vector<1x8x8xbf16>
    %267 = vector.shape_cast %263 : vector<8x8xbf16> to vector<1x8x8xbf16>
    %268 = vector.shape_cast %264 : vector<8x8xbf16> to vector<1x8x8xbf16>
    %269 = vector.shape_cast %265 : vector<8x8xbf16> to vector<1x8x8xbf16>
    %270 = tpu.concatenate %266, %267, %268, %269 in 0 : vector<1x8x8xbf16>, vector<1x8x8xbf16>, vector<1x8x8xbf16>, vector<1x8x8xbf16> -> vector<4x8x8xbf16>
    %271 = vector.extract_strided_slice %261 {offsets = [0, 32], sizes = [8, 8], strides = [1, 1]} : vector<8x96xbf16> to vector<8x8xbf16>
    %272 = vector.extract_strided_slice %261 {offsets = [0, 40], sizes = [8, 8], strides = [1, 1]} : vector<8x96xbf16> to vector<8x8xbf16>
    %273 = vector.extract_strided_slice %261 {offsets = [0, 48], sizes = [8, 8], strides = [1, 1]} : vector<8x96xbf16> to vector<8x8xbf16>
    %274 = vector.extract_strided_slice %261 {offsets = [0, 56], sizes = [8, 8], strides = [1, 1]} : vector<8x96xbf16> to vector<8x8xbf16>
    %275 = vector.shape_cast %271 : vector<8x8xbf16> to vector<1x8x8xbf16>
    %276 = vector.shape_cast %272 : vector<8x8xbf16> to vector<1x8x8xbf16>
    %277 = vector.shape_cast %273 : vector<8x8xbf16> to vector<1x8x8xbf16>
    %278 = vector.shape_cast %274 : vector<8x8xbf16> to vector<1x8x8xbf16>
    %279 = tpu.concatenate %275, %276, %277, %278 in 0 : vector<1x8x8xbf16>, vector<1x8x8xbf16>, vector<1x8x8xbf16>, vector<1x8x8xbf16> -> vector<4x8x8xbf16>
    %280 = vector.extract_strided_slice %261 {offsets = [0, 64], sizes = [8, 8], strides = [1, 1]} : vector<8x96xbf16> to vector<8x8xbf16>
    %281 = vector.extract_strided_slice %261 {offsets = [0, 72], sizes = [8, 8], strides = [1, 1]} : vector<8x96xbf16> to vector<8x8xbf16>
    %282 = vector.extract_strided_slice %261 {offsets = [0, 80], sizes = [8, 8], strides = [1, 1]} : vector<8x96xbf16> to vector<8x8xbf16>
    %283 = vector.extract_strided_slice %261 {offsets = [0, 88], sizes = [8, 8], strides = [1, 1]} : vector<8x96xbf16> to vector<8x8xbf16>
    %284 = vector.shape_cast %280 : vector<8x8xbf16> to vector<1x8x8xbf16>
    %285 = vector.shape_cast %281 : vector<8x8xbf16> to vector<1x8x8xbf16>
    %286 = vector.shape_cast %282 : vector<8x8xbf16> to vector<1x8x8xbf16>
    %287 = vector.shape_cast %283 : vector<8x8xbf16> to vector<1x8x8xbf16>
    %288 = tpu.concatenate %284, %285, %286, %287 in 0 : vector<1x8x8xbf16>, vector<1x8x8xbf16>, vector<1x8x8xbf16>, vector<1x8x8xbf16> -> vector<4x8x8xbf16>
    "tpu.trace_start"() <{level = 10 : i32, message = "hqd,hkd->hqk"}> : () -> ()
    %cst_98 = arith.constant dense<0.000000e+00> : vector<4x8x8xf32>
    %289 = tpu.matmul %270, %279, %cst_98 {dimension_numbers = #tpu.dot_dimension_numbers<[2], [2], [1], [1], [0, 0, 0, 1, 1, 1], [0], [0]>} : vector<4x8x8xbf16>, vector<4x8x8xbf16>, vector<4x8x8xf32> -> vector<4x8x8xf32>
    "tpu.trace_stop"() : () -> ()
    %290 = arith.addf %289, %110 : vector<4x8x8xf32>
    %cst_99 = arith.constant dense<0xFF800000> : vector<4x8xf32>
    %291 = vector.multi_reduction <maximumf>, %290, %cst_99 [2] : vector<4x8x8xf32> to vector<4x8xf32>
    %292 = vector.shape_cast %291 : vector<4x8xf32> to vector<4x8x1xf32>
    %293 = vector.broadcast %292 : vector<4x8x1xf32> to vector<4x8x8xf32>
    %294 = arith.subf %290, %293 : vector<4x8x8xf32>
    %295 = math.exp %294 : vector<4x8x8xf32>
    %cst_100 = arith.constant dense<0.000000e+00> : vector<4x8xf32>
    %296 = vector.multi_reduction <add>, %295, %cst_100 [2] : vector<4x8x8xf32> to vector<4x8xf32>
    %297 = vector.shape_cast %296 : vector<4x8xf32> to vector<4x8x1xf32>
    %298 = tpu.reciprocal %297 {approx = true} : vector<4x8x1xf32> -> vector<4x8x1xf32>
    %299 = vector.broadcast %298 : vector<4x8x1xf32> to vector<4x8x8xf32>
    %300 = arith.mulf %295, %299 : vector<4x8x8xf32>
    %301 = arith.truncf %300 : vector<4x8x8xf32> to vector<4x8x8xbf16>
    "tpu.trace_start"() <{level = 10 : i32, message = "hqk,hkd->hqd"}> : () -> ()
    %cst_101 = arith.constant dense<0.000000e+00> : vector<4x8x8xf32>
    %302 = tpu.matmul %301, %288, %cst_101 {dimension_numbers = #tpu.dot_dimension_numbers<[2], [1], [1], [2], [0, 0, 0, 1, 1, 2], [0], [0]>} : vector<4x8x8xbf16>, vector<4x8x8xbf16>, vector<4x8x8xf32> -> vector<4x8x8xf32>
    "tpu.trace_stop"() : () -> ()
    %303 = arith.truncf %302 : vector<4x8x8xf32> to vector<4x8x8xbf16>
    %c1_102 = arith.constant 1 : index
    %c0_103 = arith.constant 0 : index
    %c0_104 = arith.constant 0 : index
    %c0_105 = arith.constant 0 : index
    %304 = vector.load %arg11[%c1_102, %c0_103, %c0_104, %c0_105] : memref<2x4x8x32xbf16, #tpu.memory_space<vmem>>, vector<1x4x8x32xbf16>
    %305 = vector.shape_cast %304 : vector<1x4x8x32xbf16> to vector<4x8x32xbf16>
    "tpu.trace_start"() <{level = 10 : i32, message = "hqd,hdo->hqo"}> : () -> ()
    %cst_106 = arith.constant dense<0.000000e+00> : vector<4x8x32xf32>
    %306 = tpu.matmul %303, %305, %cst_106 {dimension_numbers = #tpu.dot_dimension_numbers<[2], [1], [1], [2], [0, 0, 0, 1, 1, 2], [0], [0]>} : vector<4x8x8xbf16>, vector<4x8x32xbf16>, vector<4x8x32xf32> -> vector<4x8x32xf32>
    "tpu.trace_stop"() : () -> ()
    %cst_107 = arith.constant dense<0.000000e+00> : vector<8x32xf32>
    %307 = vector.multi_reduction <add>, %306, %cst_107 [0] : vector<4x8x32xf32> to vector<8x32xf32>
    %c1_108 = arith.constant 1 : index
    %c0_109 = arith.constant 0 : index
    %c0_110 = arith.constant 0 : index
    %308 = vector.load %arg12[%c1_108, %c0_109, %c0_110] : memref<2x1x32xf32, #tpu.memory_space<vmem>>, vector<1x1x32xf32>
    %309 = vector.shape_cast %308 : vector<1x1x32xf32> to vector<1x32xf32>
    %310 = vector.broadcast %309 : vector<1x32xf32> to vector<8x32xf32>
    %311 = arith.addf %307, %310 : vector<8x32xf32>
    %312 = arith.addf %311, %252 : vector<8x32xf32>
    %c1_111 = arith.constant 1 : index
    %c0_112 = arith.constant 0 : index
    %c0_113 = arith.constant 0 : index
    %313 = vector.load %arg13[%c1_111, %c0_112, %c0_113] : memref<2x1x32xf32, #tpu.memory_space<vmem>>, vector<1x1x32xf32>
    %314 = vector.shape_cast %313 : vector<1x1x32xf32> to vector<1x32xf32>
    %c1_114 = arith.constant 1 : index
    %c0_115 = arith.constant 0 : index
    %c0_116 = arith.constant 0 : index
    %315 = vector.load %arg14[%c1_114, %c0_115, %c0_116] : memref<2x1x32xf32, #tpu.memory_space<vmem>>, vector<1x1x32xf32>
    %316 = vector.shape_cast %315 : vector<1x1x32xf32> to vector<1x32xf32>
    %cst_117 = arith.constant dense<0.000000e+00> : vector<8xf32>
    %317 = vector.multi_reduction <add>, %312, %cst_117 [1] : vector<8x32xf32> to vector<8xf32>
    %318 = vector.shape_cast %317 : vector<8xf32> to vector<8x1xf32>
    %cst_118 = arith.constant 3.200000e+01 : f32
    %319 = vector.broadcast %cst_118 : f32 to vector<8x1xf32>
    %320 = arith.divf %318, %319 : vector<8x1xf32>
    %321 = vector.broadcast %320 : vector<8x1xf32> to vector<8x32xf32>
    %322 = arith.subf %312, %321 : vector<8x32xf32>
    %323 = arith.mulf %322, %322 : vector<8x32xf32>
    %cst_119 = arith.constant dense<0.000000e+00> : vector<8xf32>
    %324 = vector.multi_reduction <add>, %323, %cst_119 [1] : vector<8x32xf32> to vector<8xf32>
    %325 = vector.shape_cast %324 : vector<8xf32> to vector<8x1xf32>
    %cst_120 = arith.constant 3.200000e+01 : f32
    %326 = vector.broadcast %cst_120 : f32 to vector<8x1xf32>
    %327 = arith.divf %325, %326 : vector<8x1xf32>
    %328 = vector.broadcast %320 : vector<8x1xf32> to vector<8x32xf32>
    %329 = arith.subf %312, %328 : vector<8x32xf32>
    %cst_121 = arith.constant 9.99999996E-13 : f32
    %330 = vector.broadcast %cst_121 : f32 to vector<8x1xf32>
    %331 = arith.addf %327, %330 : vector<8x1xf32>
    %332 = math.rsqrt %331 : vector<8x1xf32>
    %333 = vector.broadcast %332 : vector<8x1xf32> to vector<8x32xf32>
    %334 = arith.mulf %329, %333 : vector<8x32xf32>
    %335 = vector.broadcast %314 : vector<1x32xf32> to vector<8x32xf32>
    %336 = arith.mulf %334, %335 : vector<8x32xf32>
    %337 = vector.broadcast %316 : vector<1x32xf32> to vector<8x32xf32>
    %338 = arith.addf %336, %337 : vector<8x32xf32>
    %339 = arith.truncf %338 : vector<8x32xf32> to vector<8x32xbf16>
    %c1_122 = arith.constant 1 : index
    %c0_123 = arith.constant 0 : index
    %c0_124 = arith.constant 0 : index
    %340 = vector.load %arg15[%c1_122, %c0_123, %c0_124] : memref<2x32x128xbf16, #tpu.memory_space<vmem>>, vector<1x32x128xbf16>
    %341 = vector.shape_cast %340 : vector<1x32x128xbf16> to vector<32x128xbf16>
    %cst_125 = arith.constant dense<0.000000e+00> : vector<8x128xf32>
    %342 = tpu.matmul %339, %341, %cst_125 {dimension_numbers = #tpu.dot_dimension_numbers<[1], [0], [0], [1], [0, 0, 1, 1], [], []>} : vector<8x32xbf16>, vector<32x128xbf16>, vector<8x128xf32> -> vector<8x128xf32>
    %c1_126 = arith.constant 1 : index
    %c0_127 = arith.constant 0 : index
    %c0_128 = arith.constant 0 : index
    %343 = vector.load %arg16[%c1_126, %c0_127, %c0_128] : memref<2x1x128xf32, #tpu.memory_space<vmem>>, vector<1x1x128xf32>
    %344 = vector.shape_cast %343 : vector<1x1x128xf32> to vector<1x128xf32>
    %345 = vector.broadcast %344 : vector<1x128xf32> to vector<8x128xf32>
    %346 = arith.addf %342, %345 : vector<8x128xf32>
    %cst_129 = arith.constant 5.000000e-01 : f32
    %347 = vector.broadcast %cst_129 : f32 to vector<8x128xf32>
    %348 = arith.mulf %347, %346 : vector<8x128xf32>
    %cst_130 = arith.constant 4.471500e-02 : f32
    %349 = vector.broadcast %cst_130 : f32 to vector<8x128xf32>
    %350 = arith.mulf %349, %346 : vector<8x128xf32>
    %351 = arith.mulf %350, %346 : vector<8x128xf32>
    %352 = arith.mulf %351, %346 : vector<8x128xf32>
    %353 = arith.addf %346, %352 : vector<8x128xf32>
    %cst_131 = arith.constant 0.797884583 : f32
    %354 = vector.broadcast %cst_131 : f32 to vector<8x128xf32>
    %355 = arith.mulf %354, %353 : vector<8x128xf32>
    %356 = math.tanh %355 : vector<8x128xf32>
    %cst_132 = arith.constant 1.000000e+00 : f32
    %357 = vector.broadcast %cst_132 : f32 to vector<8x128xf32>
    %358 = arith.addf %357, %356 : vector<8x128xf32>
    %359 = arith.mulf %348, %358 : vector<8x128xf32>
    %360 = arith.truncf %359 : vector<8x128xf32> to vector<8x128xbf16>
    %c1_133 = arith.constant 1 : index
    %c0_134 = arith.constant 0 : index
    %c0_135 = arith.constant 0 : index
    %361 = vector.load %arg17[%c1_133, %c0_134, %c0_135] : memref<2x128x32xbf16, #tpu.memory_space<vmem>>, vector<1x128x32xbf16>
    %362 = vector.shape_cast %361 : vector<1x128x32xbf16> to vector<128x32xbf16>
    %cst_136 = arith.constant dense<0.000000e+00> : vector<8x32xf32>
    %363 = tpu.matmul %360, %362, %cst_136 {dimension_numbers = #tpu.dot_dimension_numbers<[1], [0], [0], [1], [0, 0, 1, 1], [], []>} : vector<8x128xbf16>, vector<128x32xbf16>, vector<8x32xf32> -> vector<8x32xf32>
    %c1_137 = arith.constant 1 : index
    %c0_138 = arith.constant 0 : index
    %c0_139 = arith.constant 0 : index
    %364 = vector.load %arg18[%c1_137, %c0_138, %c0_139] : memref<2x1x32xf32, #tpu.memory_space<vmem>>, vector<1x1x32xf32>
    %365 = vector.shape_cast %364 : vector<1x1x32xf32> to vector<1x32xf32>
    %366 = vector.broadcast %365 : vector<1x32xf32> to vector<8x32xf32>
    %367 = arith.addf %363, %366 : vector<8x32xf32>
    %368 = arith.addf %367, %338 : vector<8x32xf32>
    %c1_140 = arith.constant 1 : index
    %c0_141 = arith.constant 0 : index
    %c0_142 = arith.constant 0 : index
    %369 = vector.load %arg19[%c1_140, %c0_141, %c0_142] : memref<2x1x32xf32, #tpu.memory_space<vmem>>, vector<1x1x32xf32>
    %370 = vector.shape_cast %369 : vector<1x1x32xf32> to vector<1x32xf32>
    %c1_143 = arith.constant 1 : index
    %c0_144 = arith.constant 0 : index
    %c0_145 = arith.constant 0 : index
    %371 = vector.load %arg20[%c1_143, %c0_144, %c0_145] : memref<2x1x32xf32, #tpu.memory_space<vmem>>, vector<1x1x32xf32>
    %372 = vector.shape_cast %371 : vector<1x1x32xf32> to vector<1x32xf32>
    %cst_146 = arith.constant dense<0.000000e+00> : vector<8xf32>
    %373 = vector.multi_reduction <add>, %368, %cst_146 [1] : vector<8x32xf32> to vector<8xf32>
    %374 = vector.shape_cast %373 : vector<8xf32> to vector<8x1xf32>
    %cst_147 = arith.constant 3.200000e+01 : f32
    %375 = vector.broadcast %cst_147 : f32 to vector<8x1xf32>
    %376 = arith.divf %374, %375 : vector<8x1xf32>
    %377 = vector.broadcast %376 : vector<8x1xf32> to vector<8x32xf32>
    %378 = arith.subf %368, %377 : vector<8x32xf32>
    %379 = arith.mulf %378, %378 : vector<8x32xf32>
    %cst_148 = arith.constant dense<0.000000e+00> : vector<8xf32>
    %380 = vector.multi_reduction <add>, %379, %cst_148 [1] : vector<8x32xf32> to vector<8xf32>
    %381 = vector.shape_cast %380 : vector<8xf32> to vector<8x1xf32>
    %cst_149 = arith.constant 3.200000e+01 : f32
    %382 = vector.broadcast %cst_149 : f32 to vector<8x1xf32>
    %383 = arith.divf %381, %382 : vector<8x1xf32>
    %384 = vector.broadcast %376 : vector<8x1xf32> to vector<8x32xf32>
    %385 = arith.subf %368, %384 : vector<8x32xf32>
    %cst_150 = arith.constant 9.99999996E-13 : f32
    %386 = vector.broadcast %cst_150 : f32 to vector<8x1xf32>
    %387 = arith.addf %383, %386 : vector<8x1xf32>
    %388 = math.rsqrt %387 : vector<8x1xf32>
    %389 = vector.broadcast %388 : vector<8x1xf32> to vector<8x32xf32>
    %390 = arith.mulf %385, %389 : vector<8x32xf32>
    %391 = vector.broadcast %370 : vector<1x32xf32> to vector<8x32xf32>
    %392 = arith.mulf %390, %391 : vector<8x32xf32>
    %393 = vector.broadcast %372 : vector<1x32xf32> to vector<8x32xf32>
    %394 = arith.addf %392, %393 : vector<8x32xf32>
    %395 = vector.extract_strided_slice %394 {offsets = [0, 0], sizes = [1, 32], strides = [1, 1]} : vector<8x32xf32> to vector<1x32xf32>
    %396 = arith.truncf %395 : vector<1x32xf32> to vector<1x32xbf16>
    %c0_151 = arith.constant 0 : index
    %c0_152 = arith.constant 0 : index
    %397 = vector.load %arg21[%c0_151, %c0_152] : memref<32x3xbf16, #tpu.memory_space<vmem>>, vector<32x3xbf16>
    %cst_153 = arith.constant dense<0.000000e+00> : vector<1x3xf32>
    %398 = tpu.matmul %396, %397, %cst_153 {dimension_numbers = #tpu.dot_dimension_numbers<[1], [0], [0], [1], [0, 0, 1, 1], [], []>} : vector<1x32xbf16>, vector<32x3xbf16>, vector<1x3xf32> -> vector<1x3xf32>
    %c0_154 = arith.constant 0 : index
    %c0_155 = arith.constant 0 : index
    %399 = vector.load %arg22[%c0_154, %c0_155] : memref<1x3xf32, #tpu.memory_space<vmem>>, vector<1x3xf32>
    %400 = arith.addf %398, %399 : vector<1x3xf32>
    %401 = vector.shape_cast %400 : vector<1x3xf32> to vector<1x1x3xf32>
    %c0_156 = arith.constant 0 : index
    %c0_157 = arith.constant 0 : index
    %c0_158 = arith.constant 0 : index
    %402 = vector.load %arg23[%c0_156, %c0_157, %c0_158] : memref<1x1x3xf32, #tpu.memory_space<vmem>>, vector<1x1x3xf32>
    tpu.vector_store %arg23[%c0_156, %c0_157, %c0_158], %401 {strides = array<i32>} : memref<1x1x3xf32, #tpu.memory_space<vmem>>, vector<1x1x3xf32>,
    return
  }
  func.func @transform_0(%arg0: i32, %arg1: memref<2x8xi32, #tpu.memory_space<smem>>, %arg2: memref<2x8xi32, #tpu.memory_space<smem>>) -> (i32, i32, i32) {
    %c0_i32 = arith.constant 0 : i32
    %c0_i32_0 = arith.constant 0 : i32
    %c0_i32_1 = arith.constant 0 : i32
    return %arg0, %c0_i32, %c0_i32_0 : i32, i32, i32
  }
  func.func @transform_1(%arg0: i32, %arg1: memref<2x8xi32, #tpu.memory_space<smem>>, %arg2: memref<2x8xi32, #tpu.memory_space<smem>>) -> (i32, i32) {
    %c0_i32 = arith.constant 0 : i32
    %c0_i32_0 = arith.constant 0 : i32
    %c0_i32_1 = arith.constant 0 : i32
    return %c0_i32, %c0_i32_0 : i32, i32
  }
  func.func @transform_2(%arg0: i32, %arg1: memref<2x8xi32, #tpu.memory_space<smem>>, %arg2: memref<2x8xi32, #tpu.memory_space<smem>>) -> (i32, i32) {
    %c0_i32 = arith.constant 0 : i32
    %c0_i32_0 = arith.constant 0 : i32
    %c0_i32_1 = arith.constant 0 : i32
    return %c0_i32, %c0_i32_0 : i32, i32
  }
  func.func @transform_3(%arg0: i32, %arg1: memref<2x8xi32, #tpu.memory_space<smem>>, %arg2: memref<2x8xi32, #tpu.memory_space<smem>>) -> (i32, i32) {
    %c0_i32 = arith.constant 0 : i32
    %c0_i32_0 = arith.constant 0 : i32
    %c0_i32_1 = arith.constant 0 : i32
    return %c0_i32, %c0_i32_0 : i32, i32
  }
  func.func @transform_4(%arg0: i32, %arg1: memref<2x8xi32, #tpu.memory_space<smem>>, %arg2: memref<2x8xi32, #tpu.memory_space<smem>>) -> (i32, i32) {
    %c0_i32 = arith.constant 0 : i32
    %c0_i32_0 = arith.constant 0 : i32
    %c0_i32_1 = arith.constant 0 : i32
    return %c0_i32, %c0_i32_0 : i32, i32
  }
  func.func @transform_5(%arg0: i32, %arg1: memref<2x8xi32, #tpu.memory_space<smem>>, %arg2: memref<2x8xi32, #tpu.memory_space<smem>>) -> (i32, i32) {
    %c0_i32 = arith.constant 0 : i32
    %c0_i32_0 = arith.constant 0 : i32
    %c0_i32_1 = arith.constant 0 : i32
    return %c0_i32, %c0_i32_0 : i32, i32
  }
  func.func @transform_6(%arg0: i32, %arg1: memref<2x8xi32, #tpu.memory_space<smem>>, %arg2: memref<2x8xi32, #tpu.memory_space<smem>>) -> (i32, i32, i32) {
    %c0_i32 = arith.constant 0 : i32
    %c0_i32_0 = arith.constant 0 : i32
    %c0_i32_1 = arith.constant 0 : i32
    %c0_i32_2 = arith.constant 0 : i32
    return %c0_i32, %c0_i32_0, %c0_i32_1 : i32, i32, i32
  }
  func.func @transform_7(%arg0: i32, %arg1: memref<2x8xi32, #tpu.memory_space<smem>>, %arg2: memref<2x8xi32, #tpu.memory_space<smem>>) -> (i32, i32, i32) {
    %c0_i32 = arith.constant 0 : i32
    %c0_i32_0 = arith.constant 0 : i32
    %c0_i32_1 = arith.constant 0 : i32
    %c0_i32_2 = arith.constant 0 : i32
    return %c0_i32, %c0_i32_0, %c0_i32_1 : i32, i32, i32
  }
  func.func @transform_8(%arg0: i32, %arg1: memref<2x8xi32, #tpu.memory_space<smem>>, %arg2: memref<2x8xi32, #tpu.memory_space<smem>>) -> (i32, i32, i32, i32) {
    %c0_i32 = arith.constant 0 : i32
    %c0_i32_0 = arith.constant 0 : i32
    %c0_i32_1 = arith.constant 0 : i32
    %c0_i32_2 = arith.constant 0 : i32
    %c0_i32_3 = arith.constant 0 : i32
    return %c0_i32, %c0_i32_0, %c0_i32_1, %c0_i32_2 : i32, i32, i32, i32
  }
  func.func @transform_9(%arg0: i32, %arg1: memref<2x8xi32, #tpu.memory_space<smem>>, %arg2: memref<2x8xi32, #tpu.memory_space<smem>>) -> (i32, i32, i32) {
    %c0_i32 = arith.constant 0 : i32
    %c0_i32_0 = arith.constant 0 : i32
    %c0_i32_1 = arith.constant 0 : i32
    %c0_i32_2 = arith.constant 0 : i32
    return %c0_i32, %c0_i32_0, %c0_i32_1 : i32, i32, i32
  }
  func.func @transform_10(%arg0: i32, %arg1: memref<2x8xi32, #tpu.memory_space<smem>>, %arg2: memref<2x8xi32, #tpu.memory_space<smem>>) -> (i32, i32, i32) {
    %c0_i32 = arith.constant 0 : i32
    %c0_i32_0 = arith.constant 0 : i32
    %c0_i32_1 = arith.constant 0 : i32
    %c0_i32_2 = arith.constant 0 : i32
    return %c0_i32, %c0_i32_0, %c0_i32_1 : i32, i32, i32
  }
  func.func @transform_11(%arg0: i32, %arg1: memref<2x8xi32, #tpu.memory_space<smem>>, %arg2: memref<2x8xi32, #tpu.memory_space<smem>>) -> (i32, i32, i32) {
    %c0_i32 = arith.constant 0 : i32
    %c0_i32_0 = arith.constant 0 : i32
    %c0_i32_1 = arith.constant 0 : i32
    %c0_i32_2 = arith.constant 0 : i32
    return %c0_i32, %c0_i32_0, %c0_i32_1 : i32, i32, i32
  }
  func.func @transform_12(%arg0: i32, %arg1: memref<2x8xi32, #tpu.memory_space<smem>>, %arg2: memref<2x8xi32, #tpu.memory_space<smem>>) -> (i32, i32, i32) {
    %c0_i32 = arith.constant 0 : i32
    %c0_i32_0 = arith.constant 0 : i32
    %c0_i32_1 = arith.constant 0 : i32
    %c0_i32_2 = arith.constant 0 : i32
    return %c0_i32, %c0_i32_0, %c0_i32_1 : i32, i32, i32
  }
  func.func @transform_13(%arg0: i32, %arg1: memref<2x8xi32, #tpu.memory_space<smem>>, %arg2: memref<2x8xi32, #tpu.memory_space<smem>>) -> (i32, i32, i32) {
    %c0_i32 = arith.constant 0 : i32
    %c0_i32_0 = arith.constant 0 : i32
    %c0_i32_1 = arith.constant 0 : i32
    %c0_i32_2 = arith.constant 0 : i32
    return %c0_i32, %c0_i32_0, %c0_i32_1 : i32, i32, i32
  }
  func.func @transform_14(%arg0: i32, %arg1: memref<2x8xi32, #tpu.memory_space<smem>>, %arg2: memref<2x8xi32, #tpu.memory_space<smem>>) -> (i32, i32, i32) {
    %c0_i32 = arith.constant 0 : i32
    %c0_i32_0 = arith.constant 0 : i32
    %c0_i32_1 = arith.constant 0 : i32
    %c0_i32_2 = arith.constant 0 : i32
    return %c0_i32, %c0_i32_0, %c0_i32_1 : i32, i32, i32
  }
  func.func @transform_15(%arg0: i32, %arg1: memref<2x8xi32, #tpu.memory_space<smem>>, %arg2: memref<2x8xi32, #tpu.memory_space<smem>>) -> (i32, i32, i32) {
    %c0_i32 = arith.constant 0 : i32
    %c0_i32_0 = arith.constant 0 : i32
    %c0_i32_1 = arith.constant 0 : i32
    %c0_i32_2 = arith.constant 0 : i32
    return %c0_i32, %c0_i32_0, %c0_i32_1 : i32, i32, i32
  }
  func.func @transform_16(%arg0: i32, %arg1: memref<2x8xi32, #tpu.memory_space<smem>>, %arg2: memref<2x8xi32, #tpu.memory_space<smem>>) -> (i32, i32, i32) {
    %c0_i32 = arith.constant 0 : i32
    %c0_i32_0 = arith.constant 0 : i32
    %c0_i32_1 = arith.constant 0 : i32
    %c0_i32_2 = arith.constant 0 : i32
    return %c0_i32, %c0_i32_0, %c0_i32_1 : i32, i32, i32
  }
  func.func @transform_17(%arg0: i32, %arg1: memref<2x8xi32, #tpu.memory_space<smem>>, %arg2: memref<2x8xi32, #tpu.memory_space<smem>>) -> (i32, i32, i32) {
    %c0_i32 = arith.constant 0 : i32
    %c0_i32_0 = arith.constant 0 : i32
    %c0_i32_1 = arith.constant 0 : i32
    %c0_i32_2 = arith.constant 0 : i32
    return %c0_i32, %c0_i32_0, %c0_i32_1 : i32, i32, i32
  }
  func.func @transform_18(%arg0: i32, %arg1: memref<2x8xi32, #tpu.memory_space<smem>>, %arg2: memref<2x8xi32, #tpu.memory_space<smem>>) -> (i32, i32) {
    %c0_i32 = arith.constant 0 : i32
    %c0_i32_0 = arith.constant 0 : i32
    %c0_i32_1 = arith.constant 0 : i32
    return %c0_i32, %c0_i32_0 : i32, i32
  }
  func.func @transform_19(%arg0: i32, %arg1: memref<2x8xi32, #tpu.memory_space<smem>>, %arg2: memref<2x8xi32, #tpu.memory_space<smem>>) -> (i32, i32) {
    %c0_i32 = arith.constant 0 : i32
    %c0_i32_0 = arith.constant 0 : i32
    %c0_i32_1 = arith.constant 0 : i32
    return %c0_i32, %c0_i32_0 : i32, i32
  }
  func.func @transform_20(%arg0: i32, %arg1: memref<2x8xi32, #tpu.memory_space<smem>>, %arg2: memref<2x8xi32, #tpu.memory_space<smem>>) -> (i32, i32, i32) {
    %c0_i32 = arith.constant 0 : i32
    %c0_i32_0 = arith.constant 0 : i32
    %c0_i32_1 = arith.constant 0 : i32
    return %arg0, %c0_i32, %c0_i32_0 : i32, i32, i32
  }
}

</mosaic_0001>

<llo_original>
// kernel: bert_cl_forward.1
$region0: #{bert_cl_forward.1}
  #allocation0 [shape = 'u32[]', space=smem, size = 0x4, offset = 0x4, fixed_abs, tag = 'smem constant byte address 0x4 - core index']
  #allocation1 [shape = 'u32[144,128]{1,0:T(1,128)}', space=vmem, size = 0x12000, scoped, tag = 'internal scratch']
  #allocation2 [shape = 's32[1]{0}', space=sflag, size = 0x4, scoped, tag = 'scoped memory for bert_cl_forward.1']
  #allocation3 [shape = 'u8[1024]{0}', space=smem, size = 0x400, scoped, tag = 'prefetched SMEM operand 0']
  #allocation4 [shape = 'u8[1024]{0}', space=smem, size = 0x400, scoped, tag = 'prefetched SMEM operand 1']
  %s0 = inlined_call_operand.vmem [shape: s32[2,8], index: 0, kind: input, shape index: {}]
  %s1 = inlined_call_operand.vmem [shape: s32[2,8], index: 1, kind: input, shape index: {}]
  %s2 = inlined_call_operand.vmem [shape: s32[2,1,8], index: 2, kind: input, shape index: {}]
  %s3 = inlined_call_operand.vmem [shape: f32[64,32], index: 3, kind: input, shape index: {}]
  %s4 = inlined_call_operand.vmem [shape: f32[16,32], index: 4, kind: input, shape index: {}]
  %s5 = inlined_call_operand.vmem [shape: f32[2,32], index: 5, kind: input, shape index: {}]
  %s6 = inlined_call_operand.vmem [shape: f32[1,32], index: 6, kind: input, shape index: {}]
  %s7 = inlined_call_operand.vmem [shape: f32[1,32], index: 7, kind: input, shape index: {}]
  %s8 = inlined_call_operand.vmem [shape: bf16[2,32,96], index: 8, kind: input, shape index: {}]
  %s9 = inlined_call_operand.vmem [shape: f32[2,1,96], index: 9, kind: input, shape index: {}]
  %s10 = inlined_call_operand.vmem [shape: bf16[2,4,8,32], index: 10, kind: input, shape index: {}]
  %s11 = inlined_call_operand.vmem [shape: f32[2,1,32], index: 11, kind: input, shape index: {}]
  %s12 = inlined_call_operand.vmem [shape: f32[2,1,32], index: 12, kind: input, shape index: {}]
  %s13 = inlined_call_operand.vmem [shape: f32[2,1,32], index: 13, kind: input, shape index: {}]
  %s14 = inlined_call_operand.vmem [shape: bf16[2,32,128], index: 14, kind: input, shape index: {}]
  %s15 = inlined_call_operand.vmem [shape: f32[2,1,128], index: 15, kind: input, shape index: {}]
  %s16 = inlined_call_operand.vmem [shape: bf16[2,128,32], index: 16, kind: input, shape index: {}]
  %s17 = inlined_call_operand.vmem [shape: f32[2,1,32], index: 17, kind: input, shape index: {}]
  %s18 = inlined_call_operand.vmem [shape: f32[2,1,32], index: 18, kind: input, shape index: {}]
  %s19 = inlined_call_operand.vmem [shape: f32[2,1,32], index: 19, kind: input, shape index: {}]
  %s20 = inlined_call_operand.vmem [shape: bf16[32,3], index: 20, kind: input, shape index: {}]
  %s21 = inlined_call_operand.vmem [shape: f32[1,3], index: 21, kind: input, shape index: {}]
  %s22 = inlined_call_operand.hbm [shape: f32[2,1,3], index: 22, kind: output, shape index: {}]
  %s23 = sld [smem:[#allocation0]]
  $region113: #{bert_cl_forward.1} parent=0
    _
  %s25 = ssub.s32 1, %s23
  %s26 = scalar_select 0, %s25, %s23
  %s27 = sshll.u32 %s0, 4
  %s28 = int_to_ptr.vmem [resolvable:$true] %s27
  %30 = dma.vmem_to_smem %s28, 32, [#allocation3], [#allocation2]
  %s31 = sshll.u32 %s1, 4
  %s32 = int_to_ptr.vmem [resolvable:$true] %s31
  %34 = dma.vmem_to_smem %s32, 32, [#allocation4], [#allocation2]
  %35 = dma.done [#allocation2], 64
  %36 = sfence
  $region1: #{bert_cl_forward.1} parent=0
    #allocation5 [shape = 'u8[1024]{0}', space=vmem, size = 0x400, scoped, tag = 'output window, operand 0']
    #allocation6 [shape = 's32[2]{0}', space=sflag, size = 0x8, scoped, tag = 'scoped memory for bert_cl_forward.1']
    %37 = vsyncpa [#allocation6], 0
    %s38 = scalar_lea.sflag [#allocation6], 1
    %39 = vsyncpa %s38, 0
    loop: start=0, step=1, limit=4
    $region2: #{bert_cl_forward.1} parent=1 // loop_pre_header
      _
    $region3: #{bert_cl_forward.1} parent=1 // loop_header
      %s41 = sphi 0, %s45
      %p42 = scmp.ge.s32.totalorder %s41, 4
      %s51 = sphi 0, %s53
      %s54 = sphi 0, %s51
      %s55 = sphi 0, %s54
      %s71 = sphi 0, %s55
      %s75 = sphi 0, %s75
      %s77 = sphi 0, %s75
      %s78 = sphi 0, %s77
      %s92 = sphi 0, %s78
      %s96 = sphi 0, %s96
      %s98 = sphi 0, %s96
      %s99 = sphi 0, %s98
      %s113 = sphi 0, %s99
      %s117 = sphi 0, %s117
      %s119 = sphi 0, %s117
      %s120 = sphi 0, %s119
      %s134 = sphi 0, %s120
      %s138 = sphi 0, %s138
      %s140 = sphi 0, %s138
      %s141 = sphi 0, %s140
      %s155 = sphi 0, %s141
      %s159 = sphi 0, %s159
      %s161 = sphi 0, %s159
      %s162 = sphi 0, %s161
      %s176 = sphi 0, %s162
      %s180 = sphi 0, %s180
      %s182 = sphi 0, %s180
      %s183 = sphi 0, %s182
      %s197 = sphi 0, %s183
      %s201 = sphi 0, %s201
      %s203 = sphi 0, %s201
      %s204 = sphi 0, %s203
      %s218 = sphi 0, %s204
      %s222 = sphi 0, %s222
      %s224 = sphi 0, %s222
      %s225 = sphi 0, %s224
      %s239 = sphi 0, %s225
      %s243 = sphi 0, %s243
      %s245 = sphi 0, %s243
      %s246 = sphi 0, %s245
      %s260 = sphi 0, %s246
      %s264 = sphi 0, %s264
      %s266 = sphi 0, %s264
      %s267 = sphi 0, %s266
      %s281 = sphi 0, %s267
      %s285 = sphi 0, %s285
      %s287 = sphi 0, %s285
      %s288 = sphi 0, %s287
      %s302 = sphi 0, %s288
      %s306 = sphi 0, %s306
      %s308 = sphi 0, %s306
      %s309 = sphi 0, %s308
      %s323 = sphi 0, %s309
      %s327 = sphi 0, %s327
      %s329 = sphi 0, %s327
      %s330 = sphi 0, %s329
      %s344 = sphi 0, %s330
      %s348 = sphi 0, %s348
      %s350 = sphi 0, %s348
      %s351 = sphi 0, %s350
      %s365 = sphi 0, %s351
      %s369 = sphi 0, %s369
      %s371 = sphi 0, %s369
      %s372 = sphi 0, %s371
      %s386 = sphi 0, %s372
      %s390 = sphi 0, %s390
      %s392 = sphi 0, %s390
      %s393 = sphi 0, %s392
      %s407 = sphi 0, %s393
      %s411 = sphi 0, %s411
      %s413 = sphi 0, %s411
      %s414 = sphi 0, %s413
      %s428 = sphi 0, %s414
      %s432 = sphi 0, %s432
      %s434 = sphi 0, %s432
      %s435 = sphi 0, %s434
      %s449 = sphi 0, %s435
      %s453 = sphi 0, %s453
      %s455 = sphi 0, %s453
      %s456 = sphi 0, %s455
      %s470 = sphi 0, %s456
      %s476 = sphi 0, %s478
      %s479 = sphi 0, %s476
      %s480 = sphi 0, %s479
      %s496 = sphi 0, %s480
    $region4: #{bert_cl_forward.1} parent=1 // loop_header_branch
      %44 = sbr.rel (%p42) target = $region8
    $region5: #{bert_cl_forward.1} parent=1 // loop_body
      %s46 = ssub.s32 %s41, 1
      %s47 = ssub.s32 %s41, 2
      %s48 = sadd.s32 %s41, 1
      %s49 = ssub.s32 %s41, %s48
      %p50 = scmp.eq.s32.totalorder %s49, 0
      %s52 = sadd.s32 %s51, 1
      %s53 = scalar_select %p50, %s51, %s52
      %p56 = pneg %p50
      %p57 = scmp.eq.s32.totalorder %s41, 1
      %p58 = por %p56, %p57
      %p59 = scmp.ne.s32.totalorder %s51, %s54
      %p60 = scmp.eq.s32.totalorder %s41, 0
      %p61 = por %p59, %p60
      %p62 = scmp.ne.s32.totalorder %s51, %s54
      %p63 = scmp.eq.s32.totalorder %s46, 1
      %p64 = por %p62, %p63
      %p65 = scmp.ne.s32.totalorder %s54, %s55
      %p66 = scmp.eq.s32.totalorder %s46, 0
      %p67 = por %p65, %p66
      %p68 = scmp.ne.s32.totalorder %s54, %s55
      %p69 = scmp.eq.s32.totalorder %s47, 1
      %p70 = por %p68, %p69
      %p72 = scmp.ne.s32.totalorder %s55, %s71
      %p73 = scmp.eq.s32.totalorder %s47, 0
      %p74 = por %p72, %p73
      %s76 = sadd.s32 %s75, 1
      %p79 = scmp.eq.s32.totalorder %s41, 1
      %p80 = scmp.ne.s32.totalorder %s75, %s77
      %p81 = scmp.eq.s32.totalorder %s41, 0
      %p82 = por %p80, %p81
      %p83 = scmp.ne.s32.totalorder %s75, %s77
      %p84 = scmp.eq.s32.totalorder %s46, 1
      %p85 = por %p83, %p84
      %p86 = scmp.ne.s32.totalorder %s77, %s78
      %p87 = scmp.eq.s32.totalorder %s46, 0
      %p88 = por %p86, %p87
      %p89 = scmp.ne.s32.totalorder %s77, %s78
      %p90 = scmp.eq.s32.totalorder %s47, 1
      %p91 = por %p89, %p90
      %p93 = scmp.ne.s32.totalorder %s78, %s92
      %p94 = scmp.eq.s32.totalorder %s47, 0
      %p95 = por %p93, %p94
      %s97 = sadd.s32 %s96, 1
      %p100 = scmp.eq.s32.totalorder %s41, 1
      %p101 = scmp.ne.s32.totalorder %s96, %s98
      %p102 = scmp.eq.s32.totalorder %s41, 0
      %p103 = por %p101, %p102
      %p104 = scmp.ne.s32.totalorder %s96, %s98
      %p105 = scmp.eq.s32.totalorder %s46, 1
      %p106 = por %p104, %p105
      %p107 = scmp.ne.s32.totalorder %s98, %s99
      %p108 = scmp.eq.s32.totalorder %s46, 0
      %p109 = por %p107, %p108
      %p110 = scmp.ne.s32.totalorder %s98, %s99
      %p111 = scmp.eq.s32.totalorder %s47, 1
      %p112 = por %p110, %p111
      %p114 = scmp.ne.s32.totalorder %s99, %s113
      %p115 = scmp.eq.s32.totalorder %s47, 0
      %p116 = por %p114, %p115
      %s118 = sadd.s32 %s117, 1
      %p121 = scmp.eq.s32.totalorder %s41, 1
      %p122 = scmp.ne.s32.totalorder %s117, %s119
      %p123 = scmp.eq.s32.totalorder %s41, 0
      %p124 = por %p122, %p123
      %p125 = scmp.ne.s32.totalorder %s117, %s119
      %p126 = scmp.eq.s32.totalorder %s46, 1
      %p127 = por %p125, %p126
      %p128 = scmp.ne.s32.totalorder %s119, %s120
      %p129 = scmp.eq.s32.totalorder %s46, 0
      %p130 = por %p128, %p129
      %p131 = scmp.ne.s32.totalorder %s119, %s120
      %p132 = scmp.eq.s32.totalorder %s47, 1
      %p133 = por %p131, %p132
      %p135 = scmp.ne.s32.totalorder %s120, %s134
      %p136 = scmp.eq.s32.totalorder %s47, 0
      %p137 = por %p135, %p136
      %s139 = sadd.s32 %s138, 1
      %p142 = scmp.eq.s32.totalorder %s41, 1
      %p143 = scmp.ne.s32.totalorder %s138, %s140
      %p144 = scmp.eq.s32.totalorder %s41, 0
      %p145 = por %p143, %p144
      %p146 = scmp.ne.s32.totalorder %s138, %s140
      %p147 = scmp.eq.s32.totalorder %s46, 1
      %p148 = por %p146, %p147
      %p149 = scmp.ne.s32.totalorder %s140, %s141
      %p150 = scmp.eq.s32.totalorder %s46, 0
      %p151 = por %p149, %p150
      %p152 = scmp.ne.s32.totalorder %s140, %s141
      %p153 = scmp.eq.s32.totalorder %s47, 1
      %p154 = por %p152, %p153
      %p156 = scmp.ne.s32.totalorder %s141, %s155
      %p157 = scmp.eq.s32.totalorder %s47, 0
      %p158 = por %p156, %p157
      %s160 = sadd.s32 %s159, 1
      %p163 = scmp.eq.s32.totalorder %s41, 1
      %p164 = scmp.ne.s32.totalorder %s159, %s161
      %p165 = scmp.eq.s32.totalorder %s41, 0
      %p166 = por %p164, %p165
      %p167 = scmp.ne.s32.totalorder %s159, %s161
      %p168 = scmp.eq.s32.totalorder %s46, 1
      %p169 = por %p167, %p168
      %p170 = scmp.ne.s32.totalorder %s161, %s162
      %p171 = scmp.eq.s32.totalorder %s46, 0
      %p172 = por %p170, %p171
      %p173 = scmp.ne.s32.totalorder %s161, %s162
      %p174 = scmp.eq.s32.totalorder %s47, 1
      %p175 = por %p173, %p174
      %p177 = scmp.ne.s32.totalorder %s162, %s176
      %p178 = scmp.eq.s32.totalorder %s47, 0
      %p179 = por %p177, %p178
      %s181 = sadd.s32 %s180, 1
      %p184 = scmp.eq.s32.totalorder %s41, 1
      %p185 = scmp.ne.s32.totalorder %s180, %s182
      %p186 = scmp.eq.s32.totalorder %s41, 0
      %p187 = por %p185, %p186
      %p188 = scmp.ne.s32.totalorder %s180, %s182
      %p189 = scmp.eq.s32.totalorder %s46, 1
      %p190 = por %p188, %p189
      %p191 = scmp.ne.s32.totalorder %s182, %s183
      %p192 = scmp.eq.s32.totalorder %s46, 0
      %p193 = por %p191, %p192
      %p194 = scmp.ne.s32.totalorder %s182, %s183
      %p195 = scmp.eq.s32.totalorder %s47, 1
      %p196 = por %p194, %p195
      %p198 = scmp.ne.s32.totalorder %s183, %s197
      %p199 = scmp.eq.s32.totalorder %s47, 0
      %p200 = por %p198, %p199
      %s202 = sadd.s32 %s201, 1
      %p205 = scmp.eq.s32.totalorder %s41, 1
      %p206 = scmp.ne.s32.totalorder %s201, %s203
      %p207 = scmp.eq.s32.totalorder %s41, 0
      %p208 = por %p206, %p207
      %p209 = scmp.ne.s32.totalorder %s201, %s203
      %p210 = scmp.eq.s32.totalorder %s46, 1
      %p211 = por %p209, %p210
      %p212 = scmp.ne.s32.totalorder %s203, %s204
      %p213 = scmp.eq.s32.totalorder %s46, 0
      %p214 = por %p212, %p213
      %p215 = scmp.ne.s32.totalorder %s203, %s204
      %p216 = scmp.eq.s32.totalorder %s47, 1
      %p217 = por %p215, %p216
      %p219 = scmp.ne.s32.totalorder %s204, %s218
      %p220 = scmp.eq.s32.totalorder %s47, 0
      %p221 = por %p219, %p220
      %s223 = sadd.s32 %s222, 1
      %p226 = scmp.eq.s32.totalorder %s41, 1
      %p227 = scmp.ne.s32.totalorder %s222, %s224
      %p228 = scmp.eq.s32.totalorder %s41, 0
      %p229 = por %p227, %p228
      %p230 = scmp.ne.s32.totalorder %s222, %s224
      %p231 = scmp.eq.s32.totalorder %s46, 1
      %p232 = por %p230, %p231
      %p233 = scmp.ne.s32.totalorder %s224, %s225
      %p234 = scmp.eq.s32.totalorder %s46, 0
      %p235 = por %p233, %p234
      %p236 = scmp.ne.s32.totalorder %s224, %s225
      %p237 = scmp.eq.s32.totalorder %s47, 1
      %p238 = por %p236, %p237
      %p240 = scmp.ne.s32.totalorder %s225, %s239
      %p241 = scmp.eq.s32.totalorder %s47, 0
      %p242 = por %p240, %p241
      %s244 = sadd.s32 %s243, 1
      %p247 = scmp.eq.s32.totalorder %s41, 1
      %p248 = scmp.ne.s32.totalorder %s243, %s245
      %p249 = scmp.eq.s32.totalorder %s41, 0
      %p250 = por %p248, %p249
      %p251 = scmp.ne.s32.totalorder %s243, %s245
      %p252 = scmp.eq.s32.totalorder %s46, 1
      %p253 = por %p251, %p252
      %p254 = scmp.ne.s32.totalorder %s245, %s246
      %p255 = scmp.eq.s32.totalorder %s46, 0
      %p256 = por %p254, %p255
      %p257 = scmp.ne.s32.totalorder %s245, %s246
      %p258 = scmp.eq.s32.totalorder %s47, 1
      %p259 = por %p257, %p258
      %p261 = scmp.ne.s32.totalorder %s246, %s260
      %p262 = scmp.eq.s32.totalorder %s47, 0
      %p263 = por %p261, %p262
      %s265 = sadd.s32 %s264, 1
      %p268 = scmp.eq.s32.totalorder %s41, 1
      %p269 = scmp.ne.s32.totalorder %s264, %s266
      %p270 = scmp.eq.s32.totalorder %s41, 0
      %p271 = por %p269, %p270
      %p272 = scmp.ne.s32.totalorder %s264, %s266
      %p273 = scmp.eq.s32.totalorder %s46, 1
      %p274 = por %p272, %p273
      %p275 = scmp.ne.s32.totalorder %s266, %s267
      %p276 = scmp.eq.s32.totalorder %s46, 0
      %p277 = por %p275, %p276
      %p278 = scmp.ne.s32.totalorder %s266, %s267
      %p279 = scmp.eq.s32.totalorder %s47, 1
      %p280 = por %p278, %p279
      %p282 = scmp.ne.s32.totalorder %s267, %s281
      %p283 = scmp.eq.s32.totalorder %s47, 0
      %p284 = por %p282, %p283
      %s286 = sadd.s32 %s285, 1
      %p289 = scmp.eq.s32.totalorder %s41, 1
      %p290 = scmp.ne.s32.totalorder %s285, %s287
      %p291 = scmp.eq.s32.totalorder %s41, 0
      %p292 = por %p290, %p291
      %p293 = scmp.ne.s32.totalorder %s285, %s287
      %p294 = scmp.eq.s32.totalorder %s46, 1
      %p295 = por %p293, %p294
      %p296 = scmp.ne.s32.totalorder %s287, %s288
      %p297 = scmp.eq.s32.totalorder %s46, 0
      %p298 = por %p296, %p297
      %p299 = scmp.ne.s32.totalorder %s287, %s288
      %p300 = scmp.eq.s32.totalorder %s47, 1
      %p301 = por %p299, %p300
      %p303 = scmp.ne.s32.totalorder %s288, %s302
      %p304 = scmp.eq.s32.totalorder %s47, 0
      %p305 = por %p303, %p304
      %s307 = sadd.s32 %s306, 1
      %p310 = scmp.eq.s32.totalorder %s41, 1
      %p311 = scmp.ne.s32.totalorder %s306, %s308
      %p312 = scmp.eq.s32.totalorder %s41, 0
      %p313 = por %p311, %p312
      %p314 = scmp.ne.s32.totalorder %s306, %s308
      %p315 = scmp.eq.s32.totalorder %s46, 1
      %p316 = por %p314, %p315
      %p317 = scmp.ne.s32.totalorder %s308, %s309
      %p318 = scmp.eq.s32.totalorder %s46, 0
      %p319 = por %p317, %p318
      %p320 = scmp.ne.s32.totalorder %s308, %s309
      %p321 = scmp.eq.s32.totalorder %s47, 1
      %p322 = por %p320, %p321
      %p324 = scmp.ne.s32.totalorder %s309, %s323
      %p325 = scmp.eq.s32.totalorder %s47, 0
      %p326 = por %p324, %p325
      %s328 = sadd.s32 %s327, 1
      %p331 = scmp.eq.s32.totalorder %s41, 1
      %p332 = scmp.ne.s32.totalorder %s327, %s329
      %p333 = scmp.eq.s32.totalorder %s41, 0
      %p334 = por %p332, %p333
      %p335 = scmp.ne.s32.totalorder %s327, %s329
      %p336 = scmp.eq.s32.totalorder %s46, 1
      %p337 = por %p335, %p336
      %p338 = scmp.ne.s32.totalorder %s329, %s330
      %p339 = scmp.eq.s32.totalorder %s46, 0
      %p340 = por %p338, %p339
      %p341 = scmp.ne.s32.totalorder %s329, %s330
      %p342 = scmp.eq.s32.totalorder %s47, 1
      %p343 = por %p341, %p342
      %p345 = scmp.ne.s32.totalorder %s330, %s344
      %p346 = scmp.eq.s32.totalorder %s47, 0
      %p347 = por %p345, %p346
      %s349 = sadd.s32 %s348, 1
      %p352 = scmp.eq.s32.totalorder %s41, 1
      %p353 = scmp.ne.s32.totalorder %s348, %s350
      %p354 = scmp.eq.s32.totalorder %s41, 0
      %p355 = por %p353, %p354
      %p356 = scmp.ne.s32.totalorder %s348, %s350
      %p357 = scmp.eq.s32.totalorder %s46, 1
      %p358 = por %p356, %p357
      %p359 = scmp.ne.s32.totalorder %s350, %s351
      %p360 = scmp.eq.s32.totalorder %s46, 0
      %p361 = por %p359, %p360
      %p362 = scmp.ne.s32.totalorder %s350, %s351
      %p363 = scmp.eq.s32.totalorder %s47, 1
      %p364 = por %p362, %p363
      %p366 = scmp.ne.s32.totalorder %s351, %s365
      %p367 = scmp.eq.s32.totalorder %s47, 0
      %p368 = por %p366, %p367
      %s370 = sadd.s32 %s369, 1
      %p373 = scmp.eq.s32.totalorder %s41, 1
      %p374 = scmp.ne.s32.totalorder %s369, %s371
      %p375 = scmp.eq.s32.totalorder %s41, 0
      %p376 = por %p374, %p375
      %p377 = scmp.ne.s32.totalorder %s369, %s371
      %p378 = scmp.eq.s32.totalorder %s46, 1
      %p379 = por %p377, %p378
      %p380 = scmp.ne.s32.totalorder %s371, %s372
      %p381 = scmp.eq.s32.totalorder %s46, 0
      %p382 = por %p380, %p381
      %p383 = scmp.ne.s32.totalorder %s371, %s372
      %p384 = scmp.eq.s32.totalorder %s47, 1
      %p385 = por %p383, %p384
      %p387 = scmp.ne.s32.totalorder %s372, %s386
      %p388 = scmp.eq.s32.totalorder %s47, 0
      %p389 = por %p387, %p388
      %s391 = sadd.s32 %s390, 1
      %p394 = scmp.eq.s32.totalorder %s41, 1
      %p395 = scmp.ne.s32.totalorder %s390, %s392
      %p396 = scmp.eq.s32.totalorder %s41, 0
      %p397 = por %p395, %p396
      %p398 = scmp.ne.s32.totalorder %s390, %s392
      %p399 = scmp.eq.s32.totalorder %s46, 1
      %p400 = por %p398, %p399
      %p401 = scmp.ne.s32.totalorder %s392, %s393
      %p402 = scmp.eq.s32.totalorder %s46, 0
      %p403 = por %p401, %p402
      %p404 = scmp.ne.s32.totalorder %s392, %s393
      %p405 = scmp.eq.s32.totalorder %s47, 1
      %p406 = por %p404, %p405
      %p408 = scmp.ne.s32.totalorder %s393, %s407
      %p409 = scmp.eq.s32.totalorder %s47, 0
      %p410 = por %p408, %p409
      %s412 = sadd.s32 %s411, 1
      %p415 = scmp.eq.s32.totalorder %s41, 1
      %p416 = scmp.ne.s32.totalorder %s411, %s413
      %p417 = scmp.eq.s32.totalorder %s41, 0
      %p418 = por %p416, %p417
      %p419 = scmp.ne.s32.totalorder %s411, %s413
      %p420 = scmp.eq.s32.totalorder %s46, 1
      %p421 = por %p419, %p420
      %p422 = scmp.ne.s32.totalorder %s413, %s414
      %p423 = scmp.eq.s32.totalorder %s46, 0
      %p424 = por %p422, %p423
      %p425 = scmp.ne.s32.totalorder %s413, %s414
      %p426 = scmp.eq.s32.totalorder %s47, 1
      %p427 = por %p425, %p426
      %p429 = scmp.ne.s32.totalorder %s414, %s428
      %p430 = scmp.eq.s32.totalorder %s47, 0
      %p431 = por %p429, %p430
      %s433 = sadd.s32 %s432, 1
      %p436 = scmp.eq.s32.totalorder %s41, 1
      %p437 = scmp.ne.s32.totalorder %s432, %s434
      %p438 = scmp.eq.s32.totalorder %s41, 0
      %p439 = por %p437, %p438
      %p440 = scmp.ne.s32.totalorder %s432, %s434
      %p441 = scmp.eq.s32.totalorder %s46, 1
      %p442 = por %p440, %p441
      %p443 = scmp.ne.s32.totalorder %s434, %s435
      %p444 = scmp.eq.s32.totalorder %s46, 0
      %p445 = por %p443, %p444
      %p446 = scmp.ne.s32.totalorder %s434, %s435
      %p447 = scmp.eq.s32.totalorder %s47, 1
      %p448 = por %p446, %p447
      %p450 = scmp.ne.s32.totalorder %s435, %s449
      %p451 = scmp.eq.s32.totalorder %s47, 0
      %p452 = por %p450, %p451
      %s454 = sadd.s32 %s453, 1
      %p457 = scmp.eq.s32.totalorder %s41, 1
      %p458 = scmp.ne.s32.totalorder %s453, %s455
      %p459 = scmp.eq.s32.totalorder %s41, 0
      %p460 = por %p458, %p459
      %p461 = scmp.ne.s32.totalorder %s453, %s455
      %p462 = scmp.eq.s32.totalorder %s46, 1
      %p463 = por %p461, %p462
      %p464 = scmp.ne.s32.totalorder %s455, %s456
      %p465 = scmp.eq.s32.totalorder %s46, 0
      %p466 = por %p464, %p465
      %p467 = scmp.ne.s32.totalorder %s455, %s456
      %p468 = scmp.eq.s32.totalorder %s47, 1
      %p469 = por %p467, %p468
      %p471 = scmp.ne.s32.totalorder %s456, %s470
      %p472 = scmp.eq.s32.totalorder %s47, 0
      %p473 = por %p471, %p472
      %s474 = ssub.s32 %s41, %s48
      %p475 = scmp.eq.s32.totalorder %s474, 0
      %s477 = sadd.s32 %s476, 1
      %s478 = scalar_select %p475, %s476, %s477
      %p481 = pneg %p475
      %p482 = scmp.eq.s32.totalorder %s41, 1
      %p483 = por %p481, %p482
      %p484 = scmp.ne.s32.totalorder %s476, %s479
      %p485 = scmp.eq.s32.totalorder %s41, 0
      %p486 = por %p484, %p485
      %p487 = scmp.ne.s32.totalorder %s476, %s479
      %p488 = scmp.eq.s32.totalorder %s46, 1
      %p489 = por %p487, %p488
      %p490 = scmp.ne.s32.totalorder %s479, %s480
      %p491 = scmp.eq.s32.totalorder %s46, 0
      %p492 = por %p490, %p491
      %p493 = scmp.ne.s32.totalorder %s479, %s480
      %p494 = scmp.eq.s32.totalorder %s47, 1
      %p495 = por %p493, %p494
      %p497 = scmp.ne.s32.totalorder %s480, %s496
      %p498 = scmp.eq.s32.totalorder %s47, 0
      %p499 = por %p497, %p498
      %p500 = scmp.le.s32.totalorder 1, %s41
      %p501 = scmp.lt.s32.totalorder %s41, 3
      %p502 = pnand %p500, %p501
      %p503 = pneg %p502
      // Predicated region
      $region9: #{bert_cl_forward.1} parent=5 // pred_check
        _
      $region10: #{bert_cl_forward.1} parent=5 // pred_check_branch
        %505 = sbr.rel (%p502) target = $region12
      $region11: #{bert_cl_forward.1} parent=5 // pred_region
        %s506 = ssub.s32 %s41, 1
        // Predicated region
        $region13: #{bert_cl_forward.1} parent=11 // pred_check
          %p507 = pneg %p88
        $region14: #{bert_cl_forward.1} parent=11 // pred_check_branch
          %509 = sbr.rel (%p507) target = $region16
        $region15: #{bert_cl_forward.1} parent=11 // pred_region
          _
        $region16: #{bert_cl_forward.1} parent=11 // pred_fallthru
          _
        // Predicated region
        $region17: #{bert_cl_forward.1} parent=11 // pred_check
          %p510 = pneg %p109
        $region18: #{bert_cl_forward.1} parent=11 // pred_check_branch
          %512 = sbr.rel (%p510) target = $region20
        $region19: #{bert_cl_forward.1} parent=11 // pred_region
          _
        $region20: #{bert_cl_forward.1} parent=11 // pred_fallthru
          _
        // Predicated region
        $region21: #{bert_cl_forward.1} parent=11 // pred_check
          %p513 = pneg %p130
        $region22: #{bert_cl_forward.1} parent=11 // pred_check_branch
          %515 = sbr.rel (%p513) target = $region24
        $region23: #{bert_cl_forward.1} parent=11 // pred_region
          _
        $region24: #{bert_cl_forward.1} parent=11 // pred_fallthru
          _
        // Predicated region
        $region25: #{bert_cl_forward.1} parent=11 // pred_check
          %p516 = pneg %p151
        $region26: #{bert_cl_forward.1} parent=11 // pred_check_branch
          %518 = sbr.rel (%p516) target = $region28
        $region27: #{bert_cl_forward.1} parent=11 // pred_region
          _
        $region28: #{bert_cl_forward.1} parent=11 // pred_fallthru
          _
        // Predicated region
        $region29: #{bert_cl_forward.1} parent=11 // pred_check
          %p519 = pneg %p172
        $region30: #{bert_cl_forward.1} parent=11 // pred_check_branch
          %521 = sbr.rel (%p519) target = $region32
        $region31: #{bert_cl_forward.1} parent=11 // pred_region
          _
        $region32: #{bert_cl_forward.1} parent=11 // pred_fallthru
          _
        // Predicated region
        $region33: #{bert_cl_forward.1} parent=11 // pred_check
          %p522 = pneg %p193
        $region34: #{bert_cl_forward.1} parent=11 // pred_check_branch
          %524 = sbr.rel (%p522) target = $region36
        $region35: #{bert_cl_forward.1} parent=11 // pred_region
          _
        $region36: #{bert_cl_forward.1} parent=11 // pred_fallthru
          _
        // Predicated region
        $region37: #{bert_cl_forward.1} parent=11 // pred_check
          %p525 = pneg %p214
        $region38: #{bert_cl_forward.1} parent=11 // pred_check_branch
          %527 = sbr.rel (%p525) target = $region40
        $region39: #{bert_cl_forward.1} parent=11 // pred_region
          _
        $region40: #{bert_cl_forward.1} parent=11 // pred_fallthru
          _
        // Predicated region
        $region41: #{bert_cl_forward.1} parent=11 // pred_check
          %p528 = pneg %p235
        $region42: #{bert_cl_forward.1} parent=11 // pred_check_branch
          %530 = sbr.rel (%p528) target = $region44
        $region43: #{bert_cl_forward.1} parent=11 // pred_region
          _
        $region44: #{bert_cl_forward.1} parent=11 // pred_fallthru
          _
        // Predicated region
        $region45: #{bert_cl_forward.1} parent=11 // pred_check
          %p531 = pneg %p256
        $region46: #{bert_cl_forward.1} parent=11 // pred_check_branch
          %533 = sbr.rel (%p531) target = $region48
        $region47: #{bert_cl_forward.1} parent=11 // pred_region
          _
        $region48: #{bert_cl_forward.1} parent=11 // pred_fallthru
          _
        // Predicated region
        $region49: #{bert_cl_forward.1} parent=11 // pred_check
          %p534 = pneg %p277
        $region50: #{bert_cl_forward.1} parent=11 // pred_check_branch
          %536 = sbr.rel (%p534) target = $region52
        $region51: #{bert_cl_forward.1} parent=11 // pred_region
          _
        $region52: #{bert_cl_forward.1} parent=11 // pred_fallthru
          _
        // Predicated region
        $region53: #{bert_cl_forward.1} parent=11 // pred_check
          %p537 = pneg %p298
        $region54: #{bert_cl_forward.1} parent=11 // pred_check_branch
          %539 = sbr.rel (%p537) target = $region56
        $region55: #{bert_cl_forward.1} parent=11 // pred_region
          _
        $region56: #{bert_cl_forward.1} parent=11 // pred_fallthru
          _
        // Predicated region
        $region57: #{bert_cl_forward.1} parent=11 // pred_check
          %p540 = pneg %p319
        $region58: #{bert_cl_forward.1} parent=11 // pred_check_branch
          %542 = sbr.rel (%p540) target = $region60
        $region59: #{bert_cl_forward.1} parent=11 // pred_region
          _
        $region60: #{bert_cl_forward.1} parent=11 // pred_fallthru
          _
        // Predicated region
        $region61: #{bert_cl_forward.1} parent=11 // pred_check
          %p543 = pneg %p340
        $region62: #{bert_cl_forward.1} parent=11 // pred_check_branch
          %545 = sbr.rel (%p543) target = $region64
        $region63: #{bert_cl_forward.1} parent=11 // pred_region
          _
        $region64: #{bert_cl_forward.1} parent=11 // pred_fallthru
          _
        // Predicated region
        $region65: #{bert_cl_forward.1} parent=11 // pred_check
          %p546 = pneg %p361
        $region66: #{bert_cl_forward.1} parent=11 // pred_check_branch
          %548 = sbr.rel (%p546) target = $region68
        $region67: #{bert_cl_forward.1} parent=11 // pred_region
          _
        $region68: #{bert_cl_forward.1} parent=11 // pred_fallthru
          _
        // Predicated region
        $region69: #{bert_cl_forward.1} parent=11 // pred_check
          %p549 = pneg %p382
        $region70: #{bert_cl_forward.1} parent=11 // pred_check_branch
          %551 = sbr.rel (%p549) target = $region72
        $region71: #{bert_cl_forward.1} parent=11 // pred_region
          _
        $region72: #{bert_cl_forward.1} parent=11 // pred_fallthru
          _
        // Predicated region
        $region73: #{bert_cl_forward.1} parent=11 // pred_check
          %p552 = pneg %p403
        $region74: #{bert_cl_forward.1} parent=11 // pred_check_branch
          %554 = sbr.rel (%p552) target = $region76
        $region75: #{bert_cl_forward.1} parent=11 // pred_region
          _
        $region76: #{bert_cl_forward.1} parent=11 // pred_fallthru
          _
        // Predicated region
        $region77: #{bert_cl_forward.1} parent=11 // pred_check
          %p555 = pneg %p424
        $region78: #{bert_cl_forward.1} parent=11 // pred_check_branch
          %557 = sbr.rel (%p555) target = $region80
        $region79: #{bert_cl_forward.1} parent=11 // pred_region
          _
        $region80: #{bert_cl_forward.1} parent=11 // pred_fallthru
          _
        // Predicated region
        $region81: #{bert_cl_forward.1} parent=11 // pred_check
          %p558 = pneg %p445
        $region82: #{bert_cl_forward.1} parent=11 // pred_check_branch
          %560 = sbr.rel (%p558) target = $region84
        $region83: #{bert_cl_forward.1} parent=11 // pred_region
          _
        $region84: #{bert_cl_forward.1} parent=11 // pred_fallthru
          _
        // Predicated region
        $region85: #{bert_cl_forward.1} parent=11 // pred_check
          %p561 = pneg %p466
        $region86: #{bert_cl_forward.1} parent=11 // pred_check_branch
          %563 = sbr.rel (%p561) target = $region88
        $region87: #{bert_cl_forward.1} parent=11 // pred_region
          _
        $region88: #{bert_cl_forward.1} parent=11 // pred_fallthru
          _
      $region12: #{bert_cl_forward.1} parent=5 // pred_fallthru
        _
      %p564 = scmp.lt.s32.totalorder %s41, 2
      // Predicated region
      $region89: #{bert_cl_forward.1} parent=5 // pred_check
        %p565 = pneg %p564
      $region90: #{bert_cl_forward.1} parent=5 // pred_check_branch
        %567 = sbr.rel (%p565) target = $region92
      $region91: #{bert_cl_forward.1} parent=5 // pred_region
        // Predicated region
        $region93: #{bert_cl_forward.1} parent=91 // pred_check
          %p568 = pneg %p61
        $region94: #{bert_cl_forward.1} parent=91 // pred_check_branch
          %570 = sbr.rel (%p568) target = $region96
        $region95: #{bert_cl_forward.1} parent=91 // pred_region
          %p571 = scmp.lt.s32.totalorder %s41, 1
          %s572 = scalar_select %p571, %s41, 1
          %s573 = scalar_lea.vmem %s2, %s572
        $region96: #{bert_cl_forward.1} parent=91 // pred_fallthru
          _
      $region92: #{bert_cl_forward.1} parent=5 // pred_fallthru
        _
      %p574 = scmp.le.s32.totalorder 1, %s41
      %p575 = scmp.lt.s32.totalorder %s41, 3
      %p576 = pnand %p574, %p575
      %p577 = pneg %p576
      // Predicated region
      $region97: #{bert_cl_forward.1} parent=5 // pred_check
        _
      $region98: #{bert_cl_forward.1} parent=5 // pred_check_branch
        %579 = sbr.rel (%p576) target = $region100
      $region99: #{bert_cl_forward.1} parent=5 // pred_region
        %s580 = ssub.s32 %s41, 1
        %p581 = scmp.lt.s32.totalorder %s46, 1
        %s582 = scalar_select %p581, %s46, 1
        %s583 = scalar_lea.vmem %s2, %s582
        %p584 = pneg %p67
        %p585 = pneg %p64
        %p586 = pneg %p88
        %p587 = pneg %p85
        %p588 = pneg %p109
        %p589 = pneg %p106
        %p590 = pneg %p130
        %p591 = pneg %p127
        %p592 = pneg %p151
        %p593 = pneg %p148
        %p594 = pneg %p172
        %p595 = pneg %p169
        %p596 = pneg %p193
        %p597 = pneg %p190
        %p598 = pneg %p214
        %p599 = pneg %p211
        %p600 = pneg %p235
        %p601 = pneg %p232
        %p602 = pneg %p256
        %p603 = pneg %p253
        %p604 = pneg %p277
        %p605 = pneg %p274
        %p606 = pneg %p298
        %p607 = pneg %p295
        %p608 = pneg %p319
        %p609 = pneg %p316
        %p610 = pneg %p340
        %p611 = pneg %p337
        %p612 = pneg %p361
        %p613 = pneg %p358
        %p614 = pneg %p382
        %p615 = pneg %p379
        %p616 = pneg %p403
        %p617 = pneg %p400
        %p618 = pneg %p424
        %p619 = pneg %p421
        %p620 = pneg %p445
        %p621 = pneg %p442
        %p622 = pneg %p466
        %p623 = pneg %p463
        %p624 = pneg %p492
        %p625 = pneg %p489
        %s626 = sand.u32 %s479, 1
        %s627 = scalar_lea.sflag [#allocation6], %s626
        %s628 = sand.u32 %s479, 1
        %s629 = scalar_lea.vmem [#allocation5], %s628
        %p630 = scmp.lt.s32.totalorder %s46, 1
        %s631 = scalar_select %p630, %s46, 1
        %s632 = scalar_lea.vmem %s2, %s631
        %s634 = smul.u32 %s46, 128
        %s635 = sld [smem:[#allocation3 + %s634]]
        %v636 = vstv %s635
        %s637 = sadd.s32 %s634, 1
        %s638 = sld [smem:[#allocation3 + %s637]]
        %v639 = vstv %s638
        %s640 = sadd.s32 %s634, 2
        %s641 = sld [smem:[#allocation3 + %s640]]
        %v642 = vstv %s641
        %s643 = sadd.s32 %s634, 3
        %s644 = sld [smem:[#allocation3 + %s643]]
        %v645 = vstv %s644
        %s646 = sadd.s32 %s634, 4
        %s647 = sld [smem:[#allocation3 + %s646]]
        %v648 = vstv %s647
        %s649 = sadd.s32 %s634, 5
        %s650 = sld [smem:[#allocation3 + %s649]]
        %v651 = vstv %s650
        %s652 = sadd.s32 %s634, 6
        %s653 = sld [smem:[#allocation3 + %s652]]
        %v654 = vstv %s653
        %s655 = sadd.s32 %s634, 7
        %s656 = sld [smem:[#allocation3 + %s655]]
        %v657 = vstv %s656
        %vm658 = vcmask 1040384
        %v659 = vsel %vm658, %v636, %v639
        %vm660 = vcmask 1041408
        %v661 = vsel %vm660, %v659, %v642
        %vm662 = vcmask 1042432
        %v663 = vsel %vm662, %v661, %v645
        %vm664 = vcmask 1043456
        %v665 = vsel %vm664, %v663, %v648
        %vm666 = vcmask 1044480
        %v667 = vsel %vm666, %v665, %v651
        %vm668 = vcmask 1045504
        %v669 = vsel %vm668, %v667, %v654
        %vm670 = vcmask 1046528
        %v671 = vsel %vm670, %v669, %v657
        %s672 = sld [smem:[#allocation4 + %s634]]
        %v673 = vstv %s672
        %s674 = sld [smem:[#allocation4 + %s637]]
        %v675 = vstv %s674
        %s676 = sld [smem:[#allocation4 + %s640]]
        %v677 = vstv %s676
        %s678 = sld [smem:[#allocation4 + %s643]]
        %v679 = vstv %s678
        %s680 = sld [smem:[#allocation4 + %s646]]
        %v681 = vstv %s680
        %s682 = sld [smem:[#allocation4 + %s649]]
        %v683 = vstv %s682
        %s684 = sld [smem:[#allocation4 + %s652]]
        %v685 = vstv %s684
        %s686 = sld [smem:[#allocation4 + %s655]]
        %v687 = vstv %s686
        %v688 = vsel %vm658, %v673, %v675
        %v689 = vsel %vm660, %v688, %v677
        %v690 = vsel %vm662, %v689, %v679
        %v691 = vsel %vm664, %v690, %v681
        %v692 = vsel %vm666, %v691, %v683
        %v693 = vsel %vm668, %v692, %v685
        %v694 = vsel %vm670, %v693, %v687
        %v695 = vlaneseq
        %v696 = vand.u32 %v695, 127
        %697 = vset.pattern.permute.xlu0 0
        %698 = vperm.xlu0 %697, %v671
        %v699 = vpop.permute.xlu0 %698
        %vm700 = vcmp.eq.s32.totalorder %v699, %v696
        %v701 = vsel %vm700, 1, 0
        %v702 = vcvt.s32.f32 %v701
        %v703 = vld [vmem:[%s3] sm:$0xff]
        %v704 = vld [vmem:[%s3 + $0x8] sm:$0xff]
        %v705 = vld [vmem:[%s3 + $0x10] sm:$0xff]
        %v706 = vld [vmem:[%s3 + $0x18] sm:$0xff]
        %v707 = vld [vmem:[%s3 + $0x20] sm:$0xff]
        %v708 = vld [vmem:[%s3 + $0x28] sm:$0xff]
        %v709 = vld [vmem:[%s3 + $0x30] sm:$0xff]
        %v710 = vld [vmem:[%s3 + $0x38] sm:$0xff]
        %vm711 = vcmp.eq.s32.totalorder %v694, 0
        %v712 = vsel %vm711, 1, 0
        %v713 = vcvt.s32.f32 %v712
        %v714 = vld [vmem:[%s5] sm:$0x1]
        %716 = vset.pattern.permute.xlu0 0
        %717 = vperm.xlu0 %716, %v713
        %v718 = vpop.permute.xlu0 %717
        %v720 = vlaneseq
        %v721 = vshrl.u32 %v720, 7
        %v722 = vsub.s32 0, %v721
        %v723 = vrot.slane %v714, %v722
        %v724 = vmul.f32 %v718, %v723
        %v725 = vadd.f32 %v724, 0.0
        %vm726 = vcmp.eq.s32.totalorder %v694, 1
        %v727 = vsel %vm726, 1, 0
        %v728 = vcvt.s32.f32 %v727
        %v729 = vld [vmem:[%s5 + $0x1] sm:$0x1]
        %731 = vset.pattern.permute.xlu0 0
        %732 = vperm.xlu0 %731, %v728
        %v733 = vpop.permute.xlu0 %732
        %v735 = vlaneseq
        %v736 = vshrl.u32 %v735, 7
        %v737 = vsub.s32 0, %v736
        %v738 = vrot.slane %v729, %v737
        %v739 = vmul.f32 %v733, %v738
        %v740 = vadd.f32 %v725, %v739
        %vm741 = vcmask 523264
        %v743 = vsel %vm741, %v702, 0
        %745 = vmatprep.subr.mxu0 0.0
        %746 = vmatpush1.msra.mxu0 %v703
        %747 = vmatprep.subr.mxu0 0.0
        %748 = vmatpush1.msra.mxu0 %v704
        %749 = vmatprep.subr.mxu0 0.0
        %750 = vmatpush1.msra.mxu0 %v705
        %751 = vmatprep.subr.mxu0 0.0
        %752 = vmatpush1.msra.mxu0 %v706
        %753 = vmatprep.subr.mxu0 0.0
        %754 = vmatpush1.msra.mxu0 %v707
        %755 = vmatprep.subr.mxu0 0.0
        %756 = vmatpush1.msra.mxu0 %v708
        %757 = vmatprep.subr.mxu0 0.0
        %758 = vmatpush1.msra.mxu0 %v709
        %759 = vmatprep.subr.mxu0 0.0
        %760 = vmatpush1.msra.mxu0 %v710
        %761 = vmatprep.subr.mxu0 0.0
        %762 = vmatpush1.msra.mxu0 0.0
        %763 = vmatprep.subr.mxu0 0.0
        %764 = vmatpush1.msra.mxu0 0.0
        %765 = vmatprep.subr.mxu0 0.0
        %766 = vmatpush1.msra.mxu0 0.0
        %767 = vmatprep.subr.mxu0 0.0
        %768 = vmatpush1.msra.mxu0 0.0
        %769 = vmatprep.subr.mxu0 0.0
        %770 = vmatpush1.msra.mxu0 0.0
        %771 = vmatprep.subr.mxu0 0.0
        %772 = vmatpush1.msra.mxu0 0.0
        %773 = vmatprep.subr.mxu0 0.0
        %774 = vmatpush1.msra.mxu0 0.0
        %775 = vmatprep.subr.mxu0 0.0
        %776 = vmatpush1.msra.mxu0 0.0
        %777 = vmatprep.subr.mxu0 0.0
        %778 = vmatpush1.msra.mxu0 0.0
        %779 = vmatprep.subr.mxu0 0.0
        %780 = vmatpush1.msra.mxu0 0.0
        %781 = vmatprep.subr.mxu0 0.0
        %782 = vmatpush1.msra.mxu0 0.0
        %783 = vmatprep.subr.mxu0 0.0
        %784 = vmatpush1.msra.mxu0 0.0
        %785 = vmatprep.subr.mxu0 0.0
        %786 = vmatpush1.msra.mxu0 0.0
        %787 = vmatprep.subr.mxu0 0.0
        %788 = vmatpush1.msra.mxu0 0.0
        %789 = vmatprep.subr.mxu0 0.0
        %790 = vmatpush1.msra.mxu0 0.0
        %791 = vmatprep.subr.mxu0 0.0
        %792 = vmatpush1.msra.mxu0 0.0
        %793 = vmatprep.subr.mxu0 0.0
        %794 = vmatpush1.msra.mxu0 0.0
        %795 = vmatprep.subr.mxu0 0.0
        %796 = vmatpush1.msra.mxu0 0.0
        %797 = vmatprep.subr.mxu0 0.0
        %798 = vmatpush1.msra.mxu0 0.0
        %799 = vmatprep.subr.mxu0 0.0
        %800 = vmatpush1.msra.mxu0 0.0
        %801 = vmatprep.subr.mxu0 0.0
        %802 = vmatpush1.msra.mxu0 0.0
        %803 = vmatprep.subr.mxu0 0.0
        %804 = vmatpush1.msra.mxu0 0.0
        %805 = vmatprep.subr.mxu0 0.0
        %806 = vmatpush1.msra.mxu0 0.0
        %807 = vmatprep.subr.mxu0 0.0
        %808 = vmatpush1.msra.mxu0 0.0
        %809 = vmatprep.mubr.f32.mxu0 0.0
        %810 = vmatmul.mubr.f32.gmra.mrb[0].mxu0 %v743
        %v811 = vpop.f32.mrb[0].mxu0
        %v812 = vadd.f32 %v740, %v811
        %v813 = vpop.f32.mrb[0].mxu0
        %814 = vdwg.mxu0
        %v815 = vld [vmem:[%s4] sm:$0xff]
        %v816 = vadd.f32 %v812, %v815
        %v817 = vld [vmem:[%s6] sm:$0x1]
        %v818 = vld [vmem:[%s7] sm:$0x1]
        %vm819 = vcmask 261120
        %v820 = vsel %vm819, %v816, 0.0
        %821 = vadd.xlane.f32.xlu0 %v820
        %v822 = vpop.xlane.xlu0 %821
        %v823 = vrcp.pop 32.0
        %v824 = vmul.f32 %v822, %v823
        %v825 = vsub.f32 %v816, %v824
        %v826 = vmul.f32 %v825, %v825
        %v827 = vsel %vm819, %v826, 0.0
        %828 = vadd.xlane.f32.xlu0 %v827
        %v829 = vpop.xlane.xlu0 %828
        %v830 = vmul.f32 %v829, %v823
        %v831 = vadd.f32 %v830, 1e-12
        %v832 = vrsqrt.pop %v831
        %v833 = vmul.f32 %v825, %v832
        %v835 = vlaneseq
        %v836 = vshrl.u32 %v835, 7
        %v837 = vsub.s32 0, %v836
        %v838 = vrot.slane %v817, %v837
        %v840 = vmul.f32 %v833, %v838
        %v842 = vlaneseq
        %v843 = vshrl.u32 %v842, 7
        %v844 = vsub.s32 0, %v843
        %v845 = vrot.slane %v818, %v844
        %v847 = vadd.f32 %v840, %v845
        %v848 = vld [vmem:[%s632] sm:$0x1]
        %v849 = vcvt.s32.f32 %v848
        %v850 = vsub.f32 1.0, %v849
        %v851 = vmul.f32 %v850, -10000.0
        %v853 = vlaneseq
        %v854 = vshrl.u32 %v853, 7
        %v855 = vsub.s32 0, %v854
        %v856 = vrot.slane %v851, %v855
        %v858 = vpack.c.bf16 %v847, %v847
        %v859 = vld [vmem:[%s8] sm:$0xf]
        %v860 = vld [vmem:[%s8 + $0x4] sm:$0xf]
        %v861 = vld [vmem:[%s8 + $0x8] sm:$0xf]
        %v862 = vld [vmem:[%s8 + $0xc] sm:$0xf]
        %v863 = vld [vmem:[%s9] sm:$0x1]
        %v865 = vlaneseq
        %v866 = vshrl.u32 %v865, 7
        %v867 = vsub.s32 0, %v866
        %v868 = vrot.slane %v863, %v867
        %v874 = vunpack.c.l.b16 %v859
        %v875 = vunpack.c.l.b16 %v860
        %v876 = vunpack.c.l.b16 %v861
        %v877 = vunpack.c.l.b16 %v862
        %v878 = vpack.c.b16 %v875, %v874
        %v879 = vpack.c.b16 %v877, %v876
        %v883 = vsel %vm819, %v858, 0
        %885 = vmatprep.subr.bf16.mxu0 0
        %886 = vmatpush1.bf16.msra.mxu0 %v878
        %887 = vmatprep.subr.bf16.mxu0 0
        %888 = vmatpush1.bf16.msra.mxu0 %v879
        %889 = vmatprep.subr.bf16.mxu0 0
        %890 = vmatpush1.bf16.msra.mxu0 0
        %891 = vmatprep.subr.bf16.mxu0 0
        %892 = vmatpush1.bf16.msra.mxu0 0
        %893 = vmatprep.subr.bf16.mxu0 0
        %894 = vmatpush1.bf16.msra.mxu0 0
        %895 = vmatprep.subr.bf16.mxu0 0
        %896 = vmatpush1.bf16.msra.mxu0 0
        %897 = vmatprep.subr.bf16.mxu0 0
        %898 = vmatpush1.bf16.msra.mxu0 0
        %899 = vmatprep.subr.bf16.mxu0 0
        %900 = vmatpush1.bf16.msra.mxu0 0
        %901 = vmatprep.subr.bf16.mxu0 0
        %902 = vmatpush1.bf16.msra.mxu0 0
        %903 = vmatprep.subr.bf16.mxu0 0
        %904 = vmatpush1.bf16.msra.mxu0 0
        %905 = vmatprep.subr.bf16.mxu0 0
        %906 = vmatpush1.bf16.msra.mxu0 0
        %907 = vmatprep.subr.bf16.mxu0 0
        %908 = vmatpush1.bf16.msra.mxu0 0
        %909 = vmatprep.subr.bf16.mxu0 0
        %910 = vmatpush1.bf16.msra.mxu0 0
        %911 = vmatprep.subr.bf16.mxu0 0
        %912 = vmatpush1.bf16.msra.mxu0 0
        %913 = vmatprep.subr.bf16.mxu0 0
        %914 = vmatpush1.bf16.msra.mxu0 0
        %915 = vmatprep.subr.bf16.mxu0 0
        %916 = vmatpush1.bf16.msra.mxu0 0
        %917 = vmatprep.mubr.bf16.mxu0 0
        %918 = vmatmul.mubr.bf16.gmra.mrb[0].mxu0 %v883
        %v919 = vpop.f32.mrb[0].mxu0
        %v920 = vadd.f32 %v868, %v919
        %v921 = vpop.f32.mrb[0].mxu0
        %v922 = vpop.f32.mrb[0].mxu0
        %v923 = vpop.f32.mrb[0].mxu0
        %924 = vdwg.mxu0
        %v925 = vpack.c.bf16 %v920, %v920
        %927 = vrot.lane.b32.xlu0 %v925, 120
        %v928 = vpop.permute.xlu0 %927
        %929 = vrot.lane.b32.xlu0 %v925, 112
        %v930 = vpop.permute.xlu0 %929
        %931 = vrot.lane.b32.xlu0 %v925, 104
        %v932 = vpop.permute.xlu0 %931
        %933 = vrot.lane.b32.xlu0 %v925, 96
        %v934 = vpop.permute.xlu0 %933
        %vm935 = vcmask 64512
        %v937 = vsel %vm935, %v925, 0
        %v940 = vsel %vm935, %v934, 0
        %942 = vmatprep.subr.bf16.mxu0 0
        %943 = vmatpush1.bf16.xpose.msra.mxu0 %v940
        %944 = vmatprep.subr.bf16.mxu0 0
        %945 = vmatpush1.bf16.xpose.msra.mxu0 0
        %946 = vmatprep.subr.bf16.mxu0 0
        %947 = vmatpush1.bf16.xpose.msra.mxu0 0
        %948 = vmatprep.subr.bf16.mxu0 0
        %949 = vmatpush1.bf16.xpose.msra.mxu0 0
        %950 = vmatprep.subr.bf16.mxu0 0
        %951 = vmatpush1.bf16.xpose.msra.mxu0 0
        %952 = vmatprep.subr.bf16.mxu0 0
        %953 = vmatpush1.bf16.xpose.msra.mxu0 0
        %954 = vmatprep.subr.bf16.mxu0 0
        %955 = vmatpush1.bf16.xpose.msra.mxu0 0
        %956 = vmatprep.subr.bf16.mxu0 0
        %957 = vmatpush1.bf16.xpose.msra.mxu0 0
        %958 = vmatprep.subr.bf16.mxu0 0
        %959 = vmatpush1.bf16.xpose.msra.mxu0 0
        %960 = vmatprep.subr.bf16.mxu0 0
        %961 = vmatpush1.bf16.xpose.msra.mxu0 0
        %962 = vmatprep.subr.bf16.mxu0 0
        %963 = vmatpush1.bf16.xpose.msra.mxu0 0
        %964 = vmatprep.subr.bf16.mxu0 0
        %965 = vmatpush1.bf16.xpose.msra.mxu0 0
        %966 = vmatprep.subr.bf16.mxu0 0
        %967 = vmatpush1.bf16.xpose.msra.mxu0 0
        %968 = vmatprep.subr.bf16.mxu0 0
        %969 = vmatpush1.bf16.xpose.msra.mxu0 0
        %970 = vmatprep.subr.bf16.mxu0 0
        %971 = vmatpush1.bf16.xpose.msra.mxu0 0
        %972 = vmatprep.subr.bf16.mxu0 0
        %973 = vmatpush1.bf16.xpose.msra.mxu0 0
        %974 = vmatprep.mubr.bf16.mxu0 0
        %975 = vmatmul.mubr.bf16.gmra.mrb[0].mxu0 %v937
        %v976 = vpop.f32.mrb[0].mxu0
        %v977 = vadd.f32 %v856, %v976
        %v978 = vpop.f32.mrb[0].mxu0
        %v979 = vpop.f32.mrb[0].mxu0
        %v980 = vpop.f32.mrb[0].mxu0
        %981 = vdwg.mxu0
        %982 = vrot.lane.b32.xlu0 %v928, 96
        %v983 = vpop.permute.xlu0 %982
        %v985 = vsel %vm935, %v928, 0
        %v988 = vsel %vm935, %v983, 0
        %990 = vmatprep.subr.bf16.mxu0 0
        %991 = vmatpush1.bf16.xpose.msra.mxu0 %v988
        %992 = vmatprep.subr.bf16.mxu0 0
        %993 = vmatpush1.bf16.xpose.msra.mxu0 0
        %994 = vmatprep.subr.bf16.mxu0 0
        %995 = vmatpush1.bf16.xpose.msra.mxu0 0
        %996 = vmatprep.subr.bf16.mxu0 0
        %997 = vmatpush1.bf16.xpose.msra.mxu0 0
        %998 = vmatprep.subr.bf16.mxu0 0
        %999 = vmatpush1.bf16.xpose.msra.mxu0 0
        %1000 = vmatprep.subr.bf16.mxu0 0
        %1001 = vmatpush1.bf16.xpose.msra.mxu0 0
        %1002 = vmatprep.subr.bf16.mxu0 0
        %1003 = vmatpush1.bf16.xpose.msra.mxu0 0
        %1004 = vmatprep.subr.bf16.mxu0 0
        %1005 = vmatpush1.bf16.xpose.msra.mxu0 0
        %1006 = vmatprep.subr.bf16.mxu0 0
        %1007 = vmatpush1.bf16.xpose.msra.mxu0 0
        %1008 = vmatprep.subr.bf16.mxu0 0
        %1009 = vmatpush1.bf16.xpose.msra.mxu0 0
        %1010 = vmatprep.subr.bf16.mxu0 0
        %1011 = vmatpush1.bf16.xpose.msra.mxu0 0
        %1012 = vmatprep.subr.bf16.mxu0 0
        %1013 = vmatpush1.bf16.xpose.msra.mxu0 0
        %1014 = vmatprep.subr.bf16.mxu0 0
        %1015 = vmatpush1.bf16.xpose.msra.mxu0 0
        %1016 = vmatprep.subr.bf16.mxu0 0
        %1017 = vmatpush1.bf16.xpose.msra.mxu0 0
        %1018 = vmatprep.subr.bf16.mxu0 0
        %1019 = vmatpush1.bf16.xpose.msra.mxu0 0
        %1020 = vmatprep.subr.bf16.mxu0 0
        %1021 = vmatpush1.bf16.xpose.msra.mxu0 0
        %1022 = vmatprep.mubr.bf16.mxu0 0
        %1023 = vmatmul.mubr.bf16.gmra.mrb[0].mxu0 %v985
        %v1024 = vpop.f32.mrb[0].mxu0
        %v1025 = vadd.f32 %v856, %v1024
        %v1026 = vpop.f32.mrb[0].mxu0
        %v1027 = vpop.f32.mrb[0].mxu0
        %v1028 = vpop.f32.mrb[0].mxu0
        %1029 = vdwg.mxu0
        %1030 = vrot.lane.b32.xlu0 %v930, 96
        %v1031 = vpop.permute.xlu0 %1030
        %v1033 = vsel %vm935, %v930, 0
        %v1036 = vsel %vm935, %v1031, 0
        %1038 = vmatprep.subr.bf16.mxu0 0
        %1039 = vmatpush1.bf16.xpose.msra.mxu0 %v1036
        %1040 = vmatprep.subr.bf16.mxu0 0
        %1041 = vmatpush1.bf16.xpose.msra.mxu0 0
        %1042 = vmatprep.subr.bf16.mxu0 0
        %1043 = vmatpush1.bf16.xpose.msra.mxu0 0
        %1044 = vmatprep.subr.bf16.mxu0 0
        %1045 = vmatpush1.bf16.xpose.msra.mxu0 0
        %1046 = vmatprep.subr.bf16.mxu0 0
        %1047 = vmatpush1.bf16.xpose.msra.mxu0 0
        %1048 = vmatprep.subr.bf16.mxu0 0
        %1049 = vmatpush1.bf16.xpose.msra.mxu0 0
        %1050 = vmatprep.subr.bf16.mxu0 0
        %1051 = vmatpush1.bf16.xpose.msra.mxu0 0
        %1052 = vmatprep.subr.bf16.mxu0 0
        %1053 = vmatpush1.bf16.xpose.msra.mxu0 0
        %1054 = vmatprep.subr.bf16.mxu0 0
        %1055 = vmatpush1.bf16.xpose.msra.mxu0 0
        %1056 = vmatprep.subr.bf16.mxu0 0
        %1057 = vmatpush1.bf16.xpose.msra.mxu0 0
        %1058 = vmatprep.subr.bf16.mxu0 0
        %1059 = vmatpush1.bf16.xpose.msra.mxu0 0
        %1060 = vmatprep.subr.bf16.mxu0 0
        %1061 = vmatpush1.bf16.xpose.msra.mxu0 0
        %1062 = vmatprep.subr.bf16.mxu0 0
        %1063 = vmatpush1.bf16.xpose.msra.mxu0 0
        %1064 = vmatprep.subr.bf16.mxu0 0
        %1065 = vmatpush1.bf16.xpose.msra.mxu0 0
        %1066 = vmatprep.subr.bf16.mxu0 0
        %1067 = vmatpush1.bf16.xpose.msra.mxu0 0
        %1068 = vmatprep.subr.bf16.mxu0 0
        %1069 = vmatpush1.bf16.xpose.msra.mxu0 0
        %1070 = vmatprep.mubr.bf16.mxu0 0
        %1071 = vmatmul.mubr.bf16.gmra.mrb[0].mxu0 %v1033
        %v1072 = vpop.f32.mrb[0].mxu0
        %v1073 = vadd.f32 %v856, %v1072
        %v1074 = vpop.f32.mrb[0].mxu0
        %v1075 = vpop.f32.mrb[0].mxu0
        %v1076 = vpop.f32.mrb[0].mxu0
        %1077 = vdwg.mxu0
        %1078 = vrot.lane.b32.xlu0 %v932, 96
        %v1079 = vpop.permute.xlu0 %1078
        %v1081 = vsel %vm935, %v932, 0
        %v1084 = vsel %vm935, %v1079, 0
        %1086 = vmatprep.subr.bf16.mxu0 0
        %1087 = vmatpush1.bf16.xpose.msra.mxu0 %v1084
        %1088 = vmatprep.subr.bf16.mxu0 0
        %1089 = vmatpush1.bf16.xpose.msra.mxu0 0
        %1090 = vmatprep.subr.bf16.mxu0 0
        %1091 = vmatpush1.bf16.xpose.msra.mxu0 0
        %1092 = vmatprep.subr.bf16.mxu0 0
        %1093 = vmatpush1.bf16.xpose.msra.mxu0 0
        %1094 = vmatprep.subr.bf16.mxu0 0
        %1095 = vmatpush1.bf16.xpose.msra.mxu0 0
        %1096 = vmatprep.subr.bf16.mxu0 0
        %1097 = vmatpush1.bf16.xpose.msra.mxu0 0
        %1098 = vmatprep.subr.bf16.mxu0 0
        %1099 = vmatpush1.bf16.xpose.msra.mxu0 0
        %1100 = vmatprep.subr.bf16.mxu0 0
        %1101 = vmatpush1.bf16.xpose.msra.mxu0 0
        %1102 = vmatprep.subr.bf16.mxu0 0
        %1103 = vmatpush1.bf16.xpose.msra.mxu0 0
        %1104 = vmatprep.subr.bf16.mxu0 0
        %1105 = vmatpush1.bf16.xpose.msra.mxu0 0
        %1106 = vmatprep.subr.bf16.mxu0 0
        %1107 = vmatpush1.bf16.xpose.msra.mxu0 0
        %1108 = vmatprep.subr.bf16.mxu0 0
        %1109 = vmatpush1.bf16.xpose.msra.mxu0 0
        %1110 = vmatprep.subr.bf16.mxu0 0
        %1111 = vmatpush1.bf16.xpose.msra.mxu0 0
        %1112 = vmatprep.subr.bf16.mxu0 0
        %1113 = vmatpush1.bf16.xpose.msra.mxu0 0
        %1114 = vmatprep.subr.bf16.mxu0 0
        %1115 = vmatpush1.bf16.xpose.msra.mxu0 0
        %1116 = vmatprep.subr.bf16.mxu0 0
        %1117 = vmatpush1.bf16.xpose.msra.mxu0 0
        %1118 = vmatprep.mubr.bf16.mxu0 0
        %1119 = vmatmul.mubr.bf16.gmra.mrb[0].mxu0 %v1081
        %v1120 = vpop.f32.mrb[0].mxu0
        %v1121 = vadd.f32 %v856, %v1120
        %v1122 = vpop.f32.mrb[0].mxu0
        %v1123 = vpop.f32.mrb[0].mxu0
        %v1124 = vpop.f32.mrb[0].mxu0
        %1125 = vdwg.mxu0
        %v1126 = vsel %vm935, %v977, -inf
        %1127 = vmax.xlane.f32.xlu0 %v1126
        %v1128 = vpop.xlane.xlu0 %1127
        %v1129 = vsel %vm935, %v1025, -inf
        %1130 = vmax.xlane.f32.xlu0 %v1129
        %v1131 = vpop.xlane.xlu0 %1130
        %v1132 = vsel %vm935, %v1073, -inf
        %1133 = vmax.xlane.f32.xlu0 %v1132
        %v1134 = vpop.xlane.xlu0 %1133
        %v1135 = vsel %vm935, %v1121, -inf
        %1136 = vmax.xlane.f32.xlu0 %v1135
        %v1137 = vpop.xlane.xlu0 %1136
        %v1138 = vsub.f32 %v977, %v1128
        %v1139 = vsub.f32 %v1025, %v1131
        %v1140 = vsub.f32 %v1073, %v1134
        %v1141 = vsub.f32 %v1121, %v1137
        %v1142 = vmul.f32 %v1138, 1.442695
        %v1143 = vpow.pop %v1142
        %v1144 = vmul.f32 %v1139, 1.442695
        %v1145 = vpow.pop %v1144
        %v1146 = vmul.f32 %v1140, 1.442695
        %v1147 = vpow.pop %v1146
        %v1148 = vmul.f32 %v1141, 1.442695
        %v1149 = vpow.pop %v1148
        %v1150 = vsel %vm935, %v1143, 0.0
        %1151 = vadd.xlane.f32.xlu0 %v1150
        %v1152 = vpop.xlane.xlu0 %1151
        %v1153 = vsel %vm935, %v1145, 0.0
        %1154 = vadd.xlane.f32.xlu0 %v1153
        %v1155 = vpop.xlane.xlu0 %1154
        %v1156 = vsel %vm935, %v1147, 0.0
        %1157 = vadd.xlane.f32.xlu0 %v1156
        %v1158 = vpop.xlane.xlu0 %1157
        %v1159 = vsel %vm935, %v1149, 0.0
        %1160 = vadd.xlane.f32.xlu0 %v1159
        %v1161 = vpop.xlane.xlu0 %1160
        %v1162 = vrcp.pop %v1152
        %v1163 = vrcp.pop %v1155
        %v1164 = vrcp.pop %v1158
        %v1165 = vrcp.pop %v1161
        %v1166 = vmul.f32 %v1143, %v1162
        %v1167 = vmul.f32 %v1145, %v1163
        %v1168 = vmul.f32 %v1147, %v1164
        %v1169 = vmul.f32 %v1149, %v1165
        %v1170 = vpack.c.bf16 %v1166, %v1166
        %v1171 = vpack.c.bf16 %v1167, %v1167
        %v1172 = vpack.c.bf16 %v1168, %v1168
        %v1173 = vpack.c.bf16 %v1169, %v1169
        %1174 = vrot.lane.b32.xlu0 %v925, 64
        %v1175 = vpop.permute.xlu0 %1174
        %v1177 = vsel %vm935, %v1170, 0
        %v1180 = vsel %vm664, %v1175, 0
        %1182 = vmatprep.subr.bf16.mxu0 0
        %1183 = vmatpush1.bf16.msra.mxu0 %v1180
        %1184 = vmatprep.subr.bf16.mxu0 0
        %1185 = vmatpush1.bf16.msra.mxu0 0
        %1186 = vmatprep.subr.bf16.mxu0 0
        %1187 = vmatpush1.bf16.msra.mxu0 0
        %1188 = vmatprep.subr.bf16.mxu0 0
        %1189 = vmatpush1.bf16.msra.mxu0 0
        %1190 = vmatprep.subr.bf16.mxu0 0
        %1191 = vmatpush1.bf16.msra.mxu0 0
        %1192 = vmatprep.subr.bf16.mxu0 0
        %1193 = vmatpush1.bf16.msra.mxu0 0
        %1194 = vmatprep.subr.bf16.mxu0 0
        %1195 = vmatpush1.bf16.msra.mxu0 0
        %1196 = vmatprep.subr.bf16.mxu0 0
        %1197 = vmatpush1.bf16.msra.mxu0 0
        %1198 = vmatprep.subr.bf16.mxu0 0
        %1199 = vmatpush1.bf16.msra.mxu0 0
        %1200 = vmatprep.subr.bf16.mxu0 0
        %1201 = vmatpush1.bf16.msra.mxu0 0
        %1202 = vmatprep.subr.bf16.mxu0 0
        %1203 = vmatpush1.bf16.msra.mxu0 0
        %1204 = vmatprep.subr.bf16.mxu0 0
        %1205 = vmatpush1.bf16.msra.mxu0 0
        %1206 = vmatprep.subr.bf16.mxu0 0
        %1207 = vmatpush1.bf16.msra.mxu0 0
        %1208 = vmatprep.subr.bf16.mxu0 0
        %1209 = vmatpush1.bf16.msra.mxu0 0
        %1210 = vmatprep.subr.bf16.mxu0 0
        %1211 = vmatpush1.bf16.msra.mxu0 0
        %1212 = vmatprep.subr.bf16.mxu0 0
        %1213 = vmatpush1.bf16.msra.mxu0 0
        %1214 = vmatprep.mubr.bf16.mxu0 0
        %1215 = vmatmul.mubr.bf16.gmra.mrb[0].mxu0 %v1177
        %v1216 = vpop.f32.mrb[0].mxu0
        %v1217 = vadd.f32 0.0, %v1216
        %v1218 = vpop.f32.mrb[0].mxu0
        %v1219 = vpop.f32.mrb[0].mxu0
        %v1220 = vpop.f32.mrb[0].mxu0
        %1221 = vdwg.mxu0
        %1222 = vrot.lane.b32.xlu0 %v928, 64
        %v1223 = vpop.permute.xlu0 %1222
        %v1225 = vsel %vm935, %v1171, 0
        %v1228 = vsel %vm664, %v1223, 0
        %1230 = vmatprep.subr.bf16.mxu0 0
        %1231 = vmatpush1.bf16.msra.mxu0 %v1228
        %1232 = vmatprep.subr.bf16.mxu0 0
        %1233 = vmatpush1.bf16.msra.mxu0 0
        %1234 = vmatprep.subr.bf16.mxu0 0
        %1235 = vmatpush1.bf16.msra.mxu0 0
        %1236 = vmatprep.subr.bf16.mxu0 0
        %1237 = vmatpush1.bf16.msra.mxu0 0
        %1238 = vmatprep.subr.bf16.mxu0 0
        %1239 = vmatpush1.bf16.msra.mxu0 0
        %1240 = vmatprep.subr.bf16.mxu0 0
        %1241 = vmatpush1.bf16.msra.mxu0 0
        %1242 = vmatprep.subr.bf16.mxu0 0
        %1243 = vmatpush1.bf16.msra.mxu0 0
        %1244 = vmatprep.subr.bf16.mxu0 0
        %1245 = vmatpush1.bf16.msra.mxu0 0
        %1246 = vmatprep.subr.bf16.mxu0 0
        %1247 = vmatpush1.bf16.msra.mxu0 0
        %1248 = vmatprep.subr.bf16.mxu0 0
        %1249 = vmatpush1.bf16.msra.mxu0 0
        %1250 = vmatprep.subr.bf16.mxu0 0
        %1251 = vmatpush1.bf16.msra.mxu0 0
        %1252 = vmatprep.subr.bf16.mxu0 0
        %1253 = vmatpush1.bf16.msra.mxu0 0
        %1254 = vmatprep.subr.bf16.mxu0 0
        %1255 = vmatpush1.bf16.msra.mxu0 0
        %1256 = vmatprep.subr.bf16.mxu0 0
        %1257 = vmatpush1.bf16.msra.mxu0 0
        %1258 = vmatprep.subr.bf16.mxu0 0
        %1259 = vmatpush1.bf16.msra.mxu0 0
        %1260 = vmatprep.subr.bf16.mxu0 0
        %1261 = vmatpush1.bf16.msra.mxu0 0
        %1262 = vmatprep.mubr.bf16.mxu0 0
        %1263 = vmatmul.mubr.bf16.gmra.mrb[0].mxu0 %v1225
        %v1264 = vpop.f32.mrb[0].mxu0
        %v1265 = vadd.f32 0.0, %v1264
        %v1266 = vpop.f32.mrb[0].mxu0
        %v1267 = vpop.f32.mrb[0].mxu0
        %v1268 = vpop.f32.mrb[0].mxu0
        %1269 = vdwg.mxu0
        %1270 = vrot.lane.b32.xlu0 %v930, 64
        %v1271 = vpop.permute.xlu0 %1270
        %v1273 = vsel %vm935, %v1172, 0
        %v1276 = vsel %vm664, %v1271, 0
        %1278 = vmatprep.subr.bf16.mxu0 0
        %1279 = vmatpush1.bf16.msra.mxu0 %v1276
        %1280 = vmatprep.subr.bf16.mxu0 0
        %1281 = vmatpush1.bf16.msra.mxu0 0
        %1282 = vmatprep.subr.bf16.mxu0 0
        %1283 = vmatpush1.bf16.msra.mxu0 0
        %1284 = vmatprep.subr.bf16.mxu0 0
        %1285 = vmatpush1.bf16.msra.mxu0 0
        %1286 = vmatprep.subr.bf16.mxu0 0
        %1287 = vmatpush1.bf16.msra.mxu0 0
        %1288 = vmatprep.subr.bf16.mxu0 0
        %1289 = vmatpush1.bf16.msra.mxu0 0
        %1290 = vmatprep.subr.bf16.mxu0 0
        %1291 = vmatpush1.bf16.msra.mxu0 0
        %1292 = vmatprep.subr.bf16.mxu0 0
        %1293 = vmatpush1.bf16.msra.mxu0 0
        %1294 = vmatprep.subr.bf16.mxu0 0
        %1295 = vmatpush1.bf16.msra.mxu0 0
        %1296 = vmatprep.subr.bf16.mxu0 0
        %1297 = vmatpush1.bf16.msra.mxu0 0
        %1298 = vmatprep.subr.bf16.mxu0 0
        %1299 = vmatpush1.bf16.msra.mxu0 0
        %1300 = vmatprep.subr.bf16.mxu0 0
        %1301 = vmatpush1.bf16.msra.mxu0 0
        %1302 = vmatprep.subr.bf16.mxu0 0
        %1303 = vmatpush1.bf16.msra.mxu0 0
        %1304 = vmatprep.subr.bf16.mxu0 0
        %1305 = vmatpush1.bf16.msra.mxu0 0
        %1306 = vmatprep.subr.bf16.mxu0 0
        %1307 = vmatpush1.bf16.msra.mxu0 0
        %1308 = vmatprep.subr.bf16.mxu0 0
        %1309 = vmatpush1.bf16.msra.mxu0 0
        %1310 = vmatprep.mubr.bf16.mxu0 0
        %1311 = vmatmul.mubr.bf16.gmra.mrb[0].mxu0 %v1273
        %v1312 = vpop.f32.mrb[0].mxu0
        %v1313 = vadd.f32 0.0, %v1312
        %v1314 = vpop.f32.mrb[0].mxu0
        %v1315 = vpop.f32.mrb[0].mxu0
        %v1316 = vpop.f32.mrb[0].mxu0
        %1317 = vdwg.mxu0
        %1318 = vrot.lane.b32.xlu0 %v932, 64
        %v1319 = vpop.permute.xlu0 %1318
        %v1321 = vsel %vm935, %v1173, 0
        %v1324 = vsel %vm664, %v1319, 0
        %1326 = vmatprep.subr.bf16.mxu0 0
        %1327 = vmatpush1.bf16.msra.mxu0 %v1324
        %1328 = vmatprep.subr.bf16.mxu0 0
        %1329 = vmatpush1.bf16.msra.mxu0 0
        %1330 = vmatprep.subr.bf16.mxu0 0
        %1331 = vmatpush1.bf16.msra.mxu0 0
        %1332 = vmatprep.subr.bf16.mxu0 0
        %1333 = vmatpush1.bf16.msra.mxu0 0
        %1334 = vmatprep.subr.bf16.mxu0 0
        %1335 = vmatpush1.bf16.msra.mxu0 0
        %1336 = vmatprep.subr.bf16.mxu0 0
        %1337 = vmatpush1.bf16.msra.mxu0 0
        %1338 = vmatprep.subr.bf16.mxu0 0
        %1339 = vmatpush1.bf16.msra.mxu0 0
        %1340 = vmatprep.subr.bf16.mxu0 0
        %1341 = vmatpush1.bf16.msra.mxu0 0
        %1342 = vmatprep.subr.bf16.mxu0 0
        %1343 = vmatpush1.bf16.msra.mxu0 0
        %1344 = vmatprep.subr.bf16.mxu0 0
        %1345 = vmatpush1.bf16.msra.mxu0 0
        %1346 = vmatprep.subr.bf16.mxu0 0
        %1347 = vmatpush1.bf16.msra.mxu0 0
        %1348 = vmatprep.subr.bf16.mxu0 0
        %1349 = vmatpush1.bf16.msra.mxu0 0
        %1350 = vmatprep.subr.bf16.mxu0 0
        %1351 = vmatpush1.bf16.msra.mxu0 0
        %1352 = vmatprep.subr.bf16.mxu0 0
        %1353 = vmatpush1.bf16.msra.mxu0 0
        %1354 = vmatprep.subr.bf16.mxu0 0
        %1355 = vmatpush1.bf16.msra.mxu0 0
        %1356 = vmatprep.subr.bf16.mxu0 0
        %1357 = vmatpush1.bf16.msra.mxu0 0
        %1358 = vmatprep.mubr.bf16.mxu0 0
        %1359 = vmatmul.mubr.bf16.gmra.mrb[0].mxu0 %v1321
        %v1360 = vpop.f32.mrb[0].mxu0
        %v1361 = vadd.f32 0.0, %v1360
        %v1362 = vpop.f32.mrb[0].mxu0
        %v1363 = vpop.f32.mrb[0].mxu0
        %v1364 = vpop.f32.mrb[0].mxu0
        %1365 = vdwg.mxu0
        %v1366 = vpack.c.bf16 %v1217, %v1217
        %v1367 = vpack.c.bf16 %v1265, %v1265
        %v1368 = vpack.c.bf16 %v1313, %v1313
        %v1369 = vpack.c.bf16 %v1361, %v1361
        %v1370 = vld [vmem:[%s10] sm:$0xf]
        %v1371 = vld [vmem:[%s10 + $0x4] sm:$0xf]
        %v1372 = vld [vmem:[%s10 + $0x8] sm:$0xf]
        %v1373 = vld [vmem:[%s10 + $0xc] sm:$0xf]
        %v1375 = vsel %vm935, %v1366, 0
        %v1378 = vsel %vm664, %v1370, 0
        %1380 = vmatprep.subr.bf16.mxu0 0
        %1381 = vmatpush1.bf16.msra.mxu0 %v1378
        %1382 = vmatprep.subr.bf16.mxu0 0
        %1383 = vmatpush1.bf16.msra.mxu0 0
        %1384 = vmatprep.subr.bf16.mxu0 0
        %1385 = vmatpush1.bf16.msra.mxu0 0
        %1386 = vmatprep.subr.bf16.mxu0 0
        %1387 = vmatpush1.bf16.msra.mxu0 0
        %1388 = vmatprep.subr.bf16.mxu0 0
        %1389 = vmatpush1.bf16.msra.mxu0 0
        %1390 = vmatprep.subr.bf16.mxu0 0
        %1391 = vmatpush1.bf16.msra.mxu0 0
        %1392 = vmatprep.subr.bf16.mxu0 0
        %1393 = vmatpush1.bf16.msra.mxu0 0
        %1394 = vmatprep.subr.bf16.mxu0 0
        %1395 = vmatpush1.bf16.msra.mxu0 0
        %1396 = vmatprep.subr.bf16.mxu0 0
        %1397 = vmatpush1.bf16.msra.mxu0 0
        %1398 = vmatprep.subr.bf16.mxu0 0
        %1399 = vmatpush1.bf16.msra.mxu0 0
        %1400 = vmatprep.subr.bf16.mxu0 0
        %1401 = vmatpush1.bf16.msra.mxu0 0
        %1402 = vmatprep.subr.bf16.mxu0 0
        %1403 = vmatpush1.bf16.msra.mxu0 0
        %1404 = vmatprep.subr.bf16.mxu0 0
        %1405 = vmatpush1.bf16.msra.mxu0 0
        %1406 = vmatprep.subr.bf16.mxu0 0
        %1407 = vmatpush1.bf16.msra.mxu0 0
        %1408 = vmatprep.subr.bf16.mxu0 0
        %1409 = vmatpush1.bf16.msra.mxu0 0
        %1410 = vmatprep.subr.bf16.mxu0 0
        %1411 = vmatpush1.bf16.msra.mxu0 0
        %1412 = vmatprep.mubr.bf16.mxu0 0
        %1413 = vmatmul.mubr.bf16.gmra.mrb[0].mxu0 %v1375
        %v1414 = vpop.f32.mrb[0].mxu0
        %v1415 = vadd.f32 0.0, %v1414
        %v1416 = vpop.f32.mrb[0].mxu0
        %v1417 = vpop.f32.mrb[0].mxu0
        %v1418 = vpop.f32.mrb[0].mxu0
        %1419 = vdwg.mxu0
        %v1421 = vsel %vm935, %v1367, 0
        %v1424 = vsel %vm664, %v1371, 0
        %1426 = vmatprep.subr.bf16.mxu0 0
        %1427 = vmatpush1.bf16.msra.mxu0 %v1424
        %1428 = vmatprep.subr.bf16.mxu0 0
        %1429 = vmatpush1.bf16.msra.mxu0 0
        %1430 = vmatprep.subr.bf16.mxu0 0
        %1431 = vmatpush1.bf16.msra.mxu0 0
        %1432 = vmatprep.subr.bf16.mxu0 0
        %1433 = vmatpush1.bf16.msra.mxu0 0
        %1434 = vmatprep.subr.bf16.mxu0 0
        %1435 = vmatpush1.bf16.msra.mxu0 0
        %1436 = vmatprep.subr.bf16.mxu0 0
        %1437 = vmatpush1.bf16.msra.mxu0 0
        %1438 = vmatprep.subr.bf16.mxu0 0
        %1439 = vmatpush1.bf16.msra.mxu0 0
        %1440 = vmatprep.subr.bf16.mxu0 0
        %1441 = vmatpush1.bf16.msra.mxu0 0
        %1442 = vmatprep.subr.bf16.mxu0 0
        %1443 = vmatpush1.bf16.msra.mxu0 0
        %1444 = vmatprep.subr.bf16.mxu0 0
        %1445 = vmatpush1.bf16.msra.mxu0 0
        %1446 = vmatprep.subr.bf16.mxu0 0
        %1447 = vmatpush1.bf16.msra.mxu0 0
        %1448 = vmatprep.subr.bf16.mxu0 0
        %1449 = vmatpush1.bf16.msra.mxu0 0
        %1450 = vmatprep.subr.bf16.mxu0 0
        %1451 = vmatpush1.bf16.msra.mxu0 0
        %1452 = vmatprep.subr.bf16.mxu0 0
        %1453 = vmatpush1.bf16.msra.mxu0 0
        %1454 = vmatprep.subr.bf16.mxu0 0
        %1455 = vmatpush1.bf16.msra.mxu0 0
        %1456 = vmatprep.subr.bf16.mxu0 0
        %1457 = vmatpush1.bf16.msra.mxu0 0
        %1458 = vmatprep.mubr.bf16.mxu0 0
        %1459 = vmatmul.mubr.bf16.gmra.mrb[0].mxu0 %v1421
        %v1460 = vpop.f32.mrb[0].mxu0
        %v1461 = vadd.f32 0.0, %v1460
        %v1462 = vpop.f32.mrb[0].mxu0
        %v1463 = vpop.f32.mrb[0].mxu0
        %v1464 = vpop.f32.mrb[0].mxu0
        %1465 = vdwg.mxu0
        %v1467 = vsel %vm935, %v1368, 0
        %v1470 = vsel %vm664, %v1372, 0
        %1472 = vmatprep.subr.bf16.mxu0 0
        %1473 = vmatpush1.bf16.msra.mxu0 %v1470
        %1474 = vmatprep.subr.bf16.mxu0 0
        %1475 = vmatpush1.bf16.msra.mxu0 0
        %1476 = vmatprep.subr.bf16.mxu0 0
        %1477 = vmatpush1.bf16.msra.mxu0 0
        %1478 = vmatprep.subr.bf16.mxu0 0
        %1479 = vmatpush1.bf16.msra.mxu0 0
        %1480 = vmatprep.subr.bf16.mxu0 0
        %1481 = vmatpush1.bf16.msra.mxu0 0
        %1482 = vmatprep.subr.bf16.mxu0 0
        %1483 = vmatpush1.bf16.msra.mxu0 0
        %1484 = vmatprep.subr.bf16.mxu0 0
        %1485 = vmatpush1.bf16.msra.mxu0 0
        %1486 = vmatprep.subr.bf16.mxu0 0
        %1487 = vmatpush1.bf16.msra.mxu0 0
        %1488 = vmatprep.subr.bf16.mxu0 0
        %1489 = vmatpush1.bf16.msra.mxu0 0
        %1490 = vmatprep.subr.bf16.mxu0 0
        %1491 = vmatpush1.bf16.msra.mxu0 0
        %1492 = vmatprep.subr.bf16.mxu0 0
        %1493 = vmatpush1.bf16.msra.mxu0 0
        %1494 = vmatprep.subr.bf16.mxu0 0
        %1495 = vmatpush1.bf16.msra.mxu0 0
        %1496 = vmatprep.subr.bf16.mxu0 0
        %1497 = vmatpush1.bf16.msra.mxu0 0
        %1498 = vmatprep.subr.bf16.mxu0 0
        %1499 = vmatpush1.bf16.msra.mxu0 0
        %1500 = vmatprep.subr.bf16.mxu0 0
        %1501 = vmatpush1.bf16.msra.mxu0 0
        %1502 = vmatprep.subr.bf16.mxu0 0
        %1503 = vmatpush1.bf16.msra.mxu0 0
        %1504 = vmatprep.mubr.bf16.mxu0 0
        %1505 = vmatmul.mubr.bf16.gmra.mrb[0].mxu0 %v1467
        %v1506 = vpop.f32.mrb[0].mxu0
        %v1507 = vadd.f32 0.0, %v1506
        %v1508 = vpop.f32.mrb[0].mxu0
        %v1509 = vpop.f32.mrb[0].mxu0
        %v1510 = vpop.f32.mrb[0].mxu0
        %1511 = vdwg.mxu0
        %v1513 = vsel %vm935, %v1369, 0
        %v1516 = vsel %vm664, %v1373, 0
        %1518 = vmatprep.subr.bf16.mxu0 0
        %1519 = vmatpush1.bf16.msra.mxu0 %v1516
        %1520 = vmatprep.subr.bf16.mxu0 0
        %1521 = vmatpush1.bf16.msra.mxu0 0
        %1522 = vmatprep.subr.bf16.mxu0 0
        %1523 = vmatpush1.bf16.msra.mxu0 0
        %1524 = vmatprep.subr.bf16.mxu0 0
        %1525 = vmatpush1.bf16.msra.mxu0 0
        %1526 = vmatprep.subr.bf16.mxu0 0
        %1527 = vmatpush1.bf16.msra.mxu0 0
        %1528 = vmatprep.subr.bf16.mxu0 0
        %1529 = vmatpush1.bf16.msra.mxu0 0
        %1530 = vmatprep.subr.bf16.mxu0 0
        %1531 = vmatpush1.bf16.msra.mxu0 0
        %1532 = vmatprep.subr.bf16.mxu0 0
        %1533 = vmatpush1.bf16.msra.mxu0 0
        %1534 = vmatprep.subr.bf16.mxu0 0
        %1535 = vmatpush1.bf16.msra.mxu0 0
        %1536 = vmatprep.subr.bf16.mxu0 0
        %1537 = vmatpush1.bf16.msra.mxu0 0
        %1538 = vmatprep.subr.bf16.mxu0 0
        %1539 = vmatpush1.bf16.msra.mxu0 0
        %1540 = vmatprep.subr.bf16.mxu0 0
        %1541 = vmatpush1.bf16.msra.mxu0 0
        %1542 = vmatprep.subr.bf16.mxu0 0
        %1543 = vmatpush1.bf16.msra.mxu0 0
        %1544 = vmatprep.subr.bf16.mxu0 0
        %1545 = vmatpush1.bf16.msra.mxu0 0
        %1546 = vmatprep.subr.bf16.mxu0 0
        %1547 = vmatpush1.bf16.msra.mxu0 0
        %1548 = vmatprep.subr.bf16.mxu0 0
        %1549 = vmatpush1.bf16.msra.mxu0 0
        %1550 = vmatprep.mubr.bf16.mxu0 0
        %1551 = vmatmul.mubr.bf16.gmra.mrb[0].mxu0 %v1513
        %v1552 = vpop.f32.mrb[0].mxu0
        %v1553 = vadd.f32 0.0, %v1552
        %v1554 = vpop.f32.mrb[0].mxu0
        %v1555 = vpop.f32.mrb[0].mxu0
        %v1556 = vpop.f32.mrb[0].mxu0
        %1557 = vdwg.mxu0
        %v1558 = vsel %vm819, %v1415, 0.0
        %v1559 = vsel %vm819, %v1461, 0.0
        %v1560 = vadd.f32 %v1558, %v1559
        %v1561 = vsel %vm819, %v1507, 0.0
        %v1562 = vadd.f32 %v1560, %v1561
        %v1563 = vsel %vm819, %v1553, 0.0
        %v1564 = vadd.f32 %v1562, %v1563
        %v1565 = vld [vmem:[%s11] sm:$0x1]
        %v1567 = vlaneseq
        %v1568 = vshrl.u32 %v1567, 7
        %v1569 = vsub.s32 0, %v1568
        %v1570 = vrot.slane %v1565, %v1569
        %v1572 = vadd.f32 %v1564, %v1570
        %v1573 = vadd.f32 %v1572, %v847
        %v1574 = vld [vmem:[%s12] sm:$0x1]
        %v1575 = vld [vmem:[%s13] sm:$0x1]
        %v1576 = vsel %vm819, %v1573, 0.0
        %1577 = vadd.xlane.f32.xlu0 %v1576
        %v1578 = vpop.xlane.xlu0 %1577
        %v1579 = vmul.f32 %v1578, %v823
        %v1580 = vsub.f32 %v1573, %v1579
        %v1581 = vmul.f32 %v1580, %v1580
        %v1582 = vsel %vm819, %v1581, 0.0
        %1583 = vadd.xlane.f32.xlu0 %v1582
        %v1584 = vpop.xlane.xlu0 %1583
        %v1585 = vmul.f32 %v1584, %v823
        %v1586 = vadd.f32 %v1585, 1e-12
        %v1587 = vrsqrt.pop %v1586
        %v1588 = vmul.f32 %v1580, %v1587
        %v1590 = vlaneseq
        %v1591 = vshrl.u32 %v1590, 7
        %v1592 = vsub.s32 0, %v1591
        %v1593 = vrot.slane %v1574, %v1592
        %v1595 = vmul.f32 %v1588, %v1593
        %v1597 = vlaneseq
        %v1598 = vshrl.u32 %v1597, 7
        %v1599 = vsub.s32 0, %v1598
        %v1600 = vrot.slane %v1575, %v1599
        %v1602 = vadd.f32 %v1595, %v1600
        %v1603 = vpack.c.bf16 %v1602, %v1602
        %v1604 = vld [vmem:[%s14] sm:$0xf]
        %v1605 = vld [vmem:[%s14 + $0x4] sm:$0xf]
        %v1606 = vld [vmem:[%s14 + $0x8] sm:$0xf]
        %v1607 = vld [vmem:[%s14 + $0xc] sm:$0xf]
        %v1608 = vld [vmem:[%s15] sm:$0x1]
        %v1610 = vlaneseq
        %v1611 = vshrl.u32 %v1610, 7
        %v1612 = vsub.s32 0, %v1611
        %v1613 = vrot.slane %v1608, %v1612
        %v1619 = vunpack.c.l.b16 %v1604
        %v1620 = vunpack.c.l.b16 %v1605
        %v1621 = vunpack.c.l.b16 %v1606
        %v1622 = vunpack.c.l.b16 %v1607
        %v1623 = vpack.c.b16 %v1620, %v1619
        %v1624 = vpack.c.b16 %v1622, %v1621
        %v1628 = vsel %vm819, %v1603, 0
        %1630 = vmatprep.subr.bf16.mxu0 0
        %1631 = vmatpush1.bf16.msra.mxu0 %v1623
        %1632 = vmatprep.subr.bf16.mxu0 0
        %1633 = vmatpush1.bf16.msra.mxu0 %v1624
        %1634 = vmatprep.subr.bf16.mxu0 0
        %1635 = vmatpush1.bf16.msra.mxu0 0
        %1636 = vmatprep.subr.bf16.mxu0 0
        %1637 = vmatpush1.bf16.msra.mxu0 0
        %1638 = vmatprep.subr.bf16.mxu0 0
        %1639 = vmatpush1.bf16.msra.mxu0 0
        %1640 = vmatprep.subr.bf16.mxu0 0
        %1641 = vmatpush1.bf16.msra.mxu0 0
        %1642 = vmatprep.subr.bf16.mxu0 0
        %1643 = vmatpush1.bf16.msra.mxu0 0
        %1644 = vmatprep.subr.bf16.mxu0 0
        %1645 = vmatpush1.bf16.msra.mxu0 0
        %1646 = vmatprep.subr.bf16.mxu0 0
        %1647 = vmatpush1.bf16.msra.mxu0 0
        %1648 = vmatprep.subr.bf16.mxu0 0
        %1649 = vmatpush1.bf16.msra.mxu0 0
        %1650 = vmatprep.subr.bf16.mxu0 0
        %1651 = vmatpush1.bf16.msra.mxu0 0
        %1652 = vmatprep.subr.bf16.mxu0 0
        %1653 = vmatpush1.bf16.msra.mxu0 0
        %1654 = vmatprep.subr.bf16.mxu0 0
        %1655 = vmatpush1.bf16.msra.mxu0 0
        %1656 = vmatprep.subr.bf16.mxu0 0
        %1657 = vmatpush1.bf16.msra.mxu0 0
        %1658 = vmatprep.subr.bf16.mxu0 0
        %1659 = vmatpush1.bf16.msra.mxu0 0
        %1660 = vmatprep.subr.bf16.mxu0 0
        %1661 = vmatpush1.bf16.msra.mxu0 0
        %1662 = vmatprep.mubr.bf16.mxu0 0
        %1663 = vmatmul.mubr.bf16.gmra.mrb[0].mxu0 %v1628
        %v1664 = vpop.f32.mrb[0].mxu0
        %v1665 = vadd.f32 %v1613, %v1664
        %v1666 = vpop.f32.mrb[0].mxu0
        %v1667 = vpop.f32.mrb[0].mxu0
        %v1668 = vpop.f32.mrb[0].mxu0
        %1669 = vdwg.mxu0
        %v1670 = vmul.f32 %v1665, 0.5
        %v1671 = vmul.f32 %v1665, 0.044715
        %v1672 = vmul.f32 %v1671, %v1665
        %v1673 = vmul.f32 %v1672, %v1665
        %v1674 = vadd.f32 %v1665, %v1673
        %v1675 = vmul.f32 %v1674, 0.7978846
        %v1676 = vtanh.pop %v1675
        %v1677 = vadd.f32 %v1676, 1.0
        %v1678 = vmul.f32 %v1670, %v1677
        %v1679 = vpack.c.bf16 %v1678, %v1678
        %v1680 = vld [vmem:[%s16] sm:$0xf]
        %v1681 = vld [vmem:[%s16 + $0x4] sm:$0xf]
        %v1682 = vld [vmem:[%s16 + $0x8] sm:$0xf]
        %v1683 = vld [vmem:[%s16 + $0xc] sm:$0xf]
        %v1684 = vld [vmem:[%s16 + $0x10] sm:$0xf]
        %v1685 = vld [vmem:[%s16 + $0x14] sm:$0xf]
        %v1686 = vld [vmem:[%s16 + $0x18] sm:$0xf]
        %v1687 = vld [vmem:[%s16 + $0x1c] sm:$0xf]
        %v1688 = vld [vmem:[%s16 + $0x20] sm:$0xf]
        %v1689 = vld [vmem:[%s16 + $0x24] sm:$0xf]
        %v1690 = vld [vmem:[%s16 + $0x28] sm:$0xf]
        %v1691 = vld [vmem:[%s16 + $0x2c] sm:$0xf]
        %v1692 = vld [vmem:[%s16 + $0x30] sm:$0xf]
        %v1693 = vld [vmem:[%s16 + $0x34] sm:$0xf]
        %v1694 = vld [vmem:[%s16 + $0x38] sm:$0xf]
        %v1695 = vld [vmem:[%s16 + $0x3c] sm:$0xf]
        %v1696 = vld [vmem:[%s17] sm:$0x1]
        %v1698 = vlaneseq
        %v1699 = vshrl.u32 %v1698, 7
        %v1700 = vsub.s32 0, %v1699
        %v1701 = vrot.slane %v1696, %v1700
        %v1719 = vunpack.c.l.b16 %v1680
        %v1720 = vunpack.c.l.b16 %v1681
        %v1721 = vunpack.c.l.b16 %v1682
        %v1722 = vunpack.c.l.b16 %v1683
        %v1723 = vunpack.c.l.b16 %v1684
        %v1724 = vunpack.c.l.b16 %v1685
        %v1725 = vunpack.c.l.b16 %v1686
        %v1726 = vunpack.c.l.b16 %v1687
        %v1727 = vunpack.c.l.b16 %v1688
        %v1728 = vunpack.c.l.b16 %v1689
        %v1729 = vunpack.c.l.b16 %v1690
        %v1730 = vunpack.c.l.b16 %v1691
        %v1731 = vunpack.c.l.b16 %v1692
        %v1732 = vunpack.c.l.b16 %v1693
        %v1733 = vunpack.c.l.b16 %v1694
        %v1734 = vunpack.c.l.b16 %v1695
        %v1735 = vpack.c.b16 %v1720, %v1719
        %v1736 = vpack.c.b16 %v1722, %v1721
        %v1737 = vpack.c.b16 %v1724, %v1723
        %v1738 = vpack.c.b16 %v1726, %v1725
        %v1739 = vpack.c.b16 %v1728, %v1727
        %v1740 = vpack.c.b16 %v1730, %v1729
        %v1741 = vpack.c.b16 %v1732, %v1731
        %v1742 = vpack.c.b16 %v1734, %v1733
        %1751 = vmatprep.subr.bf16.mxu0 0
        %1752 = vmatpush1.bf16.msra.mxu0 %v1735
        %1753 = vmatprep.subr.bf16.mxu0 0
        %1754 = vmatpush1.bf16.msra.mxu0 %v1736
        %1755 = vmatprep.subr.bf16.mxu0 0
        %1756 = vmatpush1.bf16.msra.mxu0 %v1737
        %1757 = vmatprep.subr.bf16.mxu0 0
        %1758 = vmatpush1.bf16.msra.mxu0 %v1738
        %1759 = vmatprep.subr.bf16.mxu0 0
        %1760 = vmatpush1.bf16.msra.mxu0 %v1739
        %1761 = vmatprep.subr.bf16.mxu0 0
        %1762 = vmatpush1.bf16.msra.mxu0 %v1740
        %1763 = vmatprep.subr.bf16.mxu0 0
        %1764 = vmatpush1.bf16.msra.mxu0 %v1741
        %1765 = vmatprep.subr.bf16.mxu0 0
        %1766 = vmatpush1.bf16.msra.mxu0 %v1742
        %1767 = vmatprep.subr.bf16.mxu0 0
        %1768 = vmatpush1.bf16.msra.mxu0 0
        %1769 = vmatprep.subr.bf16.mxu0 0
        %1770 = vmatpush1.bf16.msra.mxu0 0
        %1771 = vmatprep.subr.bf16.mxu0 0
        %1772 = vmatpush1.bf16.msra.mxu0 0
        %1773 = vmatprep.subr.bf16.mxu0 0
        %1774 = vmatpush1.bf16.msra.mxu0 0
        %1775 = vmatprep.subr.bf16.mxu0 0
        %1776 = vmatpush1.bf16.msra.mxu0 0
        %1777 = vmatprep.subr.bf16.mxu0 0
        %1778 = vmatpush1.bf16.msra.mxu0 0
        %1779 = vmatprep.subr.bf16.mxu0 0
        %1780 = vmatpush1.bf16.msra.mxu0 0
        %1781 = vmatprep.subr.bf16.mxu0 0
        %1782 = vmatpush1.bf16.msra.mxu0 0
        %1783 = vmatprep.mubr.bf16.mxu0 0
        %1784 = vmatmul.mubr.bf16.gmra.mrb[0].mxu0 %v1679
        %v1785 = vpop.f32.mrb[0].mxu0
        %v1786 = vadd.f32 %v1701, %v1785
        %v1787 = vpop.f32.mrb[0].mxu0
        %v1788 = vpop.f32.mrb[0].mxu0
        %v1789 = vpop.f32.mrb[0].mxu0
        %1790 = vdwg.mxu0
        %v1791 = vadd.f32 %v1786, %v1602
        %v1792 = vld [vmem:[%s18] sm:$0x1]
        %v1793 = vld [vmem:[%s19] sm:$0x1]
        %v1794 = vsel %vm819, %v1791, 0.0
        %1795 = vadd.xlane.f32.xlu0 %v1794
        %v1796 = vpop.xlane.xlu0 %1795
        %v1797 = vmul.f32 %v1796, %v823
        %v1798 = vsub.f32 %v1791, %v1797
        %v1799 = vmul.f32 %v1798, %v1798
        %v1800 = vsel %vm819, %v1799, 0.0
        %1801 = vadd.xlane.f32.xlu0 %v1800
        %v1802 = vpop.xlane.xlu0 %1801
        %v1803 = vmul.f32 %v1802, %v823
        %v1804 = vadd.f32 %v1803, 1e-12
        %v1805 = vrsqrt.pop %v1804
        %v1806 = vmul.f32 %v1798, %v1805
        %v1808 = vlaneseq
        %v1809 = vshrl.u32 %v1808, 7
        %v1810 = vsub.s32 0, %v1809
        %v1811 = vrot.slane %v1792, %v1810
        %v1813 = vmul.f32 %v1806, %v1811
        %v1815 = vlaneseq
        %v1816 = vshrl.u32 %v1815, 7
        %v1817 = vsub.s32 0, %v1816
        %v1818 = vrot.slane %v1793, %v1817
        %v1820 = vadd.f32 %v1813, %v1818
        %v1821 = vpack.c.bf16 %v1820, %v1820
        %s1822 = scalar_lea.vmem %s8, 16
        %v1823 = vld [vmem:[%s1822] sm:$0xf]
        %v1824 = vld [vmem:[%s1822 + $0x4] sm:$0xf]
        %v1825 = vld [vmem:[%s1822 + $0x8] sm:$0xf]
        %v1826 = vld [vmem:[%s1822 + $0xc] sm:$0xf]
        %s1827 = scalar_lea.vmem %s9, 1
        %v1828 = vld [vmem:[%s1827] sm:$0x1]
        %v1830 = vlaneseq
        %v1831 = vshrl.u32 %v1830, 7
        %v1832 = vsub.s32 0, %v1831
        %v1833 = vrot.slane %v1828, %v1832
        %v1839 = vunpack.c.l.b16 %v1823
        %v1840 = vunpack.c.l.b16 %v1824
        %v1841 = vunpack.c.l.b16 %v1825
        %v1842 = vunpack.c.l.b16 %v1826
        %v1843 = vpack.c.b16 %v1840, %v1839
        %v1844 = vpack.c.b16 %v1842, %v1841
        %v1848 = vsel %vm819, %v1821, 0
        %1850 = vmatprep.subr.bf16.mxu0 0
        %1851 = vmatpush1.bf16.msra.mxu0 %v1843
        %1852 = vmatprep.subr.bf16.mxu0 0
        %1853 = vmatpush1.bf16.msra.mxu0 %v1844
        %1854 = vmatprep.subr.bf16.mxu0 0
        %1855 = vmatpush1.bf16.msra.mxu0 0
        %1856 = vmatprep.subr.bf16.mxu0 0
        %1857 = vmatpush1.bf16.msra.mxu0 0
        %1858 = vmatprep.subr.bf16.mxu0 0
        %1859 = vmatpush1.bf16.msra.mxu0 0
        %1860 = vmatprep.subr.bf16.mxu0 0
        %1861 = vmatpush1.bf16.msra.mxu0 0
        %1862 = vmatprep.subr.bf16.mxu0 0
        %1863 = vmatpush1.bf16.msra.mxu0 0
        %1864 = vmatprep.subr.bf16.mxu0 0
        %1865 = vmatpush1.bf16.msra.mxu0 0
        %1866 = vmatprep.subr.bf16.mxu0 0
        %1867 = vmatpush1.bf16.msra.mxu0 0
        %1868 = vmatprep.subr.bf16.mxu0 0
        %1869 = vmatpush1.bf16.msra.mxu0 0
        %1870 = vmatprep.subr.bf16.mxu0 0
        %1871 = vmatpush1.bf16.msra.mxu0 0
        %1872 = vmatprep.subr.bf16.mxu0 0
        %1873 = vmatpush1.bf16.msra.mxu0 0
        %1874 = vmatprep.subr.bf16.mxu0 0
        %1875 = vmatpush1.bf16.msra.mxu0 0
        %1876 = vmatprep.subr.bf16.mxu0 0
        %1877 = vmatpush1.bf16.msra.mxu0 0
        %1878 = vmatprep.subr.bf16.mxu0 0
        %1879 = vmatpush1.bf16.msra.mxu0 0
        %1880 = vmatprep.subr.bf16.mxu0 0
        %1881 = vmatpush1.bf16.msra.mxu0 0
        %1882 = vmatprep.mubr.bf16.mxu0 0
        %1883 = vmatmul.mubr.bf16.gmra.mrb[0].mxu0 %v1848
        %v1884 = vpop.f32.mrb[0].mxu0
        %v1885 = vadd.f32 %v1833, %v1884
        %v1886 = vpop.f32.mrb[0].mxu0
        %v1887 = vpop.f32.mrb[0].mxu0
        %v1888 = vpop.f32.mrb[0].mxu0
        %1889 = vdwg.mxu0
        %v1890 = vpack.c.bf16 %v1885, %v1885
        %1892 = vrot.lane.b32.xlu0 %v1890, 120
        %v1893 = vpop.permute.xlu0 %1892
        %1894 = vrot.lane.b32.xlu0 %v1890, 112
        %v1895 = vpop.permute.xlu0 %1894
        %1896 = vrot.lane.b32.xlu0 %v1890, 104
        %v1897 = vpop.permute.xlu0 %1896
        %1898 = vrot.lane.b32.xlu0 %v1890, 96
        %v1899 = vpop.permute.xlu0 %1898
        %v1901 = vsel %vm935, %v1890, 0
        %v1904 = vsel %vm935, %v1899, 0
        %1906 = vmatprep.subr.bf16.mxu0 0
        %1907 = vmatpush1.bf16.xpose.msra.mxu0 %v1904
        %1908 = vmatprep.subr.bf16.mxu0 0
        %1909 = vmatpush1.bf16.xpose.msra.mxu0 0
        %1910 = vmatprep.subr.bf16.mxu0 0
        %1911 = vmatpush1.bf16.xpose.msra.mxu0 0
        %1912 = vmatprep.subr.bf16.mxu0 0
        %1913 = vmatpush1.bf16.xpose.msra.mxu0 0
        %1914 = vmatprep.subr.bf16.mxu0 0
        %1915 = vmatpush1.bf16.xpose.msra.mxu0 0
        %1916 = vmatprep.subr.bf16.mxu0 0
        %1917 = vmatpush1.bf16.xpose.msra.mxu0 0
        %1918 = vmatprep.subr.bf16.mxu0 0
        %1919 = vmatpush1.bf16.xpose.msra.mxu0 0
        %1920 = vmatprep.subr.bf16.mxu0 0
        %1921 = vmatpush1.bf16.xpose.msra.mxu0 0
        %1922 = vmatprep.subr.bf16.mxu0 0
        %1923 = vmatpush1.bf16.xpose.msra.mxu0 0
        %1924 = vmatprep.subr.bf16.mxu0 0
        %1925 = vmatpush1.bf16.xpose.msra.mxu0 0
        %1926 = vmatprep.subr.bf16.mxu0 0
        %1927 = vmatpush1.bf16.xpose.msra.mxu0 0
        %1928 = vmatprep.subr.bf16.mxu0 0
        %1929 = vmatpush1.bf16.xpose.msra.mxu0 0
        %1930 = vmatprep.subr.bf16.mxu0 0
        %1931 = vmatpush1.bf16.xpose.msra.mxu0 0
        %1932 = vmatprep.subr.bf16.mxu0 0
        %1933 = vmatpush1.bf16.xpose.msra.mxu0 0
        %1934 = vmatprep.subr.bf16.mxu0 0
        %1935 = vmatpush1.bf16.xpose.msra.mxu0 0
        %1936 = vmatprep.subr.bf16.mxu0 0
        %1937 = vmatpush1.bf16.xpose.msra.mxu0 0
        %1938 = vmatprep.mubr.bf16.mxu0 0
        %1939 = vmatmul.mubr.bf16.gmra.mrb[0].mxu0 %v1901
        %v1940 = vpop.f32.mrb[0].mxu0
        %v1941 = vadd.f32 %v856, %v1940
        %v1942 = vpop.f32.mrb[0].mxu0
        %v1943 = vpop.f32.mrb[0].mxu0
        %v1944 = vpop.f32.mrb[0].mxu0
        %1945 = vdwg.mxu0
        %1946 = vrot.lane.b32.xlu0 %v1893, 96
        %v1947 = vpop.permute.xlu0 %1946
        %v1949 = vsel %vm935, %v1893, 0
        %v1952 = vsel %vm935, %v1947, 0
        %1954 = vmatprep.subr.bf16.mxu0 0
        %1955 = vmatpush1.bf16.xpose.msra.mxu0 %v1952
        %1956 = vmatprep.subr.bf16.mxu0 0
        %1957 = vmatpush1.bf16.xpose.msra.mxu0 0
        %1958 = vmatprep.subr.bf16.mxu0 0
        %1959 = vmatpush1.bf16.xpose.msra.mxu0 0
        %1960 = vmatprep.subr.bf16.mxu0 0
        %1961 = vmatpush1.bf16.xpose.msra.mxu0 0
        %1962 = vmatprep.subr.bf16.mxu0 0
        %1963 = vmatpush1.bf16.xpose.msra.mxu0 0
        %1964 = vmatprep.subr.bf16.mxu0 0
        %1965 = vmatpush1.bf16.xpose.msra.mxu0 0
        %1966 = vmatprep.subr.bf16.mxu0 0
        %1967 = vmatpush1.bf16.xpose.msra.mxu0 0
        %1968 = vmatprep.subr.bf16.mxu0 0
        %1969 = vmatpush1.bf16.xpose.msra.mxu0 0
        %1970 = vmatprep.subr.bf16.mxu0 0
        %1971 = vmatpush1.bf16.xpose.msra.mxu0 0
        %1972 = vmatprep.subr.bf16.mxu0 0
        %1973 = vmatpush1.bf16.xpose.msra.mxu0 0
        %1974 = vmatprep.subr.bf16.mxu0 0
        %1975 = vmatpush1.bf16.xpose.msra.mxu0 0
        %1976 = vmatprep.subr.bf16.mxu0 0
        %1977 = vmatpush1.bf16.xpose.msra.mxu0 0
        %1978 = vmatprep.subr.bf16.mxu0 0
        %1979 = vmatpush1.bf16.xpose.msra.mxu0 0
        %1980 = vmatprep.subr.bf16.mxu0 0
        %1981 = vmatpush1.bf16.xpose.msra.mxu0 0
        %1982 = vmatprep.subr.bf16.mxu0 0
        %1983 = vmatpush1.bf16.xpose.msra.mxu0 0
        %1984 = vmatprep.subr.bf16.mxu0 0
        %1985 = vmatpush1.bf16.xpose.msra.mxu0 0
        %1986 = vmatprep.mubr.bf16.mxu0 0
        %1987 = vmatmul.mubr.bf16.gmra.mrb[0].mxu0 %v1949
        %v1988 = vpop.f32.mrb[0].mxu0
        %v1989 = vadd.f32 %v856, %v1988
        %v1990 = vpop.f32.mrb[0].mxu0
        %v1991 = vpop.f32.mrb[0].mxu0
        %v1992 = vpop.f32.mrb[0].mxu0
        %1993 = vdwg.mxu0
        %1994 = vrot.lane.b32.xlu0 %v1895, 96
        %v1995 = vpop.permute.xlu0 %1994
        %v1997 = vsel %vm935, %v1895, 0
        %v2000 = vsel %vm935, %v1995, 0
        %2002 = vmatprep.subr.bf16.mxu0 0
        %2003 = vmatpush1.bf16.xpose.msra.mxu0 %v2000
        %2004 = vmatprep.subr.bf16.mxu0 0
        %2005 = vmatpush1.bf16.xpose.msra.mxu0 0
        %2006 = vmatprep.subr.bf16.mxu0 0
        %2007 = vmatpush1.bf16.xpose.msra.mxu0 0
        %2008 = vmatprep.subr.bf16.mxu0 0
        %2009 = vmatpush1.bf16.xpose.msra.mxu0 0
        %2010 = vmatprep.subr.bf16.mxu0 0
        %2011 = vmatpush1.bf16.xpose.msra.mxu0 0
        %2012 = vmatprep.subr.bf16.mxu0 0
        %2013 = vmatpush1.bf16.xpose.msra.mxu0 0
        %2014 = vmatprep.subr.bf16.mxu0 0
        %2015 = vmatpush1.bf16.xpose.msra.mxu0 0
        %2016 = vmatprep.subr.bf16.mxu0 0
        %2017 = vmatpush1.bf16.xpose.msra.mxu0 0
        %2018 = vmatprep.subr.bf16.mxu0 0
        %2019 = vmatpush1.bf16.xpose.msra.mxu0 0
        %2020 = vmatprep.subr.bf16.mxu0 0
        %2021 = vmatpush1.bf16.xpose.msra.mxu0 0
        %2022 = vmatprep.subr.bf16.mxu0 0
        %2023 = vmatpush1.bf16.xpose.msra.mxu0 0
        %2024 = vmatprep.subr.bf16.mxu0 0
        %2025 = vmatpush1.bf16.xpose.msra.mxu0 0
        %2026 = vmatprep.subr.bf16.mxu0 0
        %2027 = vmatpush1.bf16.xpose.msra.mxu0 0
        %2028 = vmatprep.subr.bf16.mxu0 0
        %2029 = vmatpush1.bf16.xpose.msra.mxu0 0
        %2030 = vmatprep.subr.bf16.mxu0 0
        %2031 = vmatpush1.bf16.xpose.msra.mxu0 0
        %2032 = vmatprep.subr.bf16.mxu0 0
        %2033 = vmatpush1.bf16.xpose.msra.mxu0 0
        %2034 = vmatprep.mubr.bf16.mxu0 0
        %2035 = vmatmul.mubr.bf16.gmra.mrb[0].mxu0 %v1997
        %v2036 = vpop.f32.mrb[0].mxu0
        %v2037 = vadd.f32 %v856, %v2036
        %v2038 = vpop.f32.mrb[0].mxu0
        %v2039 = vpop.f32.mrb[0].mxu0
        %v2040 = vpop.f32.mrb[0].mxu0
        %2041 = vdwg.mxu0
        %2042 = vrot.lane.b32.xlu0 %v1897, 96
        %v2043 = vpop.permute.xlu0 %2042
        %v2045 = vsel %vm935, %v1897, 0
        %v2048 = vsel %vm935, %v2043, 0
        %2050 = vmatprep.subr.bf16.mxu0 0
        %2051 = vmatpush1.bf16.xpose.msra.mxu0 %v2048
        %2052 = vmatprep.subr.bf16.mxu0 0
        %2053 = vmatpush1.bf16.xpose.msra.mxu0 0
        %2054 = vmatprep.subr.bf16.mxu0 0
        %2055 = vmatpush1.bf16.xpose.msra.mxu0 0
        %2056 = vmatprep.subr.bf16.mxu0 0
        %2057 = vmatpush1.bf16.xpose.msra.mxu0 0
        %2058 = vmatprep.subr.bf16.mxu0 0
        %2059 = vmatpush1.bf16.xpose.msra.mxu0 0
        %2060 = vmatprep.subr.bf16.mxu0 0
        %2061 = vmatpush1.bf16.xpose.msra.mxu0 0
        %2062 = vmatprep.subr.bf16.mxu0 0
        %2063 = vmatpush1.bf16.xpose.msra.mxu0 0
        %2064 = vmatprep.subr.bf16.mxu0 0
        %2065 = vmatpush1.bf16.xpose.msra.mxu0 0
        %2066 = vmatprep.subr.bf16.mxu0 0
        %2067 = vmatpush1.bf16.xpose.msra.mxu0 0
        %2068 = vmatprep.subr.bf16.mxu0 0
        %2069 = vmatpush1.bf16.xpose.msra.mxu0 0
        %2070 = vmatprep.subr.bf16.mxu0 0
        %2071 = vmatpush1.bf16.xpose.msra.mxu0 0
        %2072 = vmatprep.subr.bf16.mxu0 0
        %2073 = vmatpush1.bf16.xpose.msra.mxu0 0
        %2074 = vmatprep.subr.bf16.mxu0 0
        %2075 = vmatpush1.bf16.xpose.msra.mxu0 0
        %2076 = vmatprep.subr.bf16.mxu0 0
        %2077 = vmatpush1.bf16.xpose.msra.mxu0 0
        %2078 = vmatprep.subr.bf16.mxu0 0
        %2079 = vmatpush1.bf16.xpose.msra.mxu0 0
        %2080 = vmatprep.subr.bf16.mxu0 0
        %2081 = vmatpush1.bf16.xpose.msra.mxu0 0
        %2082 = vmatprep.mubr.bf16.mxu0 0
        %2083 = vmatmul.mubr.bf16.gmra.mrb[0].mxu0 %v2045
        %v2084 = vpop.f32.mrb[0].mxu0
        %v2085 = vadd.f32 %v856, %v2084
        %v2086 = vpop.f32.mrb[0].mxu0
        %v2087 = vpop.f32.mrb[0].mxu0
        %v2088 = vpop.f32.mrb[0].mxu0
        %2089 = vdwg.mxu0
        %v2090 = vsel %vm935, %v1941, -inf
        %2091 = vmax.xlane.f32.xlu0 %v2090
        %v2092 = vpop.xlane.xlu0 %2091
        %v2093 = vsel %vm935, %v1989, -inf
        %2094 = vmax.xlane.f32.xlu0 %v2093
        %v2095 = vpop.xlane.xlu0 %2094
        %v2096 = vsel %vm935, %v2037, -inf
        %2097 = vmax.xlane.f32.xlu0 %v2096
        %v2098 = vpop.xlane.xlu0 %2097
        %v2099 = vsel %vm935, %v2085, -inf
        %2100 = vmax.xlane.f32.xlu0 %v2099
        %v2101 = vpop.xlane.xlu0 %2100
        %v2102 = vsub.f32 %v1941, %v2092
        %v2103 = vsub.f32 %v1989, %v2095
        %v2104 = vsub.f32 %v2037, %v2098
        %v2105 = vsub.f32 %v2085, %v2101
        %v2106 = vmul.f32 %v2102, 1.442695
        %v2107 = vpow.pop %v2106
        %v2108 = vmul.f32 %v2103, 1.442695
        %v2109 = vpow.pop %v2108
        %v2110 = vmul.f32 %v2104, 1.442695
        %v2111 = vpow.pop %v2110
        %v2112 = vmul.f32 %v2105, 1.442695
        %v2113 = vpow.pop %v2112
        %v2114 = vsel %vm935, %v2107, 0.0
        %2115 = vadd.xlane.f32.xlu0 %v2114
        %v2116 = vpop.xlane.xlu0 %2115
        %v2117 = vsel %vm935, %v2109, 0.0
        %2118 = vadd.xlane.f32.xlu0 %v2117
        %v2119 = vpop.xlane.xlu0 %2118
        %v2120 = vsel %vm935, %v2111, 0.0
        %2121 = vadd.xlane.f32.xlu0 %v2120
        %v2122 = vpop.xlane.xlu0 %2121
        %v2123 = vsel %vm935, %v2113, 0.0
        %2124 = vadd.xlane.f32.xlu0 %v2123
        %v2125 = vpop.xlane.xlu0 %2124
        %v2126 = vrcp.pop %v2116
        %v2127 = vrcp.pop %v2119
        %v2128 = vrcp.pop %v2122
        %v2129 = vrcp.pop %v2125
        %v2130 = vmul.f32 %v2107, %v2126
        %v2131 = vmul.f32 %v2109, %v2127
        %v2132 = vmul.f32 %v2111, %v2128
        %v2133 = vmul.f32 %v2113, %v2129
        %v2134 = vpack.c.bf16 %v2130, %v2130
        %v2135 = vpack.c.bf16 %v2131, %v2131
        %v2136 = vpack.c.bf16 %v2132, %v2132
        %v2137 = vpack.c.bf16 %v2133, %v2133
        %2138 = vrot.lane.b32.xlu0 %v1890, 64
        %v2139 = vpop.permute.xlu0 %2138
        %v2141 = vsel %vm935, %v2134, 0
        %v2144 = vsel %vm664, %v2139, 0
        %2146 = vmatprep.subr.bf16.mxu0 0
        %2147 = vmatpush1.bf16.msra.mxu0 %v2144
        %2148 = vmatprep.subr.bf16.mxu0 0
        %2149 = vmatpush1.bf16.msra.mxu0 0
        %2150 = vmatprep.subr.bf16.mxu0 0
        %2151 = vmatpush1.bf16.msra.mxu0 0
        %2152 = vmatprep.subr.bf16.mxu0 0
        %2153 = vmatpush1.bf16.msra.mxu0 0
        %2154 = vmatprep.subr.bf16.mxu0 0
        %2155 = vmatpush1.bf16.msra.mxu0 0
        %2156 = vmatprep.subr.bf16.mxu0 0
        %2157 = vmatpush1.bf16.msra.mxu0 0
        %2158 = vmatprep.subr.bf16.mxu0 0
        %2159 = vmatpush1.bf16.msra.mxu0 0
        %2160 = vmatprep.subr.bf16.mxu0 0
        %2161 = vmatpush1.bf16.msra.mxu0 0
        %2162 = vmatprep.subr.bf16.mxu0 0
        %2163 = vmatpush1.bf16.msra.mxu0 0
        %2164 = vmatprep.subr.bf16.mxu0 0
        %2165 = vmatpush1.bf16.msra.mxu0 0
        %2166 = vmatprep.subr.bf16.mxu0 0
        %2167 = vmatpush1.bf16.msra.mxu0 0
        %2168 = vmatprep.subr.bf16.mxu0 0
        %2169 = vmatpush1.bf16.msra.mxu0 0
        %2170 = vmatprep.subr.bf16.mxu0 0
        %2171 = vmatpush1.bf16.msra.mxu0 0
        %2172 = vmatprep.subr.bf16.mxu0 0
        %2173 = vmatpush1.bf16.msra.mxu0 0
        %2174 = vmatprep.subr.bf16.mxu0 0
        %2175 = vmatpush1.bf16.msra.mxu0 0
        %2176 = vmatprep.subr.bf16.mxu0 0
        %2177 = vmatpush1.bf16.msra.mxu0 0
        %2178 = vmatprep.mubr.bf16.mxu0 0
        %2179 = vmatmul.mubr.bf16.gmra.mrb[0].mxu0 %v2141
        %v2180 = vpop.f32.mrb[0].mxu0
        %v2181 = vadd.f32 0.0, %v2180
        %v2182 = vpop.f32.mrb[0].mxu0
        %v2183 = vpop.f32.mrb[0].mxu0
        %v2184 = vpop.f32.mrb[0].mxu0
        %2185 = vdwg.mxu0
        %2186 = vrot.lane.b32.xlu0 %v1893, 64
        %v2187 = vpop.permute.xlu0 %2186
        %v2189 = vsel %vm935, %v2135, 0
        %v2192 = vsel %vm664, %v2187, 0
        %2194 = vmatprep.subr.bf16.mxu0 0
        %2195 = vmatpush1.bf16.msra.mxu0 %v2192
        %2196 = vmatprep.subr.bf16.mxu0 0
        %2197 = vmatpush1.bf16.msra.mxu0 0
        %2198 = vmatprep.subr.bf16.mxu0 0
        %2199 = vmatpush1.bf16.msra.mxu0 0
        %2200 = vmatprep.subr.bf16.mxu0 0
        %2201 = vmatpush1.bf16.msra.mxu0 0
        %2202 = vmatprep.subr.bf16.mxu0 0
        %2203 = vmatpush1.bf16.msra.mxu0 0
        %2204 = vmatprep.subr.bf16.mxu0 0
        %2205 = vmatpush1.bf16.msra.mxu0 0
        %2206 = vmatprep.subr.bf16.mxu0 0
        %2207 = vmatpush1.bf16.msra.mxu0 0
        %2208 = vmatprep.subr.bf16.mxu0 0
        %2209 = vmatpush1.bf16.msra.mxu0 0
        %2210 = vmatprep.subr.bf16.mxu0 0
        %2211 = vmatpush1.bf16.msra.mxu0 0
        %2212 = vmatprep.subr.bf16.mxu0 0
        %2213 = vmatpush1.bf16.msra.mxu0 0
        %2214 = vmatprep.subr.bf16.mxu0 0
        %2215 = vmatpush1.bf16.msra.mxu0 0
        %2216 = vmatprep.subr.bf16.mxu0 0
        %2217 = vmatpush1.bf16.msra.mxu0 0
        %2218 = vmatprep.subr.bf16.mxu0 0
        %2219 = vmatpush1.bf16.msra.mxu0 0
        %2220 = vmatprep.subr.bf16.mxu0 0
        %2221 = vmatpush1.bf16.msra.mxu0 0
        %2222 = vmatprep.subr.bf16.mxu0 0
        %2223 = vmatpush1.bf16.msra.mxu0 0
        %2224 = vmatprep.subr.bf16.mxu0 0
        %2225 = vmatpush1.bf16.msra.mxu0 0
        %2226 = vmatprep.mubr.bf16.mxu0 0
        %2227 = vmatmul.mubr.bf16.gmra.mrb[0].mxu0 %v2189
        %v2228 = vpop.f32.mrb[0].mxu0
        %v2229 = vadd.f32 0.0, %v2228
        %v2230 = vpop.f32.mrb[0].mxu0
        %v2231 = vpop.f32.mrb[0].mxu0
        %v2232 = vpop.f32.mrb[0].mxu0
        %2233 = vdwg.mxu0
        %2234 = vrot.lane.b32.xlu0 %v1895, 64
        %v2235 = vpop.permute.xlu0 %2234
        %v2237 = vsel %vm935, %v2136, 0
        %v2240 = vsel %vm664, %v2235, 0
        %2242 = vmatprep.subr.bf16.mxu0 0
        %2243 = vmatpush1.bf16.msra.mxu0 %v2240
        %2244 = vmatprep.subr.bf16.mxu0 0
        %2245 = vmatpush1.bf16.msra.mxu0 0
        %2246 = vmatprep.subr.bf16.mxu0 0
        %2247 = vmatpush1.bf16.msra.mxu0 0
        %2248 = vmatprep.subr.bf16.mxu0 0
        %2249 = vmatpush1.bf16.msra.mxu0 0
        %2250 = vmatprep.subr.bf16.mxu0 0
        %2251 = vmatpush1.bf16.msra.mxu0 0
        %2252 = vmatprep.subr.bf16.mxu0 0
        %2253 = vmatpush1.bf16.msra.mxu0 0
        %2254 = vmatprep.subr.bf16.mxu0 0
        %2255 = vmatpush1.bf16.msra.mxu0 0
        %2256 = vmatprep.subr.bf16.mxu0 0
        %2257 = vmatpush1.bf16.msra.mxu0 0
        %2258 = vmatprep.subr.bf16.mxu0 0
        %2259 = vmatpush1.bf16.msra.mxu0 0
        %2260 = vmatprep.subr.bf16.mxu0 0
        %2261 = vmatpush1.bf16.msra.mxu0 0
        %2262 = vmatprep.subr.bf16.mxu0 0
        %2263 = vmatpush1.bf16.msra.mxu0 0
        %2264 = vmatprep.subr.bf16.mxu0 0
        %2265 = vmatpush1.bf16.msra.mxu0 0
        %2266 = vmatprep.subr.bf16.mxu0 0
        %2267 = vmatpush1.bf16.msra.mxu0 0
        %2268 = vmatprep.subr.bf16.mxu0 0
        %2269 = vmatpush1.bf16.msra.mxu0 0
        %2270 = vmatprep.subr.bf16.mxu0 0
        %2271 = vmatpush1.bf16.msra.mxu0 0
        %2272 = vmatprep.subr.bf16.mxu0 0
        %2273 = vmatpush1.bf16.msra.mxu0 0
        %2274 = vmatprep.mubr.bf16.mxu0 0
        %2275 = vmatmul.mubr.bf16.gmra.mrb[0].mxu0 %v2237
        %v2276 = vpop.f32.mrb[0].mxu0
        %v2277 = vadd.f32 0.0, %v2276
        %v2278 = vpop.f32.mrb[0].mxu0
        %v2279 = vpop.f32.mrb[0].mxu0
        %v2280 = vpop.f32.mrb[0].mxu0
        %2281 = vdwg.mxu0
        %2282 = vrot.lane.b32.xlu0 %v1897, 64
        %v2283 = vpop.permute.xlu0 %2282
        %v2285 = vsel %vm935, %v2137, 0
        %v2288 = vsel %vm664, %v2283, 0
        %2290 = vmatprep.subr.bf16.mxu0 0
        %2291 = vmatpush1.bf16.msra.mxu0 %v2288
        %2292 = vmatprep.subr.bf16.mxu0 0
        %2293 = vmatpush1.bf16.msra.mxu0 0
        %2294 = vmatprep.subr.bf16.mxu0 0
        %2295 = vmatpush1.bf16.msra.mxu0 0
        %2296 = vmatprep.subr.bf16.mxu0 0
        %2297 = vmatpush1.bf16.msra.mxu0 0
        %2298 = vmatprep.subr.bf16.mxu0 0
        %2299 = vmatpush1.bf16.msra.mxu0 0
        %2300 = vmatprep.subr.bf16.mxu0 0
        %2301 = vmatpush1.bf16.msra.mxu0 0
        %2302 = vmatprep.subr.bf16.mxu0 0
        %2303 = vmatpush1.bf16.msra.mxu0 0
        %2304 = vmatprep.subr.bf16.mxu0 0
        %2305 = vmatpush1.bf16.msra.mxu0 0
        %2306 = vmatprep.subr.bf16.mxu0 0
        %2307 = vmatpush1.bf16.msra.mxu0 0
        %2308 = vmatprep.subr.bf16.mxu0 0
        %2309 = vmatpush1.bf16.msra.mxu0 0
        %2310 = vmatprep.subr.bf16.mxu0 0
        %2311 = vmatpush1.bf16.msra.mxu0 0
        %2312 = vmatprep.subr.bf16.mxu0 0
        %2313 = vmatpush1.bf16.msra.mxu0 0
        %2314 = vmatprep.subr.bf16.mxu0 0
        %2315 = vmatpush1.bf16.msra.mxu0 0
        %2316 = vmatprep.subr.bf16.mxu0 0
        %2317 = vmatpush1.bf16.msra.mxu0 0
        %2318 = vmatprep.subr.bf16.mxu0 0
        %2319 = vmatpush1.bf16.msra.mxu0 0
        %2320 = vmatprep.subr.bf16.mxu0 0
        %2321 = vmatpush1.bf16.msra.mxu0 0
        %2322 = vmatprep.mubr.bf16.mxu0 0
        %2323 = vmatmul.mubr.bf16.gmra.mrb[0].mxu0 %v2285
        %v2324 = vpop.f32.mrb[0].mxu0
        %v2325 = vadd.f32 0.0, %v2324
        %v2326 = vpop.f32.mrb[0].mxu0
        %v2327 = vpop.f32.mrb[0].mxu0
        %v2328 = vpop.f32.mrb[0].mxu0
        %2329 = vdwg.mxu0
        %v2330 = vpack.c.bf16 %v2181, %v2181
        %v2331 = vpack.c.bf16 %v2229, %v2229
        %v2332 = vpack.c.bf16 %v2277, %v2277
        %v2333 = vpack.c.bf16 %v2325, %v2325
        %s2334 = scalar_lea.vmem %s10, 16
        %v2335 = vld [vmem:[%s2334] sm:$0xf]
        %v2336 = vld [vmem:[%s2334 + $0x4] sm:$0xf]
        %v2337 = vld [vmem:[%s2334 + $0x8] sm:$0xf]
        %v2338 = vld [vmem:[%s2334 + $0xc] sm:$0xf]
        %v2340 = vsel %vm935, %v2330, 0
        %v2343 = vsel %vm664, %v2335, 0
        %2345 = vmatprep.subr.bf16.mxu0 0
        %2346 = vmatpush1.bf16.msra.mxu0 %v2343
        %2347 = vmatprep.subr.bf16.mxu0 0
        %2348 = vmatpush1.bf16.msra.mxu0 0
        %2349 = vmatprep.subr.bf16.mxu0 0
        %2350 = vmatpush1.bf16.msra.mxu0 0
        %2351 = vmatprep.subr.bf16.mxu0 0
        %2352 = vmatpush1.bf16.msra.mxu0 0
        %2353 = vmatprep.subr.bf16.mxu0 0
        %2354 = vmatpush1.bf16.msra.mxu0 0
        %2355 = vmatprep.subr.bf16.mxu0 0
        %2356 = vmatpush1.bf16.msra.mxu0 0
        %2357 = vmatprep.subr.bf16.mxu0 0
        %2358 = vmatpush1.bf16.msra.mxu0 0
        %2359 = vmatprep.subr.bf16.mxu0 0
        %2360 = vmatpush1.bf16.msra.mxu0 0
        %2361 = vmatprep.subr.bf16.mxu0 0
        %2362 = vmatpush1.bf16.msra.mxu0 0
        %2363 = vmatprep.subr.bf16.mxu0 0
        %2364 = vmatpush1.bf16.msra.mxu0 0
        %2365 = vmatprep.subr.bf16.mxu0 0
        %2366 = vmatpush1.bf16.msra.mxu0 0
        %2367 = vmatprep.subr.bf16.mxu0 0
        %2368 = vmatpush1.bf16.msra.mxu0 0
        %2369 = vmatprep.subr.bf16.mxu0 0
        %2370 = vmatpush1.bf16.msra.mxu0 0
        %2371 = vmatprep.subr.bf16.mxu0 0
        %2372 = vmatpush1.bf16.msra.mxu0 0
        %2373 = vmatprep.subr.bf16.mxu0 0
        %2374 = vmatpush1.bf16.msra.mxu0 0
        %2375 = vmatprep.subr.bf16.mxu0 0
        %2376 = vmatpush1.bf16.msra.mxu0 0
        %2377 = vmatprep.mubr.bf16.mxu0 0
        %2378 = vmatmul.mubr.bf16.gmra.mrb[0].mxu0 %v2340
        %v2379 = vpop.f32.mrb[0].mxu0
        %v2380 = vadd.f32 0.0, %v2379
        %v2381 = vpop.f32.mrb[0].mxu0
        %v2382 = vpop.f32.mrb[0].mxu0
        %v2383 = vpop.f32.mrb[0].mxu0
        %2384 = vdwg.mxu0
        %v2386 = vsel %vm935, %v2331, 0
        %v2389 = vsel %vm664, %v2336, 0
        %2391 = vmatprep.subr.bf16.mxu0 0
        %2392 = vmatpush1.bf16.msra.mxu0 %v2389
        %2393 = vmatprep.subr.bf16.mxu0 0
        %2394 = vmatpush1.bf16.msra.mxu0 0
        %2395 = vmatprep.subr.bf16.mxu0 0
        %2396 = vmatpush1.bf16.msra.mxu0 0
        %2397 = vmatprep.subr.bf16.mxu0 0
        %2398 = vmatpush1.bf16.msra.mxu0 0
        %2399 = vmatprep.subr.bf16.mxu0 0
        %2400 = vmatpush1.bf16.msra.mxu0 0
        %2401 = vmatprep.subr.bf16.mxu0 0
        %2402 = vmatpush1.bf16.msra.mxu0 0
        %2403 = vmatprep.subr.bf16.mxu0 0
        %2404 = vmatpush1.bf16.msra.mxu0 0
        %2405 = vmatprep.subr.bf16.mxu0 0
        %2406 = vmatpush1.bf16.msra.mxu0 0
        %2407 = vmatprep.subr.bf16.mxu0 0
        %2408 = vmatpush1.bf16.msra.mxu0 0
        %2409 = vmatprep.subr.bf16.mxu0 0
        %2410 = vmatpush1.bf16.msra.mxu0 0
        %2411 = vmatprep.subr.bf16.mxu0 0
        %2412 = vmatpush1.bf16.msra.mxu0 0
        %2413 = vmatprep.subr.bf16.mxu0 0
        %2414 = vmatpush1.bf16.msra.mxu0 0
        %2415 = vmatprep.subr.bf16.mxu0 0
        %2416 = vmatpush1.bf16.msra.mxu0 0
        %2417 = vmatprep.subr.bf16.mxu0 0
        %2418 = vmatpush1.bf16.msra.mxu0 0
        %2419 = vmatprep.subr.bf16.mxu0 0
        %2420 = vmatpush1.bf16.msra.mxu0 0
        %2421 = vmatprep.subr.bf16.mxu0 0
        %2422 = vmatpush1.bf16.msra.mxu0 0
        %2423 = vmatprep.mubr.bf16.mxu0 0
        %2424 = vmatmul.mubr.bf16.gmra.mrb[0].mxu0 %v2386
        %v2425 = vpop.f32.mrb[0].mxu0
        %v2426 = vadd.f32 0.0, %v2425
        %v2427 = vpop.f32.mrb[0].mxu0
        %v2428 = vpop.f32.mrb[0].mxu0
        %v2429 = vpop.f32.mrb[0].mxu0
        %2430 = vdwg.mxu0
        %v2432 = vsel %vm935, %v2332, 0
        %v2435 = vsel %vm664, %v2337, 0
        %2437 = vmatprep.subr.bf16.mxu0 0
        %2438 = vmatpush1.bf16.msra.mxu0 %v2435
        %2439 = vmatprep.subr.bf16.mxu0 0
        %2440 = vmatpush1.bf16.msra.mxu0 0
        %2441 = vmatprep.subr.bf16.mxu0 0
        %2442 = vmatpush1.bf16.msra.mxu0 0
        %2443 = vmatprep.subr.bf16.mxu0 0
        %2444 = vmatpush1.bf16.msra.mxu0 0
        %2445 = vmatprep.subr.bf16.mxu0 0
        %2446 = vmatpush1.bf16.msra.mxu0 0
        %2447 = vmatprep.subr.bf16.mxu0 0
        %2448 = vmatpush1.bf16.msra.mxu0 0
        %2449 = vmatprep.subr.bf16.mxu0 0
        %2450 = vmatpush1.bf16.msra.mxu0 0
        %2451 = vmatprep.subr.bf16.mxu0 0
        %2452 = vmatpush1.bf16.msra.mxu0 0
        %2453 = vmatprep.subr.bf16.mxu0 0
        %2454 = vmatpush1.bf16.msra.mxu0 0
        %2455 = vmatprep.subr.bf16.mxu0 0
        %2456 = vmatpush1.bf16.msra.mxu0 0
        %2457 = vmatprep.subr.bf16.mxu0 0
        %2458 = vmatpush1.bf16.msra.mxu0 0
        %2459 = vmatprep.subr.bf16.mxu0 0
        %2460 = vmatpush1.bf16.msra.mxu0 0
        %2461 = vmatprep.subr.bf16.mxu0 0
        %2462 = vmatpush1.bf16.msra.mxu0 0
        %2463 = vmatprep.subr.bf16.mxu0 0
        %2464 = vmatpush1.bf16.msra.mxu0 0
        %2465 = vmatprep.subr.bf16.mxu0 0
        %2466 = vmatpush1.bf16.msra.mxu0 0
        %2467 = vmatprep.subr.bf16.mxu0 0
        %2468 = vmatpush1.bf16.msra.mxu0 0
        %2469 = vmatprep.mubr.bf16.mxu0 0
        %2470 = vmatmul.mubr.bf16.gmra.mrb[0].mxu0 %v2432
        %v2471 = vpop.f32.mrb[0].mxu0
        %v2472 = vadd.f32 0.0, %v2471
        %v2473 = vpop.f32.mrb[0].mxu0
        %v2474 = vpop.f32.mrb[0].mxu0
        %v2475 = vpop.f32.mrb[0].mxu0
        %2476 = vdwg.mxu0
        %v2478 = vsel %vm935, %v2333, 0
        %v2481 = vsel %vm664, %v2338, 0
        %2483 = vmatprep.subr.bf16.mxu0 0
        %2484 = vmatpush1.bf16.msra.mxu0 %v2481
        %2485 = vmatprep.subr.bf16.mxu0 0
        %2486 = vmatpush1.bf16.msra.mxu0 0
        %2487 = vmatprep.subr.bf16.mxu0 0
        %2488 = vmatpush1.bf16.msra.mxu0 0
        %2489 = vmatprep.subr.bf16.mxu0 0
        %2490 = vmatpush1.bf16.msra.mxu0 0
        %2491 = vmatprep.subr.bf16.mxu0 0
        %2492 = vmatpush1.bf16.msra.mxu0 0
        %2493 = vmatprep.subr.bf16.mxu0 0
        %2494 = vmatpush1.bf16.msra.mxu0 0
        %2495 = vmatprep.subr.bf16.mxu0 0
        %2496 = vmatpush1.bf16.msra.mxu0 0
        %2497 = vmatprep.subr.bf16.mxu0 0
        %2498 = vmatpush1.bf16.msra.mxu0 0
        %2499 = vmatprep.subr.bf16.mxu0 0
        %2500 = vmatpush1.bf16.msra.mxu0 0
        %2501 = vmatprep.subr.bf16.mxu0 0
        %2502 = vmatpush1.bf16.msra.mxu0 0
        %2503 = vmatprep.subr.bf16.mxu0 0
        %2504 = vmatpush1.bf16.msra.mxu0 0
        %2505 = vmatprep.subr.bf16.mxu0 0
        %2506 = vmatpush1.bf16.msra.mxu0 0
        %2507 = vmatprep.subr.bf16.mxu0 0
        %2508 = vmatpush1.bf16.msra.mxu0 0
        %2509 = vmatprep.subr.bf16.mxu0 0
        %2510 = vmatpush1.bf16.msra.mxu0 0
        %2511 = vmatprep.subr.bf16.mxu0 0
        %2512 = vmatpush1.bf16.msra.mxu0 0
        %2513 = vmatprep.subr.bf16.mxu0 0
        %2514 = vmatpush1.bf16.msra.mxu0 0
        %2515 = vmatprep.mubr.bf16.mxu0 0
        %2516 = vmatmul.mubr.bf16.gmra.mrb[0].mxu0 %v2478
        %v2517 = vpop.f32.mrb[0].mxu0
        %v2518 = vadd.f32 0.0, %v2517
        %v2519 = vpop.f32.mrb[0].mxu0
        %v2520 = vpop.f32.mrb[0].mxu0
        %v2521 = vpop.f32.mrb[0].mxu0
        %2522 = vdwg.mxu0
        %v2523 = vsel %vm819, %v2380, 0.0
        %v2524 = vsel %vm819, %v2426, 0.0
        %v2525 = vadd.f32 %v2523, %v2524
        %v2526 = vsel %vm819, %v2472, 0.0
        %v2527 = vadd.f32 %v2525, %v2526
        %v2528 = vsel %vm819, %v2518, 0.0
        %v2529 = vadd.f32 %v2527, %v2528
        %s2530 = scalar_lea.vmem %s11, 1
        %v2531 = vld [vmem:[%s2530] sm:$0x1]
        %v2533 = vlaneseq
        %v2534 = vshrl.u32 %v2533, 7
        %v2535 = vsub.s32 0, %v2534
        %v2536 = vrot.slane %v2531, %v2535
        %v2538 = vadd.f32 %v2529, %v2536
        %v2539 = vadd.f32 %v2538, %v1820
        %s2540 = scalar_lea.vmem %s12, 1
        %v2541 = vld [vmem:[%s2540] sm:$0x1]
        %s2542 = scalar_lea.vmem %s13, 1
        %v2543 = vld [vmem:[%s2542] sm:$0x1]
        %v2544 = vsel %vm819, %v2539, 0.0
        %2545 = vadd.xlane.f32.xlu0 %v2544
        %v2546 = vpop.xlane.xlu0 %2545
        %v2547 = vmul.f32 %v2546, %v823
        %v2548 = vsub.f32 %v2539, %v2547
        %v2549 = vmul.f32 %v2548, %v2548
        %v2550 = vsel %vm819, %v2549, 0.0
        %2551 = vadd.xlane.f32.xlu0 %v2550
        %v2552 = vpop.xlane.xlu0 %2551
        %v2553 = vmul.f32 %v2552, %v823
        %v2554 = vadd.f32 %v2553, 1e-12
        %v2555 = vrsqrt.pop %v2554
        %v2556 = vmul.f32 %v2548, %v2555
        %v2558 = vlaneseq
        %v2559 = vshrl.u32 %v2558, 7
        %v2560 = vsub.s32 0, %v2559
        %v2561 = vrot.slane %v2541, %v2560
        %v2563 = vmul.f32 %v2556, %v2561
        %v2565 = vlaneseq
        %v2566 = vshrl.u32 %v2565, 7
        %v2567 = vsub.s32 0, %v2566
        %v2568 = vrot.slane %v2543, %v2567
        %v2570 = vadd.f32 %v2563, %v2568
        %v2571 = vpack.c.bf16 %v2570, %v2570
        %s2572 = scalar_lea.vmem %s14, 16
        %v2573 = vld [vmem:[%s2572] sm:$0xf]
        %v2574 = vld [vmem:[%s2572 + $0x4] sm:$0xf]
        %v2575 = vld [vmem:[%s2572 + $0x8] sm:$0xf]
        %v2576 = vld [vmem:[%s2572 + $0xc] sm:$0xf]
        %s2577 = scalar_lea.vmem %s15, 1
        %v2578 = vld [vmem:[%s2577] sm:$0x1]
        %v2580 = vlaneseq
        %v2581 = vshrl.u32 %v2580, 7
        %v2582 = vsub.s32 0, %v2581
        %v2583 = vrot.slane %v2578, %v2582
        %v2589 = vunpack.c.l.b16 %v2573
        %v2590 = vunpack.c.l.b16 %v2574
        %v2591 = vunpack.c.l.b16 %v2575
        %v2592 = vunpack.c.l.b16 %v2576
        %v2593 = vpack.c.b16 %v2590, %v2589
        %v2594 = vpack.c.b16 %v2592, %v2591
        %v2598 = vsel %vm819, %v2571, 0
        %2600 = vmatprep.subr.bf16.mxu0 0
        %2601 = vmatpush1.bf16.msra.mxu0 %v2593
        %2602 = vmatprep.subr.bf16.mxu0 0
        %2603 = vmatpush1.bf16.msra.mxu0 %v2594
        %2604 = vmatprep.subr.bf16.mxu0 0
        %2605 = vmatpush1.bf16.msra.mxu0 0
        %2606 = vmatprep.subr.bf16.mxu0 0
        %2607 = vmatpush1.bf16.msra.mxu0 0
        %2608 = vmatprep.subr.bf16.mxu0 0
        %2609 = vmatpush1.bf16.msra.mxu0 0
        %2610 = vmatprep.subr.bf16.mxu0 0
        %2611 = vmatpush1.bf16.msra.mxu0 0
        %2612 = vmatprep.subr.bf16.mxu0 0
        %2613 = vmatpush1.bf16.msra.mxu0 0
        %2614 = vmatprep.subr.bf16.mxu0 0
        %2615 = vmatpush1.bf16.msra.mxu0 0
        %2616 = vmatprep.subr.bf16.mxu0 0
        %2617 = vmatpush1.bf16.msra.mxu0 0
        %2618 = vmatprep.subr.bf16.mxu0 0
        %2619 = vmatpush1.bf16.msra.mxu0 0
        %2620 = vmatprep.subr.bf16.mxu0 0
        %2621 = vmatpush1.bf16.msra.mxu0 0
        %2622 = vmatprep.subr.bf16.mxu0 0
        %2623 = vmatpush1.bf16.msra.mxu0 0
        %2624 = vmatprep.subr.bf16.mxu0 0
        %2625 = vmatpush1.bf16.msra.mxu0 0
        %2626 = vmatprep.subr.bf16.mxu0 0
        %2627 = vmatpush1.bf16.msra.mxu0 0
        %2628 = vmatprep.subr.bf16.mxu0 0
        %2629 = vmatpush1.bf16.msra.mxu0 0
        %2630 = vmatprep.subr.bf16.mxu0 0
        %2631 = vmatpush1.bf16.msra.mxu0 0
        %2632 = vmatprep.mubr.bf16.mxu0 0
        %2633 = vmatmul.mubr.bf16.gmra.mrb[0].mxu0 %v2598
        %v2634 = vpop.f32.mrb[0].mxu0
        %v2635 = vadd.f32 %v2583, %v2634
        %v2636 = vpop.f32.mrb[0].mxu0
        %v2637 = vpop.f32.mrb[0].mxu0
        %v2638 = vpop.f32.mrb[0].mxu0
        %2639 = vdwg.mxu0
        %v2640 = vmul.f32 %v2635, 0.5
        %v2641 = vmul.f32 %v2635, 0.044715
        %v2642 = vmul.f32 %v2641, %v2635
        %v2643 = vmul.f32 %v2642, %v2635
        %v2644 = vadd.f32 %v2635, %v2643
        %v2645 = vmul.f32 %v2644, 0.7978846
        %v2646 = vtanh.pop %v2645
        %v2647 = vadd.f32 %v2646, 1.0
        %v2648 = vmul.f32 %v2640, %v2647
        %v2649 = vpack.c.bf16 %v2648, %v2648
        %s2650 = scalar_lea.vmem %s16, 64
        %v2651 = vld [vmem:[%s2650] sm:$0xf]
        %v2652 = vld [vmem:[%s2650 + $0x4] sm:$0xf]
        %v2653 = vld [vmem:[%s2650 + $0x8] sm:$0xf]
        %v2654 = vld [vmem:[%s2650 + $0xc] sm:$0xf]
        %v2655 = vld [vmem:[%s2650 + $0x10] sm:$0xf]
        %v2656 = vld [vmem:[%s2650 + $0x14] sm:$0xf]
        %v2657 = vld [vmem:[%s2650 + $0x18] sm:$0xf]
        %v2658 = vld [vmem:[%s2650 + $0x1c] sm:$0xf]
        %v2659 = vld [vmem:[%s2650 + $0x20] sm:$0xf]
        %v2660 = vld [vmem:[%s2650 + $0x24] sm:$0xf]
        %v2661 = vld [vmem:[%s2650 + $0x28] sm:$0xf]
        %v2662 = vld [vmem:[%s2650 + $0x2c] sm:$0xf]
        %v2663 = vld [vmem:[%s2650 + $0x30] sm:$0xf]
        %v2664 = vld [vmem:[%s2650 + $0x34] sm:$0xf]
        %v2665 = vld [vmem:[%s2650 + $0x38] sm:$0xf]
        %v2666 = vld [vmem:[%s2650 + $0x3c] sm:$0xf]
        %s2667 = scalar_lea.vmem %s17, 1
        %v2668 = vld [vmem:[%s2667] sm:$0x1]
        %v2670 = vlaneseq
        %v2671 = vshrl.u32 %v2670, 7
        %v2672 = vsub.s32 0, %v2671
        %v2673 = vrot.slane %v2668, %v2672
        %v2691 = vunpack.c.l.b16 %v2651
        %v2692 = vunpack.c.l.b16 %v2652
        %v2693 = vunpack.c.l.b16 %v2653
        %v2694 = vunpack.c.l.b16 %v2654
        %v2695 = vunpack.c.l.b16 %v2655
        %v2696 = vunpack.c.l.b16 %v2656
        %v2697 = vunpack.c.l.b16 %v2657
        %v2698 = vunpack.c.l.b16 %v2658
        %v2699 = vunpack.c.l.b16 %v2659
        %v2700 = vunpack.c.l.b16 %v2660
        %v2701 = vunpack.c.l.b16 %v2661
        %v2702 = vunpack.c.l.b16 %v2662
        %v2703 = vunpack.c.l.b16 %v2663
        %v2704 = vunpack.c.l.b16 %v2664
        %v2705 = vunpack.c.l.b16 %v2665
        %v2706 = vunpack.c.l.b16 %v2666
        %v2707 = vpack.c.b16 %v2692, %v2691
        %v2708 = vpack.c.b16 %v2694, %v2693
        %v2709 = vpack.c.b16 %v2696, %v2695
        %v2710 = vpack.c.b16 %v2698, %v2697
        %v2711 = vpack.c.b16 %v2700, %v2699
        %v2712 = vpack.c.b16 %v2702, %v2701
        %v2713 = vpack.c.b16 %v2704, %v2703
        %v2714 = vpack.c.b16 %v2706, %v2705
        %2723 = vmatprep.subr.bf16.mxu0 0
        %2724 = vmatpush1.bf16.msra.mxu0 %v2707
        %2725 = vmatprep.subr.bf16.mxu0 0
        %2726 = vmatpush1.bf16.msra.mxu0 %v2708
        %2727 = vmatprep.subr.bf16.mxu0 0
        %2728 = vmatpush1.bf16.msra.mxu0 %v2709
        %2729 = vmatprep.subr.bf16.mxu0 0
        %2730 = vmatpush1.bf16.msra.mxu0 %v2710
        %2731 = vmatprep.subr.bf16.mxu0 0
        %2732 = vmatpush1.bf16.msra.mxu0 %v2711
        %2733 = vmatprep.subr.bf16.mxu0 0
        %2734 = vmatpush1.bf16.msra.mxu0 %v2712
        %2735 = vmatprep.subr.bf16.mxu0 0
        %2736 = vmatpush1.bf16.msra.mxu0 %v2713
        %2737 = vmatprep.subr.bf16.mxu0 0
        %2738 = vmatpush1.bf16.msra.mxu0 %v2714
        %2739 = vmatprep.subr.bf16.mxu0 0
        %2740 = vmatpush1.bf16.msra.mxu0 0
        %2741 = vmatprep.subr.bf16.mxu0 0
        %2742 = vmatpush1.bf16.msra.mxu0 0
        %2743 = vmatprep.subr.bf16.mxu0 0
        %2744 = vmatpush1.bf16.msra.mxu0 0
        %2745 = vmatprep.subr.bf16.mxu0 0
        %2746 = vmatpush1.bf16.msra.mxu0 0
        %2747 = vmatprep.subr.bf16.mxu0 0
        %2748 = vmatpush1.bf16.msra.mxu0 0
        %2749 = vmatprep.subr.bf16.mxu0 0
        %2750 = vmatpush1.bf16.msra.mxu0 0
        %2751 = vmatprep.subr.bf16.mxu0 0
        %2752 = vmatpush1.bf16.msra.mxu0 0
        %2753 = vmatprep.subr.bf16.mxu0 0
        %2754 = vmatpush1.bf16.msra.mxu0 0
        %2755 = vmatprep.mubr.bf16.mxu0 0
        %2756 = vmatmul.mubr.bf16.gmra.mrb[0].mxu0 %v2649
        %v2757 = vpop.f32.mrb[0].mxu0
        %v2758 = vadd.f32 %v2673, %v2757
        %v2759 = vpop.f32.mrb[0].mxu0
        %v2760 = vpop.f32.mrb[0].mxu0
        %v2761 = vpop.f32.mrb[0].mxu0
        %2762 = vdwg.mxu0
        %v2763 = vadd.f32 %v2758, %v2570
        %s2764 = scalar_lea.vmem %s18, 1
        %v2765 = vld [vmem:[%s2764] sm:$0x1]
        %s2766 = scalar_lea.vmem %s19, 1
        %v2767 = vld [vmem:[%s2766] sm:$0x1]
        %v2768 = vsel %vm819, %v2763, 0.0
        %2769 = vadd.xlane.f32.xlu0 %v2768
        %v2770 = vpop.xlane.xlu0 %2769
        %v2771 = vmul.f32 %v2770, %v823
        %v2772 = vsub.f32 %v2763, %v2771
        %v2773 = vmul.f32 %v2772, %v2772
        %v2774 = vsel %vm819, %v2773, 0.0
        %2775 = vadd.xlane.f32.xlu0 %v2774
        %v2776 = vpop.xlane.xlu0 %2775
        %v2777 = vmul.f32 %v2776, %v823
        %v2778 = vadd.f32 %v2777, 1e-12
        %v2779 = vrsqrt.pop %v2778
        %v2780 = vmul.f32 %v2772, %v2779
        %v2782 = vlaneseq
        %v2783 = vshrl.u32 %v2782, 7
        %v2784 = vsub.s32 0, %v2783
        %v2785 = vrot.slane %v2765, %v2784
        %v2787 = vmul.f32 %v2780, %v2785
        %v2789 = vlaneseq
        %v2790 = vshrl.u32 %v2789, 7
        %v2791 = vsub.s32 0, %v2790
        %v2792 = vrot.slane %v2767, %v2791
        %v2794 = vadd.f32 %v2787, %v2792
        %v2795 = vpack.c.bf16 %v2794, %v2794
        %v2796 = vld [vmem:[%s20] sm:$0xf]
        %v2797 = vld [vmem:[%s20 + $0x4] sm:$0xf]
        %v2798 = vld [vmem:[%s20 + $0x8] sm:$0xf]
        %v2799 = vld [vmem:[%s20 + $0xc] sm:$0xf]
        %v2800 = vld [vmem:[%s21] sm:$0x1]
        %v2805 = vunpack.c.l.b16 %v2796
        %v2806 = vunpack.c.l.b16 %v2797
        %v2807 = vunpack.c.l.b16 %v2798
        %v2808 = vunpack.c.l.b16 %v2799
        %v2809 = vpack.c.b16 %v2806, %v2805
        %v2810 = vpack.c.b16 %v2808, %v2807
        %v2814 = vsel %vm819, %v2795, 0
        %2816 = vmatprep.subr.bf16.mxu0 0
        %2817 = vmatpush1.bf16.msra.mxu0 %v2809
        %2818 = vmatprep.subr.bf16.mxu0 0
        %2819 = vmatpush1.bf16.msra.mxu0 %v2810
        %2820 = vmatprep.subr.bf16.mxu0 0
        %2821 = vmatpush1.bf16.msra.mxu0 0
        %2822 = vmatprep.subr.bf16.mxu0 0
        %2823 = vmatpush1.bf16.msra.mxu0 0
        %2824 = vmatprep.subr.bf16.mxu0 0
        %2825 = vmatpush1.bf16.msra.mxu0 0
        %2826 = vmatprep.subr.bf16.mxu0 0
        %2827 = vmatpush1.bf16.msra.mxu0 0
        %2828 = vmatprep.subr.bf16.mxu0 0
        %2829 = vmatpush1.bf16.msra.mxu0 0
        %2830 = vmatprep.subr.bf16.mxu0 0
        %2831 = vmatpush1.bf16.msra.mxu0 0
        %2832 = vmatprep.subr.bf16.mxu0 0
        %2833 = vmatpush1.bf16.msra.mxu0 0
        %2834 = vmatprep.subr.bf16.mxu0 0
        %2835 = vmatpush1.bf16.msra.mxu0 0
        %2836 = vmatprep.subr.bf16.mxu0 0
        %2837 = vmatpush1.bf16.msra.mxu0 0
        %2838 = vmatprep.subr.bf16.mxu0 0
        %2839 = vmatpush1.bf16.msra.mxu0 0
        %2840 = vmatprep.subr.bf16.mxu0 0
        %2841 = vmatpush1.bf16.msra.mxu0 0
        %2842 = vmatprep.subr.bf16.mxu0 0
        %2843 = vmatpush1.bf16.msra.mxu0 0
        %2844 = vmatprep.subr.bf16.mxu0 0
        %2845 = vmatpush1.bf16.msra.mxu0 0
        %2846 = vmatprep.subr.bf16.mxu0 0
        %2847 = vmatpush1.bf16.msra.mxu0 0
        %2848 = vmatprep.mubr.bf16.mxu0 0
        %2849 = vmatmul.mubr.bf16.gmra.mrb[0].mxu0 %v2814
        %v2850 = vpop.f32.mrb[0].mxu0
        %v2851 = vadd.f32 %v2800, %v2850
        %v2852 = vpop.f32.mrb[0].mxu0
        %v2853 = vpop.f32.mrb[0].mxu0
        %v2854 = vpop.f32.mrb[0].mxu0
        %2855 = vdwg.mxu0
        %vm2856 = vcmask 16384
        %2857 = vst.msk [vmem:[%s629] sm:$0x1] %vm2856, %v2851
        %s2858 = sand.u32 %s479, 1
        %s2859 = scalar_lea.sflag [#allocation6], %s2858
        %s2860 = sand.u32 %s479, 1
        %s2861 = scalar_lea.vmem [#allocation5], %s2860
        // Predicated region
        $region101: #{bert_cl_forward.1} parent=99 // pred_check
          %p2862 = pneg %p489
        $region102: #{bert_cl_forward.1} parent=99 // pred_check_branch
          %2864 = sbr.rel (%p2862) target = $region104
        $region103: #{bert_cl_forward.1} parent=99 // pred_region
          %s2866 = ssub.s32 16, 16
          %2867 = vsyncadd %s2859, %s2866
          %s2868 = smul.addr %s46, 16
          %s2869 = scalar_lea.hbm %s22, %s2868
          %s2871 = sshll.u32 %s2861, 4
          %s2872 = int_to_ptr.vmem [resolvable:$true] %s2871
          %2874 = dma.vmem_to_hbm [thread:$0]  %s2872, 16, %s2869, %s2859
        $region104: #{bert_cl_forward.1} parent=99 // pred_fallthru
          _
      $region100: #{bert_cl_forward.1} parent=5 // pred_fallthru
        _
      %p2875 = scmp.le.s32.totalorder 2, %s41
      // Predicated region
      $region105: #{bert_cl_forward.1} parent=5 // pred_check
        %p2876 = pneg %p2875
      $region106: #{bert_cl_forward.1} parent=5 // pred_check_branch
        %2878 = sbr.rel (%p2876) target = $region108
      $region107: #{bert_cl_forward.1} parent=5 // pred_region
        %s2879 = ssub.s32 %s41, 2
        // Predicated region
        $region109: #{bert_cl_forward.1} parent=107 // pred_check
          %p2880 = pneg %p495
        $region110: #{bert_cl_forward.1} parent=107 // pred_check_branch
          %2882 = sbr.rel (%p2880) target = $region112
        $region111: #{bert_cl_forward.1} parent=107 // pred_region
          %s2883 = sand.u32 %s480, 1
          %s2884 = scalar_lea.sflag [#allocation6], %s2883
          %s2885 = sand.u32 %s480, 1
          %s2886 = scalar_lea.vmem [#allocation5], %s2885
          %2887 = dma.done %s2884, 16
        $region112: #{bert_cl_forward.1} parent=107 // pred_fallthru
          _
      $region108: #{bert_cl_forward.1} parent=5 // pred_fallthru
        _
    $region6: #{bert_cl_forward.1} parent=1 // loop_footer
      %s45 = sadd.s32 1, %s41
    $region7: #{bert_cl_forward.1} parent=1 // loop_footer_branch
      %40 = sbr.rel target = $region3
    $region8: #{bert_cl_forward.1} parent=1 // loop_exit
      _
    %2888 = vsyncpa [#allocation6], 1
    %s2889 = scalar_lea.sflag [#allocation6], 1
    %2890 = vsyncpa %s2889, 1

</llo_original>
